<compile_context>
chip_gen: v7x
topology: tpu7x:2x2x1
jax: 0.10.0
libtpu: 0.0.40
codegen_flags: <defaults>
</compile_context>

<pallas_src>
import numpy as np
import jax
import jax.numpy as jnp
from jax import lax
from jax.experimental import pallas as pl
from jax.experimental.pallas import tpu as pltpu


def _leaky(v, slope=0.01):
    # F.leaky_relu default negative_slope = 0.01
    return jnp.where(v >= 0, v, slope * v)


# ----------------------------------------------------------------------------
# Fused kernel: 2-layer bidirectional GRU (batch_first, zero initial state)
#               + leaky_relu -> dense_0 -> residual -> leaky_relu -> dense_1 -> mask
# PyTorch GRU cell math:
#   r = sigmoid(Wir x + bir + Whr h + bhr)
#   z = sigmoid(Wiz x + biz + Whz h + bhz)
#   n = tanh  (Win x + bin + r * (Whn h + bhn))
#   h = (1 - z) * n + z * h
# ----------------------------------------------------------------------------
def pooler_start_logits_gru(hidden_states, p_mask, kp):
    """hidden_states: (B, S, H) f32; p_mask: (B, S); returns (B, S) f32."""
    B, S, H = hidden_states.shape
    SB = S * B

    # Time-major flat layout: row index = t*B + b.
    x_tm = jnp.transpose(hidden_states, (1, 0, 2)).reshape(SB, H)
    pm_tm = jnp.transpose(p_mask).reshape(SB, 1).astype(jnp.float32)

    def kernel(x_ref, pm_ref,
               wih0_ref, whh0_ref, bih0_ref, bhn0_ref,
               wih1_ref, whh1_ref, bih1_ref, bhn1_ref,
               w0_ref, b0_ref, w1_ref, b1_ref,
               out_ref,
               gi0_scr, y0_scr, gi1_scr, y1_scr):

        x = x_ref[...]                                      # (SB, H)

        def bigru_layer(xin, wih_ref, whh_ref, bih_ref, bhn_ref, gi_scr, y_scr):
            # Hoisted input projections for both directions (out of the serial chain).
            # r/z hidden biases are pre-folded into bih; only bhn is applied in-loop.
            gi_scr[0] = (jnp.dot(xin, wih_ref[0], preferred_element_type=jnp.float32)
                         + bih_ref[0])
            gi_scr[1] = (jnp.dot(xin, wih_ref[1], preferred_element_type=jnp.float32)
                         + bih_ref[1])
            whh_f = whh_ref[0]                              # (H, 3H)
            whh_b = whh_ref[1]
            bhn_f = bhn_ref[0]                              # (1, H)
            bhn_b = bhn_ref[1]
            h_f = jnp.zeros((B, H), jnp.float32)
            h_b = jnp.zeros((B, H), jnp.float32)
            for j in range(S):                              # static full unroll (S small & fixed)
                gi_f = gi_scr[0, j * B:(j + 1) * B, :]              # fw consumes timestep j
                gi_b = gi_scr[1, (S - 1 - j) * B:(S - j) * B, :]    # bw consumes timestep S-1-j
                gh_f = jnp.dot(h_f, whh_f, preferred_element_type=jnp.float32)
                gh_b = jnp.dot(h_b, whh_b, preferred_element_type=jnp.float32)
                # forward direction
                r_f = jax.nn.sigmoid(gi_f[:, 0:H] + gh_f[:, 0:H])
                z_f = jax.nn.sigmoid(gi_f[:, H:2 * H] + gh_f[:, H:2 * H])
                n_f = jnp.tanh(gi_f[:, 2 * H:] + r_f * (gh_f[:, 2 * H:] + bhn_f))
                h_f = (1.0 - z_f) * n_f + z_f * h_f
                # backward direction
                r_b = jax.nn.sigmoid(gi_b[:, 0:H] + gh_b[:, 0:H])
                z_b = jax.nn.sigmoid(gi_b[:, H:2 * H] + gh_b[:, H:2 * H])
                n_b = jnp.tanh(gi_b[:, 2 * H:] + r_b * (gh_b[:, 2 * H:] + bhn_b))
                h_b = (1.0 - z_b) * n_b + z_b * h_b
                # Stream layer outputs to scratch: only read after the loop, so these
                # stores are off the serial dependence chain.
                y_scr[j * B:(j + 1) * B, 0:H] = h_f
                y_scr[(S - 1 - j) * B:(S - j) * B, H:2 * H] = h_b
            return y_scr[...]                               # (SB, 2H)  [fw | bw] per timestep

        y0 = bigru_layer(x, wih0_ref, whh0_ref, bih0_ref, bhn0_ref, gi0_scr, y0_scr)
        # TODO(synk): nn.GRU inter-layer dropout(p=0.1) is training-only; inference omits it.
        y1 = bigru_layer(y0, wih1_ref, whh1_ref, bih1_ref, bhn1_ref, gi1_scr, y1_scr)

        # Head: leaky -> dense_0 -> residual add -> leaky -> dense_1 -> mask
        a = _leaky(y1)                                                               # (SB, 2H)
        d0 = jnp.dot(a, w0_ref[...], preferred_element_type=jnp.float32) + b0_ref[...]
        xh = _leaky(x + d0)                                                          # (SB, H)
        # dense_1 (H -> 1): VPU multiply + lane reduction (avoids a 1-lane MXU matmul).
        logits = jnp.sum(xh * w1_ref[...], axis=1, keepdims=True) + b1_ref[...]      # (SB, 1)
        pm = pm_ref[...]                                                             # (SB, 1)
        out_ref[...] = logits * (1.0 - pm) - 1e30 * pm
        # TODO(synk): if B*S grows, emit logits lane-dense ((1, B*S)) instead of (B*S, 1) to
        # avoid masked partial stores; at 16 outputs the required relayout costs more than it saves.

    vmem = pl.BlockSpec(memory_space=pltpu.MemorySpace.VMEM)
    out = pl.pallas_call(
        kernel,
        out_shape=jax.ShapeDtypeStruct((SB, 1), jnp.float32),
        in_specs=[vmem] * 14,
        out_specs=vmem,
        scratch_shapes=[
            pltpu.VMEM((2, SB, 3 * H), jnp.float32),   # gi0: hoisted input projections, layer 0
            pltpu.VMEM((SB, 2 * H), jnp.float32),      # y0 : layer-0 output (fw | bw)
            pltpu.VMEM((2, SB, 3 * H), jnp.float32),   # gi1
            pltpu.VMEM((SB, 2 * H), jnp.float32),      # y1
        ],
    )(x_tm, pm_tm,
      kp['l0_wih'], kp['l0_whh'], kp['l0_bih'], kp['l0_bhn'],
      kp['l1_wih'], kp['l1_whh'], kp['l1_bih'], kp['l1_bhn'],
      kp['w0_t'], kp['b0'], kp['w1_row'], kp['b1'])
    # TODO(synk): on v7x the two directions / per-layer projections could be split across the
    # 2 TensorCores via pl.core_map; not worth it at these tiny shapes.
    return out.reshape(S, B).T                              # back to (B, S)


# ----------------------------------------------------------------------------
# Deterministic parameter init (PyTorch-style U(-1/sqrt(H), 1/sqrt(H))), torch layouts
# transposed for right-multiplication.
# ----------------------------------------------------------------------------
def init_params(key, H):
    ks = jax.random.split(key, 20)
    scale = 1.0 / np.sqrt(H)
    idx = [0]

    def nxt(shape):
        k = ks[idx[0]]
        idx[0] += 1
        return jax.random.uniform(k, shape, jnp.float32, -scale, scale)

    params = {}
    for layer in range(2):
        I = H if layer == 0 else 2 * H
        for d in ('fw', 'bw'):
            w_ih = nxt((3 * H, I))       # torch layout (3H, I)
            w_hh = nxt((3 * H, H))
            b_ih = nxt((3 * H,))
            b_hh = nxt((3 * H,))
            params[f'gru_l{layer}_{d}'] = (
                jnp.transpose(w_ih), jnp.transpose(w_hh),
                b_ih.reshape(1, -1), b_hh.reshape(1, -1))
    w0 = nxt((H, 2 * H))                 # dense_0 (out=H, in=2H)
    b0 = nxt((H,))
    w1 = nxt((1, H))                     # dense_1 (out=1, in=H)
    b1 = nxt((1,))
    params['w0_t'] = jnp.transpose(w0)   # (2H, H)
    params['b0'] = b0.reshape(1, H)
    params['w1_t'] = jnp.transpose(w1)   # (H, 1)
    params['b1'] = b1.reshape(1, 1)
    return params


def pack_params(params, H):
    """Repack per-direction GRU params into the stacked kernel layout (fw=index 0, bw=index 1)."""
    kp = {}
    for layer in range(2):
        wih_f, whh_f, bih_f, bhh_f = params[f'gru_l{layer}_fw']
        wih_b, whh_b, bih_b, bhh_b = params[f'gru_l{layer}_bw']

        def fold(bih, bhh):
            # Fold r/z hidden biases into the hoisted input bias; n-gate bias stays in-loop.
            return bih + jnp.concatenate([bhh[:, :2 * H], jnp.zeros((1, H), jnp.float32)], axis=1)

        kp[f'l{layer}_wih'] = jnp.stack([wih_f, wih_b])                            # (2, I, 3H)
        kp[f'l{layer}_whh'] = jnp.stack([whh_f, whh_b])                            # (2, H, 3H)
        kp[f'l{layer}_bih'] = jnp.stack([fold(bih_f, bhh_f), fold(bih_b, bhh_b)])  # (2, 1, 3H)
        kp[f'l{layer}_bhn'] = jnp.stack([bhh_f[:, 2 * H:], bhh_b[:, 2 * H:]])      # (2, 1, H)
    kp['w0_t'] = params['w0_t']                    # (2H, H)
    kp['b0'] = params['b0']                        # (1, H)
    kp['w1_row'] = jnp.transpose(params['w1_t'])   # (1, H)
    kp['b1'] = params['b1']                        # (1, 1)
    return kp


# ----------------------------------------------------------------------------
# Pure-JAX reference (same math) for verification
# ----------------------------------------------------------------------------
def ref_forward(hidden_states, p_mask, params):
    B, S, H = hidden_states.shape
    layer_in = jnp.transpose(hidden_states, (1, 0, 2))

    def cell(x_t, h, wih_t, whh_t, bih, bhh):
        gi = x_t @ wih_t + bih
        gh = h @ whh_t + bhh
        r = jax.nn.sigmoid(gi[:, :H] + gh[:, :H])
        z = jax.nn.sigmoid(gi[:, H:2 * H] + gh[:, H:2 * H])
        n = jnp.tanh(gi[:, 2 * H:] + r * gh[:, 2 * H:])
        return (1.0 - z) * n + z * h

    for layer in range(2):
        outs = []
        for d in ('fw', 'bw'):
            wih_t, whh_t, bih, bhh = params[f'gru_l{layer}_{d}']
            seq = layer_in if d == 'fw' else layer_in[::-1]

            def step(h, x_t):
                h_new = cell(x_t, h, wih_t, whh_t, bih, bhh)
                return h_new, h_new

            _, ys = lax.scan(step, jnp.zeros((B, H), jnp.float32), seq)
            outs.append(ys if d == 'fw' else ys[::-1])
        layer_in = jnp.concatenate(outs, axis=-1)
    g = jnp.transpose(layer_in, (1, 0, 2))
    a = _leaky(g)
    x = _leaky(hidden_states + a @ params['w0_t'] + params['b0'])
    logits = (x @ params['w1_t'] + params['b1'])[..., 0]
    return logits * (1.0 - p_mask) - 1e30 * p_mask


if __name__ == "__main__":
    B, S, H = 2, 8, 32
    key = jax.random.PRNGKey(0)
    k_hs, k_p = jax.random.split(key)
    hidden_states = jax.random.normal(k_hs, (B, S, H), jnp.float32)
    # mask the last 2 positions of every sequence (1.0 = masked)
    p_mask = jnp.broadcast_to((jnp.arange(S)[None, :] >= S - 2).astype(jnp.float32), (B, S))
    params = init_params(k_p, H)
    kparams = pack_params(params, H)

    fwd = jax.jit(pooler_start_logits_gru)
    out = jax.block_until_ready(fwd(hidden_states, p_mask, kparams))

    ref = ref_forward(hidden_states, p_mask, params)
    np.testing.assert_allclose(np.asarray(out), np.asarray(ref), rtol=1e-4, atol=1e-4)
    print("KERNEL_OK")
</pallas_src>

<mosaic_0001>
module attributes {stable_mosaic.version = 11 : i64} {
  func.func @kernel(%arg0: memref<16x32xf32, #tpu.memory_space<vmem>>, %arg1: memref<16x1xf32, #tpu.memory_space<vmem>>, %arg2: memref<2x32x96xf32, #tpu.memory_space<vmem>>, %arg3: memref<2x32x96xf32, #tpu.memory_space<vmem>>, %arg4: memref<2x1x96xf32, #tpu.memory_space<vmem>>, %arg5: memref<2x1x32xf32, #tpu.memory_space<vmem>>, %arg6: memref<2x64x96xf32, #tpu.memory_space<vmem>>, %arg7: memref<2x32x96xf32, #tpu.memory_space<vmem>>, %arg8: memref<2x1x96xf32, #tpu.memory_space<vmem>>, %arg9: memref<2x1x32xf32, #tpu.memory_space<vmem>>, %arg10: memref<64x32xf32, #tpu.memory_space<vmem>>, %arg11: memref<1x32xf32, #tpu.memory_space<vmem>>, %arg12: memref<1x32xf32, #tpu.memory_space<vmem>>, %arg13: memref<1x1xf32, #tpu.memory_space<vmem>>, %arg14: memref<16x1xf32, #tpu.memory_space<vmem>>, %arg15: memref<2x16x96xf32, #tpu.memory_space<vmem>>, %arg16: memref<16x64xf32, #tpu.memory_space<vmem>>, %arg17: memref<2x16x96xf32, #tpu.memory_space<vmem>>, %arg18: memref<16x64xf32, #tpu.memory_space<vmem>>) attributes {dimension_semantics = [], scalar_prefetch = 0 : i64, scratch_operands = 4 : i64, tpu.core_type = #tpu.core_type<tc>} {
    %c0 = arith.constant 0 : index
    %c0_0 = arith.constant 0 : index
    %0 = vector.load %arg0[%c0, %c0_0] : memref<16x32xf32, #tpu.memory_space<vmem>>, vector<16x32xf32>
    %c0_1 = arith.constant 0 : index
    %c0_2 = arith.constant 0 : index
    %c0_3 = arith.constant 0 : index
    %1 = vector.load %arg2[%c0_1, %c0_2, %c0_3] : memref<2x32x96xf32, #tpu.memory_space<vmem>>, vector<1x32x96xf32>
    %2 = vector.shape_cast %1 : vector<1x32x96xf32> to vector<32x96xf32>
    %cst = arith.constant dense<0.000000e+00> : vector<16x96xf32>
    %3 = tpu.matmul %0, %2, %cst {dimension_numbers = #tpu.dot_dimension_numbers<[1], [0], [0], [1], [0, 0, 1, 1], [], []>} : vector<16x32xf32>, vector<32x96xf32>, vector<16x96xf32> -> vector<16x96xf32>
    %c0_4 = arith.constant 0 : index
    %c0_5 = arith.constant 0 : index
    %c0_6 = arith.constant 0 : index
    %4 = vector.load %arg4[%c0_4, %c0_5, %c0_6] : memref<2x1x96xf32, #tpu.memory_space<vmem>>, vector<1x1x96xf32>
    %5 = vector.shape_cast %4 : vector<1x1x96xf32> to vector<1x96xf32>
    %6 = vector.broadcast %5 : vector<1x96xf32> to vector<16x96xf32>
    %7 = arith.addf %3, %6 : vector<16x96xf32>
    %c0_7 = arith.constant 0 : index
    %c0_8 = arith.constant 0 : index
    %c0_9 = arith.constant 0 : index
    %8 = vector.load %arg15[%c0_7, %c0_8, %c0_9] : memref<2x16x96xf32, #tpu.memory_space<vmem>>, vector<1x16x96xf32>
    %9 = vector.shape_cast %8 : vector<1x16x96xf32> to vector<16x96xf32>
    %10 = vector.shape_cast %7 : vector<16x96xf32> to vector<1x16x96xf32>
    tpu.vector_store %arg15[%c0_7, %c0_8, %c0_9], %10 {strides = array<i32>} : memref<2x16x96xf32, #tpu.memory_space<vmem>>, vector<1x16x96xf32>,
    %c1 = arith.constant 1 : index
    %c0_10 = arith.constant 0 : index
    %c0_11 = arith.constant 0 : index
    %11 = vector.load %arg2[%c1, %c0_10, %c0_11] : memref<2x32x96xf32, #tpu.memory_space<vmem>>, vector<1x32x96xf32>
    %12 = vector.shape_cast %11 : vector<1x32x96xf32> to vector<32x96xf32>
    %cst_12 = arith.constant dense<0.000000e+00> : vector<16x96xf32>
    %13 = tpu.matmul %0, %12, %cst_12 {dimension_numbers = #tpu.dot_dimension_numbers<[1], [0], [0], [1], [0, 0, 1, 1], [], []>} : vector<16x32xf32>, vector<32x96xf32>, vector<16x96xf32> -> vector<16x96xf32>
    %c1_13 = arith.constant 1 : index
    %c0_14 = arith.constant 0 : index
    %c0_15 = arith.constant 0 : index
    %14 = vector.load %arg4[%c1_13, %c0_14, %c0_15] : memref<2x1x96xf32, #tpu.memory_space<vmem>>, vector<1x1x96xf32>
    %15 = vector.shape_cast %14 : vector<1x1x96xf32> to vector<1x96xf32>
    %16 = vector.broadcast %15 : vector<1x96xf32> to vector<16x96xf32>
    %17 = arith.addf %13, %16 : vector<16x96xf32>
    %c1_16 = arith.constant 1 : index
    %c0_17 = arith.constant 0 : index
    %c0_18 = arith.constant 0 : index
    %18 = vector.load %arg15[%c1_16, %c0_17, %c0_18] : memref<2x16x96xf32, #tpu.memory_space<vmem>>, vector<1x16x96xf32>
    %19 = vector.shape_cast %18 : vector<1x16x96xf32> to vector<16x96xf32>
    %20 = vector.shape_cast %17 : vector<16x96xf32> to vector<1x16x96xf32>
    tpu.vector_store %arg15[%c1_16, %c0_17, %c0_18], %20 {strides = array<i32>} : memref<2x16x96xf32, #tpu.memory_space<vmem>>, vector<1x16x96xf32>,
    %c0_19 = arith.constant 0 : index
    %c0_20 = arith.constant 0 : index
    %c0_21 = arith.constant 0 : index
    %21 = vector.load %arg3[%c0_19, %c0_20, %c0_21] : memref<2x32x96xf32, #tpu.memory_space<vmem>>, vector<1x32x96xf32>
    %22 = vector.shape_cast %21 : vector<1x32x96xf32> to vector<32x96xf32>
    %c1_22 = arith.constant 1 : index
    %c0_23 = arith.constant 0 : index
    %c0_24 = arith.constant 0 : index
    %23 = vector.load %arg3[%c1_22, %c0_23, %c0_24] : memref<2x32x96xf32, #tpu.memory_space<vmem>>, vector<1x32x96xf32>
    %24 = vector.shape_cast %23 : vector<1x32x96xf32> to vector<32x96xf32>
    %c0_25 = arith.constant 0 : index
    %c0_26 = arith.constant 0 : index
    %c0_27 = arith.constant 0 : index
    %25 = vector.load %arg5[%c0_25, %c0_26, %c0_27] : memref<2x1x32xf32, #tpu.memory_space<vmem>>, vector<1x1x32xf32>
    %26 = vector.shape_cast %25 : vector<1x1x32xf32> to vector<1x32xf32>
    %c1_28 = arith.constant 1 : index
    %c0_29 = arith.constant 0 : index
    %c0_30 = arith.constant 0 : index
    %27 = vector.load %arg5[%c1_28, %c0_29, %c0_30] : memref<2x1x32xf32, #tpu.memory_space<vmem>>, vector<1x1x32xf32>
    %28 = vector.shape_cast %27 : vector<1x1x32xf32> to vector<1x32xf32>
    %cst_31 = arith.constant 0.000000e+00 : f32
    %29 = vector.broadcast %cst_31 : f32 to vector<2x32xf32>
    %cst_32 = arith.constant 0.000000e+00 : f32
    %30 = vector.broadcast %cst_32 : f32 to vector<2x32xf32>
    %c0_33 = arith.constant 0 : index
    %c0_34 = arith.constant 0 : index
    %c0_35 = arith.constant 0 : index
    %31 = vector.load %arg15[%c0_33, %c0_34, %c0_35] : memref<2x16x96xf32, #tpu.memory_space<vmem>>, vector<1x2x96xf32>
    %32 = vector.shape_cast %31 : vector<1x2x96xf32> to vector<2x96xf32>
    %c1_36 = arith.constant 1 : index
    %c14 = arith.constant 14 : index
    %c0_37 = arith.constant 0 : index
    %33 = vector.load %arg15[%c1_36, %c14, %c0_37] : memref<2x16x96xf32, #tpu.memory_space<vmem>>, vector<1x2x96xf32>
    %34 = vector.shape_cast %33 : vector<1x2x96xf32> to vector<2x96xf32>
    %cst_38 = arith.constant dense<0.000000e+00> : vector<2x96xf32>
    %35 = tpu.matmul %29, %22, %cst_38 {dimension_numbers = #tpu.dot_dimension_numbers<[1], [0], [0], [1], [0, 0, 1, 1], [], []>} : vector<2x32xf32>, vector<32x96xf32>, vector<2x96xf32> -> vector<2x96xf32>
    %cst_39 = arith.constant dense<0.000000e+00> : vector<2x96xf32>
    %36 = tpu.matmul %30, %24, %cst_39 {dimension_numbers = #tpu.dot_dimension_numbers<[1], [0], [0], [1], [0, 0, 1, 1], [], []>} : vector<2x32xf32>, vector<32x96xf32>, vector<2x96xf32> -> vector<2x96xf32>
    %37 = vector.extract_strided_slice %32 {offsets = [0, 0], sizes = [2, 32], strides = [1, 1]} : vector<2x96xf32> to vector<2x32xf32>
    %38 = vector.extract_strided_slice %35 {offsets = [0, 0], sizes = [2, 32], strides = [1, 1]} : vector<2x96xf32> to vector<2x32xf32>
    %39 = arith.addf %37, %38 : vector<2x32xf32>
    %40 = arith.negf %39 : vector<2x32xf32>
    %41 = math.exp %40 : vector<2x32xf32>
    %cst_40 = arith.constant 1.000000e+00 : f32
    %42 = vector.broadcast %cst_40 : f32 to vector<2x32xf32>
    %43 = arith.addf %42, %41 : vector<2x32xf32>
    %44 = arith.divf %42, %43 : vector<2x32xf32>
    %45 = vector.extract_strided_slice %32 {offsets = [0, 32], sizes = [2, 32], strides = [1, 1]} : vector<2x96xf32> to vector<2x32xf32>
    %46 = vector.extract_strided_slice %35 {offsets = [0, 32], sizes = [2, 32], strides = [1, 1]} : vector<2x96xf32> to vector<2x32xf32>
    %47 = arith.addf %45, %46 : vector<2x32xf32>
    %48 = arith.negf %47 : vector<2x32xf32>
    %49 = math.exp %48 : vector<2x32xf32>
    %cst_41 = arith.constant 1.000000e+00 : f32
    %50 = vector.broadcast %cst_41 : f32 to vector<2x32xf32>
    %51 = arith.addf %50, %49 : vector<2x32xf32>
    %52 = arith.divf %50, %51 : vector<2x32xf32>
    %53 = vector.extract_strided_slice %32 {offsets = [0, 64], sizes = [2, 32], strides = [1, 1]} : vector<2x96xf32> to vector<2x32xf32>
    %54 = vector.extract_strided_slice %35 {offsets = [0, 64], sizes = [2, 32], strides = [1, 1]} : vector<2x96xf32> to vector<2x32xf32>
    %55 = vector.broadcast %26 : vector<1x32xf32> to vector<2x32xf32>
    %56 = arith.addf %54, %55 : vector<2x32xf32>
    %57 = arith.mulf %44, %56 : vector<2x32xf32>
    %58 = arith.addf %53, %57 : vector<2x32xf32>
    %59 = math.tanh %58 : vector<2x32xf32>
    %cst_42 = arith.constant 1.000000e+00 : f32
    %60 = vector.broadcast %cst_42 : f32 to vector<2x32xf32>
    %61 = arith.subf %60, %52 : vector<2x32xf32>
    %62 = arith.mulf %61, %59 : vector<2x32xf32>
    %63 = arith.mulf %52, %29 : vector<2x32xf32>
    %64 = arith.addf %62, %63 : vector<2x32xf32>
    %65 = vector.extract_strided_slice %34 {offsets = [0, 0], sizes = [2, 32], strides = [1, 1]} : vector<2x96xf32> to vector<2x32xf32>
    %66 = vector.extract_strided_slice %36 {offsets = [0, 0], sizes = [2, 32], strides = [1, 1]} : vector<2x96xf32> to vector<2x32xf32>
    %67 = arith.addf %65, %66 : vector<2x32xf32>
    %68 = arith.negf %67 : vector<2x32xf32>
    %69 = math.exp %68 : vector<2x32xf32>
    %cst_43 = arith.constant 1.000000e+00 : f32
    %70 = vector.broadcast %cst_43 : f32 to vector<2x32xf32>
    %71 = arith.addf %70, %69 : vector<2x32xf32>
    %72 = arith.divf %70, %71 : vector<2x32xf32>
    %73 = vector.extract_strided_slice %34 {offsets = [0, 32], sizes = [2, 32], strides = [1, 1]} : vector<2x96xf32> to vector<2x32xf32>
    %74 = vector.extract_strided_slice %36 {offsets = [0, 32], sizes = [2, 32], strides = [1, 1]} : vector<2x96xf32> to vector<2x32xf32>
    %75 = arith.addf %73, %74 : vector<2x32xf32>
    %76 = arith.negf %75 : vector<2x32xf32>
    %77 = math.exp %76 : vector<2x32xf32>
    %cst_44 = arith.constant 1.000000e+00 : f32
    %78 = vector.broadcast %cst_44 : f32 to vector<2x32xf32>
    %79 = arith.addf %78, %77 : vector<2x32xf32>
    %80 = arith.divf %78, %79 : vector<2x32xf32>
    %81 = vector.extract_strided_slice %34 {offsets = [0, 64], sizes = [2, 32], strides = [1, 1]} : vector<2x96xf32> to vector<2x32xf32>
    %82 = vector.extract_strided_slice %36 {offsets = [0, 64], sizes = [2, 32], strides = [1, 1]} : vector<2x96xf32> to vector<2x32xf32>
    %83 = vector.broadcast %28 : vector<1x32xf32> to vector<2x32xf32>
    %84 = arith.addf %82, %83 : vector<2x32xf32>
    %85 = arith.mulf %72, %84 : vector<2x32xf32>
    %86 = arith.addf %81, %85 : vector<2x32xf32>
    %87 = math.tanh %86 : vector<2x32xf32>
    %cst_45 = arith.constant 1.000000e+00 : f32
    %88 = vector.broadcast %cst_45 : f32 to vector<2x32xf32>
    %89 = arith.subf %88, %80 : vector<2x32xf32>
    %90 = arith.mulf %89, %87 : vector<2x32xf32>
    %91 = arith.mulf %80, %30 : vector<2x32xf32>
    %92 = arith.addf %90, %91 : vector<2x32xf32>
    %c0_46 = arith.constant 0 : index
    %c0_47 = arith.constant 0 : index
    %93 = vector.load %arg16[%c0_46, %c0_47] : memref<16x64xf32, #tpu.memory_space<vmem>>, vector<2x32xf32>
    tpu.vector_store %arg16[%c0_46, %c0_47], %64 {strides = array<i32>} : memref<16x64xf32, #tpu.memory_space<vmem>>, vector<2x32xf32>,
    %c14_48 = arith.constant 14 : index
    %c32 = arith.constant 32 : index
    %94 = vector.load %arg16[%c14_48, %c32] : memref<16x64xf32, #tpu.memory_space<vmem>>, vector<2x32xf32>
    tpu.vector_store %arg16[%c14_48, %c32], %92 {strides = array<i32>} : memref<16x64xf32, #tpu.memory_space<vmem>>, vector<2x32xf32>,
    %c0_49 = arith.constant 0 : index
    %c2 = arith.constant 2 : index
    %c0_50 = arith.constant 0 : index
    %95 = vector.load %arg15[%c0_49, %c2, %c0_50] : memref<2x16x96xf32, #tpu.memory_space<vmem>>, vector<1x2x96xf32>
    %96 = vector.shape_cast %95 : vector<1x2x96xf32> to vector<2x96xf32>
    %c1_51 = arith.constant 1 : index
    %c12 = arith.constant 12 : index
    %c0_52 = arith.constant 0 : index
    %97 = vector.load %arg15[%c1_51, %c12, %c0_52] : memref<2x16x96xf32, #tpu.memory_space<vmem>>, vector<1x2x96xf32>
    %98 = vector.shape_cast %97 : vector<1x2x96xf32> to vector<2x96xf32>
    %cst_53 = arith.constant dense<0.000000e+00> : vector<2x96xf32>
    %99 = tpu.matmul %64, %22, %cst_53 {dimension_numbers = #tpu.dot_dimension_numbers<[1], [0], [0], [1], [0, 0, 1, 1], [], []>} : vector<2x32xf32>, vector<32x96xf32>, vector<2x96xf32> -> vector<2x96xf32>
    %cst_54 = arith.constant dense<0.000000e+00> : vector<2x96xf32>
    %100 = tpu.matmul %92, %24, %cst_54 {dimension_numbers = #tpu.dot_dimension_numbers<[1], [0], [0], [1], [0, 0, 1, 1], [], []>} : vector<2x32xf32>, vector<32x96xf32>, vector<2x96xf32> -> vector<2x96xf32>
    %101 = vector.extract_strided_slice %96 {offsets = [0, 0], sizes = [2, 32], strides = [1, 1]} : vector<2x96xf32> to vector<2x32xf32>
    %102 = vector.extract_strided_slice %99 {offsets = [0, 0], sizes = [2, 32], strides = [1, 1]} : vector<2x96xf32> to vector<2x32xf32>
    %103 = arith.addf %101, %102 : vector<2x32xf32>
    %104 = arith.negf %103 : vector<2x32xf32>
    %105 = math.exp %104 : vector<2x32xf32>
    %cst_55 = arith.constant 1.000000e+00 : f32
    %106 = vector.broadcast %cst_55 : f32 to vector<2x32xf32>
    %107 = arith.addf %106, %105 : vector<2x32xf32>
    %108 = arith.divf %106, %107 : vector<2x32xf32>
    %109 = vector.extract_strided_slice %96 {offsets = [0, 32], sizes = [2, 32], strides = [1, 1]} : vector<2x96xf32> to vector<2x32xf32>
    %110 = vector.extract_strided_slice %99 {offsets = [0, 32], sizes = [2, 32], strides = [1, 1]} : vector<2x96xf32> to vector<2x32xf32>
    %111 = arith.addf %109, %110 : vector<2x32xf32>
    %112 = arith.negf %111 : vector<2x32xf32>
    %113 = math.exp %112 : vector<2x32xf32>
    %cst_56 = arith.constant 1.000000e+00 : f32
    %114 = vector.broadcast %cst_56 : f32 to vector<2x32xf32>
    %115 = arith.addf %114, %113 : vector<2x32xf32>
    %116 = arith.divf %114, %115 : vector<2x32xf32>
    %117 = vector.extract_strided_slice %96 {offsets = [0, 64], sizes = [2, 32], strides = [1, 1]} : vector<2x96xf32> to vector<2x32xf32>
    %118 = vector.extract_strided_slice %99 {offsets = [0, 64], sizes = [2, 32], strides = [1, 1]} : vector<2x96xf32> to vector<2x32xf32>
    %119 = vector.broadcast %26 : vector<1x32xf32> to vector<2x32xf32>
    %120 = arith.addf %118, %119 : vector<2x32xf32>
    %121 = arith.mulf %108, %120 : vector<2x32xf32>
    %122 = arith.addf %117, %121 : vector<2x32xf32>
    %123 = math.tanh %122 : vector<2x32xf32>
    %cst_57 = arith.constant 1.000000e+00 : f32
    %124 = vector.broadcast %cst_57 : f32 to vector<2x32xf32>
    %125 = arith.subf %124, %116 : vector<2x32xf32>
    %126 = arith.mulf %125, %123 : vector<2x32xf32>
    %127 = arith.mulf %116, %64 : vector<2x32xf32>
    %128 = arith.addf %126, %127 : vector<2x32xf32>
    %129 = vector.extract_strided_slice %98 {offsets = [0, 0], sizes = [2, 32], strides = [1, 1]} : vector<2x96xf32> to vector<2x32xf32>
    %130 = vector.extract_strided_slice %100 {offsets = [0, 0], sizes = [2, 32], strides = [1, 1]} : vector<2x96xf32> to vector<2x32xf32>
    %131 = arith.addf %129, %130 : vector<2x32xf32>
    %132 = arith.negf %131 : vector<2x32xf32>
    %133 = math.exp %132 : vector<2x32xf32>
    %cst_58 = arith.constant 1.000000e+00 : f32
    %134 = vector.broadcast %cst_58 : f32 to vector<2x32xf32>
    %135 = arith.addf %134, %133 : vector<2x32xf32>
    %136 = arith.divf %134, %135 : vector<2x32xf32>
    %137 = vector.extract_strided_slice %98 {offsets = [0, 32], sizes = [2, 32], strides = [1, 1]} : vector<2x96xf32> to vector<2x32xf32>
    %138 = vector.extract_strided_slice %100 {offsets = [0, 32], sizes = [2, 32], strides = [1, 1]} : vector<2x96xf32> to vector<2x32xf32>
    %139 = arith.addf %137, %138 : vector<2x32xf32>
    %140 = arith.negf %139 : vector<2x32xf32>
    %141 = math.exp %140 : vector<2x32xf32>
    %cst_59 = arith.constant 1.000000e+00 : f32
    %142 = vector.broadcast %cst_59 : f32 to vector<2x32xf32>
    %143 = arith.addf %142, %141 : vector<2x32xf32>
    %144 = arith.divf %142, %143 : vector<2x32xf32>
    %145 = vector.extract_strided_slice %98 {offsets = [0, 64], sizes = [2, 32], strides = [1, 1]} : vector<2x96xf32> to vector<2x32xf32>
    %146 = vector.extract_strided_slice %100 {offsets = [0, 64], sizes = [2, 32], strides = [1, 1]} : vector<2x96xf32> to vector<2x32xf32>
    %147 = vector.broadcast %28 : vector<1x32xf32> to vector<2x32xf32>
    %148 = arith.addf %146, %147 : vector<2x32xf32>
    %149 = arith.mulf %136, %148 : vector<2x32xf32>
    %150 = arith.addf %145, %149 : vector<2x32xf32>
    %151 = math.tanh %150 : vector<2x32xf32>
    %cst_60 = arith.constant 1.000000e+00 : f32
    %152 = vector.broadcast %cst_60 : f32 to vector<2x32xf32>
    %153 = arith.subf %152, %144 : vector<2x32xf32>
    %154 = arith.mulf %153, %151 : vector<2x32xf32>
    %155 = arith.mulf %144, %92 : vector<2x32xf32>
    %156 = arith.addf %154, %155 : vector<2x32xf32>
    %c2_61 = arith.constant 2 : index
    %c0_62 = arith.constant 0 : index
    %157 = vector.load %arg16[%c2_61, %c0_62] : memref<16x64xf32, #tpu.memory_space<vmem>>, vector<2x32xf32>
    tpu.vector_store %arg16[%c2_61, %c0_62], %128 {strides = array<i32>} : memref<16x64xf32, #tpu.memory_space<vmem>>, vector<2x32xf32>,
    %c12_63 = arith.constant 12 : index
    %c32_64 = arith.constant 32 : index
    %158 = vector.load %arg16[%c12_63, %c32_64] : memref<16x64xf32, #tpu.memory_space<vmem>>, vector<2x32xf32>
    tpu.vector_store %arg16[%c12_63, %c32_64], %156 {strides = array<i32>} : memref<16x64xf32, #tpu.memory_space<vmem>>, vector<2x32xf32>,
    %c0_65 = arith.constant 0 : index
    %c4 = arith.constant 4 : index
    %c0_66 = arith.constant 0 : index
    %159 = vector.load %arg15[%c0_65, %c4, %c0_66] : memref<2x16x96xf32, #tpu.memory_space<vmem>>, vector<1x2x96xf32>
    %160 = vector.shape_cast %159 : vector<1x2x96xf32> to vector<2x96xf32>
    %c1_67 = arith.constant 1 : index
    %c10 = arith.constant 10 : index
    %c0_68 = arith.constant 0 : index
    %161 = vector.load %arg15[%c1_67, %c10, %c0_68] : memref<2x16x96xf32, #tpu.memory_space<vmem>>, vector<1x2x96xf32>
    %162 = vector.shape_cast %161 : vector<1x2x96xf32> to vector<2x96xf32>
    %cst_69 = arith.constant dense<0.000000e+00> : vector<2x96xf32>
    %163 = tpu.matmul %128, %22, %cst_69 {dimension_numbers = #tpu.dot_dimension_numbers<[1], [0], [0], [1], [0, 0, 1, 1], [], []>} : vector<2x32xf32>, vector<32x96xf32>, vector<2x96xf32> -> vector<2x96xf32>
    %cst_70 = arith.constant dense<0.000000e+00> : vector<2x96xf32>
    %164 = tpu.matmul %156, %24, %cst_70 {dimension_numbers = #tpu.dot_dimension_numbers<[1], [0], [0], [1], [0, 0, 1, 1], [], []>} : vector<2x32xf32>, vector<32x96xf32>, vector<2x96xf32> -> vector<2x96xf32>
    %165 = vector.extract_strided_slice %160 {offsets = [0, 0], sizes = [2, 32], strides = [1, 1]} : vector<2x96xf32> to vector<2x32xf32>
    %166 = vector.extract_strided_slice %163 {offsets = [0, 0], sizes = [2, 32], strides = [1, 1]} : vector<2x96xf32> to vector<2x32xf32>
    %167 = arith.addf %165, %166 : vector<2x32xf32>
    %168 = arith.negf %167 : vector<2x32xf32>
    %169 = math.exp %168 : vector<2x32xf32>
    %cst_71 = arith.constant 1.000000e+00 : f32
    %170 = vector.broadcast %cst_71 : f32 to vector<2x32xf32>
    %171 = arith.addf %170, %169 : vector<2x32xf32>
    %172 = arith.divf %170, %171 : vector<2x32xf32>
    %173 = vector.extract_strided_slice %160 {offsets = [0, 32], sizes = [2, 32], strides = [1, 1]} : vector<2x96xf32> to vector<2x32xf32>
    %174 = vector.extract_strided_slice %163 {offsets = [0, 32], sizes = [2, 32], strides = [1, 1]} : vector<2x96xf32> to vector<2x32xf32>
    %175 = arith.addf %173, %174 : vector<2x32xf32>
    %176 = arith.negf %175 : vector<2x32xf32>
    %177 = math.exp %176 : vector<2x32xf32>
    %cst_72 = arith.constant 1.000000e+00 : f32
    %178 = vector.broadcast %cst_72 : f32 to vector<2x32xf32>
    %179 = arith.addf %178, %177 : vector<2x32xf32>
    %180 = arith.divf %178, %179 : vector<2x32xf32>
    %181 = vector.extract_strided_slice %160 {offsets = [0, 64], sizes = [2, 32], strides = [1, 1]} : vector<2x96xf32> to vector<2x32xf32>
    %182 = vector.extract_strided_slice %163 {offsets = [0, 64], sizes = [2, 32], strides = [1, 1]} : vector<2x96xf32> to vector<2x32xf32>
    %183 = vector.broadcast %26 : vector<1x32xf32> to vector<2x32xf32>
    %184 = arith.addf %182, %183 : vector<2x32xf32>
    %185 = arith.mulf %172, %184 : vector<2x32xf32>
    %186 = arith.addf %181, %185 : vector<2x32xf32>
    %187 = math.tanh %186 : vector<2x32xf32>
    %cst_73 = arith.constant 1.000000e+00 : f32
    %188 = vector.broadcast %cst_73 : f32 to vector<2x32xf32>
    %189 = arith.subf %188, %180 : vector<2x32xf32>
    %190 = arith.mulf %189, %187 : vector<2x32xf32>
    %191 = arith.mulf %180, %128 : vector<2x32xf32>
    %192 = arith.addf %190, %191 : vector<2x32xf32>
    %193 = vector.extract_strided_slice %162 {offsets = [0, 0], sizes = [2, 32], strides = [1, 1]} : vector<2x96xf32> to vector<2x32xf32>
    %194 = vector.extract_strided_slice %164 {offsets = [0, 0], sizes = [2, 32], strides = [1, 1]} : vector<2x96xf32> to vector<2x32xf32>
    %195 = arith.addf %193, %194 : vector<2x32xf32>
    %196 = arith.negf %195 : vector<2x32xf32>
    %197 = math.exp %196 : vector<2x32xf32>
    %cst_74 = arith.constant 1.000000e+00 : f32
    %198 = vector.broadcast %cst_74 : f32 to vector<2x32xf32>
    %199 = arith.addf %198, %197 : vector<2x32xf32>
    %200 = arith.divf %198, %199 : vector<2x32xf32>
    %201 = vector.extract_strided_slice %162 {offsets = [0, 32], sizes = [2, 32], strides = [1, 1]} : vector<2x96xf32> to vector<2x32xf32>
    %202 = vector.extract_strided_slice %164 {offsets = [0, 32], sizes = [2, 32], strides = [1, 1]} : vector<2x96xf32> to vector<2x32xf32>
    %203 = arith.addf %201, %202 : vector<2x32xf32>
    %204 = arith.negf %203 : vector<2x32xf32>
    %205 = math.exp %204 : vector<2x32xf32>
    %cst_75 = arith.constant 1.000000e+00 : f32
    %206 = vector.broadcast %cst_75 : f32 to vector<2x32xf32>
    %207 = arith.addf %206, %205 : vector<2x32xf32>
    %208 = arith.divf %206, %207 : vector<2x32xf32>
    %209 = vector.extract_strided_slice %162 {offsets = [0, 64], sizes = [2, 32], strides = [1, 1]} : vector<2x96xf32> to vector<2x32xf32>
    %210 = vector.extract_strided_slice %164 {offsets = [0, 64], sizes = [2, 32], strides = [1, 1]} : vector<2x96xf32> to vector<2x32xf32>
    %211 = vector.broadcast %28 : vector<1x32xf32> to vector<2x32xf32>
    %212 = arith.addf %210, %211 : vector<2x32xf32>
    %213 = arith.mulf %200, %212 : vector<2x32xf32>
    %214 = arith.addf %209, %213 : vector<2x32xf32>
    %215 = math.tanh %214 : vector<2x32xf32>
    %cst_76 = arith.constant 1.000000e+00 : f32
    %216 = vector.broadcast %cst_76 : f32 to vector<2x32xf32>
    %217 = arith.subf %216, %208 : vector<2x32xf32>
    %218 = arith.mulf %217, %215 : vector<2x32xf32>
    %219 = arith.mulf %208, %156 : vector<2x32xf32>
    %220 = arith.addf %218, %219 : vector<2x32xf32>
    %c4_77 = arith.constant 4 : index
    %c0_78 = arith.constant 0 : index
    %221 = vector.load %arg16[%c4_77, %c0_78] : memref<16x64xf32, #tpu.memory_space<vmem>>, vector<2x32xf32>
    tpu.vector_store %arg16[%c4_77, %c0_78], %192 {strides = array<i32>} : memref<16x64xf32, #tpu.memory_space<vmem>>, vector<2x32xf32>,
    %c10_79 = arith.constant 10 : index
    %c32_80 = arith.constant 32 : index
    %222 = vector.load %arg16[%c10_79, %c32_80] : memref<16x64xf32, #tpu.memory_space<vmem>>, vector<2x32xf32>
    tpu.vector_store %arg16[%c10_79, %c32_80], %220 {strides = array<i32>} : memref<16x64xf32, #tpu.memory_space<vmem>>, vector<2x32xf32>,
    %c0_81 = arith.constant 0 : index
    %c6 = arith.constant 6 : index
    %c0_82 = arith.constant 0 : index
    %223 = vector.load %arg15[%c0_81, %c6, %c0_82] : memref<2x16x96xf32, #tpu.memory_space<vmem>>, vector<1x2x96xf32>
    %224 = vector.shape_cast %223 : vector<1x2x96xf32> to vector<2x96xf32>
    %c1_83 = arith.constant 1 : index
    %c8 = arith.constant 8 : index
    %c0_84 = arith.constant 0 : index
    %225 = vector.load %arg15[%c1_83, %c8, %c0_84] : memref<2x16x96xf32, #tpu.memory_space<vmem>>, vector<1x2x96xf32>
    %226 = vector.shape_cast %225 : vector<1x2x96xf32> to vector<2x96xf32>
    %cst_85 = arith.constant dense<0.000000e+00> : vector<2x96xf32>
    %227 = tpu.matmul %192, %22, %cst_85 {dimension_numbers = #tpu.dot_dimension_numbers<[1], [0], [0], [1], [0, 0, 1, 1], [], []>} : vector<2x32xf32>, vector<32x96xf32>, vector<2x96xf32> -> vector<2x96xf32>
    %cst_86 = arith.constant dense<0.000000e+00> : vector<2x96xf32>
    %228 = tpu.matmul %220, %24, %cst_86 {dimension_numbers = #tpu.dot_dimension_numbers<[1], [0], [0], [1], [0, 0, 1, 1], [], []>} : vector<2x32xf32>, vector<32x96xf32>, vector<2x96xf32> -> vector<2x96xf32>
    %229 = vector.extract_strided_slice %224 {offsets = [0, 0], sizes = [2, 32], strides = [1, 1]} : vector<2x96xf32> to vector<2x32xf32>
    %230 = vector.extract_strided_slice %227 {offsets = [0, 0], sizes = [2, 32], strides = [1, 1]} : vector<2x96xf32> to vector<2x32xf32>
    %231 = arith.addf %229, %230 : vector<2x32xf32>
    %232 = arith.negf %231 : vector<2x32xf32>
    %233 = math.exp %232 : vector<2x32xf32>
    %cst_87 = arith.constant 1.000000e+00 : f32
    %234 = vector.broadcast %cst_87 : f32 to vector<2x32xf32>
    %235 = arith.addf %234, %233 : vector<2x32xf32>
    %236 = arith.divf %234, %235 : vector<2x32xf32>
    %237 = vector.extract_strided_slice %224 {offsets = [0, 32], sizes = [2, 32], strides = [1, 1]} : vector<2x96xf32> to vector<2x32xf32>
    %238 = vector.extract_strided_slice %227 {offsets = [0, 32], sizes = [2, 32], strides = [1, 1]} : vector<2x96xf32> to vector<2x32xf32>
    %239 = arith.addf %237, %238 : vector<2x32xf32>
    %240 = arith.negf %239 : vector<2x32xf32>
    %241 = math.exp %240 : vector<2x32xf32>
    %cst_88 = arith.constant 1.000000e+00 : f32
    %242 = vector.broadcast %cst_88 : f32 to vector<2x32xf32>
    %243 = arith.addf %242, %241 : vector<2x32xf32>
    %244 = arith.divf %242, %243 : vector<2x32xf32>
    %245 = vector.extract_strided_slice %224 {offsets = [0, 64], sizes = [2, 32], strides = [1, 1]} : vector<2x96xf32> to vector<2x32xf32>
    %246 = vector.extract_strided_slice %227 {offsets = [0, 64], sizes = [2, 32], strides = [1, 1]} : vector<2x96xf32> to vector<2x32xf32>
    %247 = vector.broadcast %26 : vector<1x32xf32> to vector<2x32xf32>
    %248 = arith.addf %246, %247 : vector<2x32xf32>
    %249 = arith.mulf %236, %248 : vector<2x32xf32>
    %250 = arith.addf %245, %249 : vector<2x32xf32>
    %251 = math.tanh %250 : vector<2x32xf32>
    %cst_89 = arith.constant 1.000000e+00 : f32
    %252 = vector.broadcast %cst_89 : f32 to vector<2x32xf32>
    %253 = arith.subf %252, %244 : vector<2x32xf32>
    %254 = arith.mulf %253, %251 : vector<2x32xf32>
    %255 = arith.mulf %244, %192 : vector<2x32xf32>
    %256 = arith.addf %254, %255 : vector<2x32xf32>
    %257 = vector.extract_strided_slice %226 {offsets = [0, 0], sizes = [2, 32], strides = [1, 1]} : vector<2x96xf32> to vector<2x32xf32>
    %258 = vector.extract_strided_slice %228 {offsets = [0, 0], sizes = [2, 32], strides = [1, 1]} : vector<2x96xf32> to vector<2x32xf32>
    %259 = arith.addf %257, %258 : vector<2x32xf32>
    %260 = arith.negf %259 : vector<2x32xf32>
    %261 = math.exp %260 : vector<2x32xf32>
    %cst_90 = arith.constant 1.000000e+00 : f32
    %262 = vector.broadcast %cst_90 : f32 to vector<2x32xf32>
    %263 = arith.addf %262, %261 : vector<2x32xf32>
    %264 = arith.divf %262, %263 : vector<2x32xf32>
    %265 = vector.extract_strided_slice %226 {offsets = [0, 32], sizes = [2, 32], strides = [1, 1]} : vector<2x96xf32> to vector<2x32xf32>
    %266 = vector.extract_strided_slice %228 {offsets = [0, 32], sizes = [2, 32], strides = [1, 1]} : vector<2x96xf32> to vector<2x32xf32>
    %267 = arith.addf %265, %266 : vector<2x32xf32>
    %268 = arith.negf %267 : vector<2x32xf32>
    %269 = math.exp %268 : vector<2x32xf32>
    %cst_91 = arith.constant 1.000000e+00 : f32
    %270 = vector.broadcast %cst_91 : f32 to vector<2x32xf32>
    %271 = arith.addf %270, %269 : vector<2x32xf32>
    %272 = arith.divf %270, %271 : vector<2x32xf32>
    %273 = vector.extract_strided_slice %226 {offsets = [0, 64], sizes = [2, 32], strides = [1, 1]} : vector<2x96xf32> to vector<2x32xf32>
    %274 = vector.extract_strided_slice %228 {offsets = [0, 64], sizes = [2, 32], strides = [1, 1]} : vector<2x96xf32> to vector<2x32xf32>
    %275 = vector.broadcast %28 : vector<1x32xf32> to vector<2x32xf32>
    %276 = arith.addf %274, %275 : vector<2x32xf32>
    %277 = arith.mulf %264, %276 : vector<2x32xf32>
    %278 = arith.addf %273, %277 : vector<2x32xf32>
    %279 = math.tanh %278 : vector<2x32xf32>
    %cst_92 = arith.constant 1.000000e+00 : f32
    %280 = vector.broadcast %cst_92 : f32 to vector<2x32xf32>
    %281 = arith.subf %280, %272 : vector<2x32xf32>
    %282 = arith.mulf %281, %279 : vector<2x32xf32>
    %283 = arith.mulf %272, %220 : vector<2x32xf32>
    %284 = arith.addf %282, %283 : vector<2x32xf32>
    %c6_93 = arith.constant 6 : index
    %c0_94 = arith.constant 0 : index
    %285 = vector.load %arg16[%c6_93, %c0_94] : memref<16x64xf32, #tpu.memory_space<vmem>>, vector<2x32xf32>
    tpu.vector_store %arg16[%c6_93, %c0_94], %256 {strides = array<i32>} : memref<16x64xf32, #tpu.memory_space<vmem>>, vector<2x32xf32>,
    %c8_95 = arith.constant 8 : index
    %c32_96 = arith.constant 32 : index
    %286 = vector.load %arg16[%c8_95, %c32_96] : memref<16x64xf32, #tpu.memory_space<vmem>>, vector<2x32xf32>
    tpu.vector_store %arg16[%c8_95, %c32_96], %284 {strides = array<i32>} : memref<16x64xf32, #tpu.memory_space<vmem>>, vector<2x32xf32>,
    %c0_97 = arith.constant 0 : index
    %c8_98 = arith.constant 8 : index
    %c0_99 = arith.constant 0 : index
    %287 = vector.load %arg15[%c0_97, %c8_98, %c0_99] : memref<2x16x96xf32, #tpu.memory_space<vmem>>, vector<1x2x96xf32>
    %288 = vector.shape_cast %287 : vector<1x2x96xf32> to vector<2x96xf32>
    %c1_100 = arith.constant 1 : index
    %c6_101 = arith.constant 6 : index
    %c0_102 = arith.constant 0 : index
    %289 = vector.load %arg15[%c1_100, %c6_101, %c0_102] : memref<2x16x96xf32, #tpu.memory_space<vmem>>, vector<1x2x96xf32>
    %290 = vector.shape_cast %289 : vector<1x2x96xf32> to vector<2x96xf32>
    %cst_103 = arith.constant dense<0.000000e+00> : vector<2x96xf32>
    %291 = tpu.matmul %256, %22, %cst_103 {dimension_numbers = #tpu.dot_dimension_numbers<[1], [0], [0], [1], [0, 0, 1, 1], [], []>} : vector<2x32xf32>, vector<32x96xf32>, vector<2x96xf32> -> vector<2x96xf32>
    %cst_104 = arith.constant dense<0.000000e+00> : vector<2x96xf32>
    %292 = tpu.matmul %284, %24, %cst_104 {dimension_numbers = #tpu.dot_dimension_numbers<[1], [0], [0], [1], [0, 0, 1, 1], [], []>} : vector<2x32xf32>, vector<32x96xf32>, vector<2x96xf32> -> vector<2x96xf32>
    %293 = vector.extract_strided_slice %288 {offsets = [0, 0], sizes = [2, 32], strides = [1, 1]} : vector<2x96xf32> to vector<2x32xf32>
    %294 = vector.extract_strided_slice %291 {offsets = [0, 0], sizes = [2, 32], strides = [1, 1]} : vector<2x96xf32> to vector<2x32xf32>
    %295 = arith.addf %293, %294 : vector<2x32xf32>
    %296 = arith.negf %295 : vector<2x32xf32>
    %297 = math.exp %296 : vector<2x32xf32>
    %cst_105 = arith.constant 1.000000e+00 : f32
    %298 = vector.broadcast %cst_105 : f32 to vector<2x32xf32>
    %299 = arith.addf %298, %297 : vector<2x32xf32>
    %300 = arith.divf %298, %299 : vector<2x32xf32>
    %301 = vector.extract_strided_slice %288 {offsets = [0, 32], sizes = [2, 32], strides = [1, 1]} : vector<2x96xf32> to vector<2x32xf32>
    %302 = vector.extract_strided_slice %291 {offsets = [0, 32], sizes = [2, 32], strides = [1, 1]} : vector<2x96xf32> to vector<2x32xf32>
    %303 = arith.addf %301, %302 : vector<2x32xf32>
    %304 = arith.negf %303 : vector<2x32xf32>
    %305 = math.exp %304 : vector<2x32xf32>
    %cst_106 = arith.constant 1.000000e+00 : f32
    %306 = vector.broadcast %cst_106 : f32 to vector<2x32xf32>
    %307 = arith.addf %306, %305 : vector<2x32xf32>
    %308 = arith.divf %306, %307 : vector<2x32xf32>
    %309 = vector.extract_strided_slice %288 {offsets = [0, 64], sizes = [2, 32], strides = [1, 1]} : vector<2x96xf32> to vector<2x32xf32>
    %310 = vector.extract_strided_slice %291 {offsets = [0, 64], sizes = [2, 32], strides = [1, 1]} : vector<2x96xf32> to vector<2x32xf32>
    %311 = vector.broadcast %26 : vector<1x32xf32> to vector<2x32xf32>
    %312 = arith.addf %310, %311 : vector<2x32xf32>
    %313 = arith.mulf %300, %312 : vector<2x32xf32>
    %314 = arith.addf %309, %313 : vector<2x32xf32>
    %315 = math.tanh %314 : vector<2x32xf32>
    %cst_107 = arith.constant 1.000000e+00 : f32
    %316 = vector.broadcast %cst_107 : f32 to vector<2x32xf32>
    %317 = arith.subf %316, %308 : vector<2x32xf32>
    %318 = arith.mulf %317, %315 : vector<2x32xf32>
    %319 = arith.mulf %308, %256 : vector<2x32xf32>
    %320 = arith.addf %318, %319 : vector<2x32xf32>
    %321 = vector.extract_strided_slice %290 {offsets = [0, 0], sizes = [2, 32], strides = [1, 1]} : vector<2x96xf32> to vector<2x32xf32>
    %322 = vector.extract_strided_slice %292 {offsets = [0, 0], sizes = [2, 32], strides = [1, 1]} : vector<2x96xf32> to vector<2x32xf32>
    %323 = arith.addf %321, %322 : vector<2x32xf32>
    %324 = arith.negf %323 : vector<2x32xf32>
    %325 = math.exp %324 : vector<2x32xf32>
    %cst_108 = arith.constant 1.000000e+00 : f32
    %326 = vector.broadcast %cst_108 : f32 to vector<2x32xf32>
    %327 = arith.addf %326, %325 : vector<2x32xf32>
    %328 = arith.divf %326, %327 : vector<2x32xf32>
    %329 = vector.extract_strided_slice %290 {offsets = [0, 32], sizes = [2, 32], strides = [1, 1]} : vector<2x96xf32> to vector<2x32xf32>
    %330 = vector.extract_strided_slice %292 {offsets = [0, 32], sizes = [2, 32], strides = [1, 1]} : vector<2x96xf32> to vector<2x32xf32>
    %331 = arith.addf %329, %330 : vector<2x32xf32>
    %332 = arith.negf %331 : vector<2x32xf32>
    %333 = math.exp %332 : vector<2x32xf32>
    %cst_109 = arith.constant 1.000000e+00 : f32
    %334 = vector.broadcast %cst_109 : f32 to vector<2x32xf32>
    %335 = arith.addf %334, %333 : vector<2x32xf32>
    %336 = arith.divf %334, %335 : vector<2x32xf32>
    %337 = vector.extract_strided_slice %290 {offsets = [0, 64], sizes = [2, 32], strides = [1, 1]} : vector<2x96xf32> to vector<2x32xf32>
    %338 = vector.extract_strided_slice %292 {offsets = [0, 64], sizes = [2, 32], strides = [1, 1]} : vector<2x96xf32> to vector<2x32xf32>
    %339 = vector.broadcast %28 : vector<1x32xf32> to vector<2x32xf32>
    %340 = arith.addf %338, %339 : vector<2x32xf32>
    %341 = arith.mulf %328, %340 : vector<2x32xf32>
    %342 = arith.addf %337, %341 : vector<2x32xf32>
    %343 = math.tanh %342 : vector<2x32xf32>
    %cst_110 = arith.constant 1.000000e+00 : f32
    %344 = vector.broadcast %cst_110 : f32 to vector<2x32xf32>
    %345 = arith.subf %344, %336 : vector<2x32xf32>
    %346 = arith.mulf %345, %343 : vector<2x32xf32>
    %347 = arith.mulf %336, %284 : vector<2x32xf32>
    %348 = arith.addf %346, %347 : vector<2x32xf32>
    %c8_111 = arith.constant 8 : index
    %c0_112 = arith.constant 0 : index
    %349 = vector.load %arg16[%c8_111, %c0_112] : memref<16x64xf32, #tpu.memory_space<vmem>>, vector<2x32xf32>
    tpu.vector_store %arg16[%c8_111, %c0_112], %320 {strides = array<i32>} : memref<16x64xf32, #tpu.memory_space<vmem>>, vector<2x32xf32>,
    %c6_113 = arith.constant 6 : index
    %c32_114 = arith.constant 32 : index
    %350 = vector.load %arg16[%c6_113, %c32_114] : memref<16x64xf32, #tpu.memory_space<vmem>>, vector<2x32xf32>
    tpu.vector_store %arg16[%c6_113, %c32_114], %348 {strides = array<i32>} : memref<16x64xf32, #tpu.memory_space<vmem>>, vector<2x32xf32>,
    %c0_115 = arith.constant 0 : index
    %c10_116 = arith.constant 10 : index
    %c0_117 = arith.constant 0 : index
    %351 = vector.load %arg15[%c0_115, %c10_116, %c0_117] : memref<2x16x96xf32, #tpu.memory_space<vmem>>, vector<1x2x96xf32>
    %352 = vector.shape_cast %351 : vector<1x2x96xf32> to vector<2x96xf32>
    %c1_118 = arith.constant 1 : index
    %c4_119 = arith.constant 4 : index
    %c0_120 = arith.constant 0 : index
    %353 = vector.load %arg15[%c1_118, %c4_119, %c0_120] : memref<2x16x96xf32, #tpu.memory_space<vmem>>, vector<1x2x96xf32>
    %354 = vector.shape_cast %353 : vector<1x2x96xf32> to vector<2x96xf32>
    %cst_121 = arith.constant dense<0.000000e+00> : vector<2x96xf32>
    %355 = tpu.matmul %320, %22, %cst_121 {dimension_numbers = #tpu.dot_dimension_numbers<[1], [0], [0], [1], [0, 0, 1, 1], [], []>} : vector<2x32xf32>, vector<32x96xf32>, vector<2x96xf32> -> vector<2x96xf32>
    %cst_122 = arith.constant dense<0.000000e+00> : vector<2x96xf32>
    %356 = tpu.matmul %348, %24, %cst_122 {dimension_numbers = #tpu.dot_dimension_numbers<[1], [0], [0], [1], [0, 0, 1, 1], [], []>} : vector<2x32xf32>, vector<32x96xf32>, vector<2x96xf32> -> vector<2x96xf32>
    %357 = vector.extract_strided_slice %352 {offsets = [0, 0], sizes = [2, 32], strides = [1, 1]} : vector<2x96xf32> to vector<2x32xf32>
    %358 = vector.extract_strided_slice %355 {offsets = [0, 0], sizes = [2, 32], strides = [1, 1]} : vector<2x96xf32> to vector<2x32xf32>
    %359 = arith.addf %357, %358 : vector<2x32xf32>
    %360 = arith.negf %359 : vector<2x32xf32>
    %361 = math.exp %360 : vector<2x32xf32>
    %cst_123 = arith.constant 1.000000e+00 : f32
    %362 = vector.broadcast %cst_123 : f32 to vector<2x32xf32>
    %363 = arith.addf %362, %361 : vector<2x32xf32>
    %364 = arith.divf %362, %363 : vector<2x32xf32>
    %365 = vector.extract_strided_slice %352 {offsets = [0, 32], sizes = [2, 32], strides = [1, 1]} : vector<2x96xf32> to vector<2x32xf32>
    %366 = vector.extract_strided_slice %355 {offsets = [0, 32], sizes = [2, 32], strides = [1, 1]} : vector<2x96xf32> to vector<2x32xf32>
    %367 = arith.addf %365, %366 : vector<2x32xf32>
    %368 = arith.negf %367 : vector<2x32xf32>
    %369 = math.exp %368 : vector<2x32xf32>
    %cst_124 = arith.constant 1.000000e+00 : f32
    %370 = vector.broadcast %cst_124 : f32 to vector<2x32xf32>
    %371 = arith.addf %370, %369 : vector<2x32xf32>
    %372 = arith.divf %370, %371 : vector<2x32xf32>
    %373 = vector.extract_strided_slice %352 {offsets = [0, 64], sizes = [2, 32], strides = [1, 1]} : vector<2x96xf32> to vector<2x32xf32>
    %374 = vector.extract_strided_slice %355 {offsets = [0, 64], sizes = [2, 32], strides = [1, 1]} : vector<2x96xf32> to vector<2x32xf32>
    %375 = vector.broadcast %26 : vector<1x32xf32> to vector<2x32xf32>
    %376 = arith.addf %374, %375 : vector<2x32xf32>
    %377 = arith.mulf %364, %376 : vector<2x32xf32>
    %378 = arith.addf %373, %377 : vector<2x32xf32>
    %379 = math.tanh %378 : vector<2x32xf32>
    %cst_125 = arith.constant 1.000000e+00 : f32
    %380 = vector.broadcast %cst_125 : f32 to vector<2x32xf32>
    %381 = arith.subf %380, %372 : vector<2x32xf32>
    %382 = arith.mulf %381, %379 : vector<2x32xf32>
    %383 = arith.mulf %372, %320 : vector<2x32xf32>
    %384 = arith.addf %382, %383 : vector<2x32xf32>
    %385 = vector.extract_strided_slice %354 {offsets = [0, 0], sizes = [2, 32], strides = [1, 1]} : vector<2x96xf32> to vector<2x32xf32>
    %386 = vector.extract_strided_slice %356 {offsets = [0, 0], sizes = [2, 32], strides = [1, 1]} : vector<2x96xf32> to vector<2x32xf32>
    %387 = arith.addf %385, %386 : vector<2x32xf32>
    %388 = arith.negf %387 : vector<2x32xf32>
    %389 = math.exp %388 : vector<2x32xf32>
    %cst_126 = arith.constant 1.000000e+00 : f32
    %390 = vector.broadcast %cst_126 : f32 to vector<2x32xf32>
    %391 = arith.addf %390, %389 : vector<2x32xf32>
    %392 = arith.divf %390, %391 : vector<2x32xf32>
    %393 = vector.extract_strided_slice %354 {offsets = [0, 32], sizes = [2, 32], strides = [1, 1]} : vector<2x96xf32> to vector<2x32xf32>
    %394 = vector.extract_strided_slice %356 {offsets = [0, 32], sizes = [2, 32], strides = [1, 1]} : vector<2x96xf32> to vector<2x32xf32>
    %395 = arith.addf %393, %394 : vector<2x32xf32>
    %396 = arith.negf %395 : vector<2x32xf32>
    %397 = math.exp %396 : vector<2x32xf32>
    %cst_127 = arith.constant 1.000000e+00 : f32
    %398 = vector.broadcast %cst_127 : f32 to vector<2x32xf32>
    %399 = arith.addf %398, %397 : vector<2x32xf32>
    %400 = arith.divf %398, %399 : vector<2x32xf32>
    %401 = vector.extract_strided_slice %354 {offsets = [0, 64], sizes = [2, 32], strides = [1, 1]} : vector<2x96xf32> to vector<2x32xf32>
    %402 = vector.extract_strided_slice %356 {offsets = [0, 64], sizes = [2, 32], strides = [1, 1]} : vector<2x96xf32> to vector<2x32xf32>
    %403 = vector.broadcast %28 : vector<1x32xf32> to vector<2x32xf32>
    %404 = arith.addf %402, %403 : vector<2x32xf32>
    %405 = arith.mulf %392, %404 : vector<2x32xf32>
    %406 = arith.addf %401, %405 : vector<2x32xf32>
    %407 = math.tanh %406 : vector<2x32xf32>
    %cst_128 = arith.constant 1.000000e+00 : f32
    %408 = vector.broadcast %cst_128 : f32 to vector<2x32xf32>
    %409 = arith.subf %408, %400 : vector<2x32xf32>
    %410 = arith.mulf %409, %407 : vector<2x32xf32>
    %411 = arith.mulf %400, %348 : vector<2x32xf32>
    %412 = arith.addf %410, %411 : vector<2x32xf32>
    %c10_129 = arith.constant 10 : index
    %c0_130 = arith.constant 0 : index
    %413 = vector.load %arg16[%c10_129, %c0_130] : memref<16x64xf32, #tpu.memory_space<vmem>>, vector<2x32xf32>
    tpu.vector_store %arg16[%c10_129, %c0_130], %384 {strides = array<i32>} : memref<16x64xf32, #tpu.memory_space<vmem>>, vector<2x32xf32>,
    %c4_131 = arith.constant 4 : index
    %c32_132 = arith.constant 32 : index
    %414 = vector.load %arg16[%c4_131, %c32_132] : memref<16x64xf32, #tpu.memory_space<vmem>>, vector<2x32xf32>
    tpu.vector_store %arg16[%c4_131, %c32_132], %412 {strides = array<i32>} : memref<16x64xf32, #tpu.memory_space<vmem>>, vector<2x32xf32>,
    %c0_133 = arith.constant 0 : index
    %c12_134 = arith.constant 12 : index
    %c0_135 = arith.constant 0 : index
    %415 = vector.load %arg15[%c0_133, %c12_134, %c0_135] : memref<2x16x96xf32, #tpu.memory_space<vmem>>, vector<1x2x96xf32>
    %416 = vector.shape_cast %415 : vector<1x2x96xf32> to vector<2x96xf32>
    %c1_136 = arith.constant 1 : index
    %c2_137 = arith.constant 2 : index
    %c0_138 = arith.constant 0 : index
    %417 = vector.load %arg15[%c1_136, %c2_137, %c0_138] : memref<2x16x96xf32, #tpu.memory_space<vmem>>, vector<1x2x96xf32>
    %418 = vector.shape_cast %417 : vector<1x2x96xf32> to vector<2x96xf32>
    %cst_139 = arith.constant dense<0.000000e+00> : vector<2x96xf32>
    %419 = tpu.matmul %384, %22, %cst_139 {dimension_numbers = #tpu.dot_dimension_numbers<[1], [0], [0], [1], [0, 0, 1, 1], [], []>} : vector<2x32xf32>, vector<32x96xf32>, vector<2x96xf32> -> vector<2x96xf32>
    %cst_140 = arith.constant dense<0.000000e+00> : vector<2x96xf32>
    %420 = tpu.matmul %412, %24, %cst_140 {dimension_numbers = #tpu.dot_dimension_numbers<[1], [0], [0], [1], [0, 0, 1, 1], [], []>} : vector<2x32xf32>, vector<32x96xf32>, vector<2x96xf32> -> vector<2x96xf32>
    %421 = vector.extract_strided_slice %416 {offsets = [0, 0], sizes = [2, 32], strides = [1, 1]} : vector<2x96xf32> to vector<2x32xf32>
    %422 = vector.extract_strided_slice %419 {offsets = [0, 0], sizes = [2, 32], strides = [1, 1]} : vector<2x96xf32> to vector<2x32xf32>
    %423 = arith.addf %421, %422 : vector<2x32xf32>
    %424 = arith.negf %423 : vector<2x32xf32>
    %425 = math.exp %424 : vector<2x32xf32>
    %cst_141 = arith.constant 1.000000e+00 : f32
    %426 = vector.broadcast %cst_141 : f32 to vector<2x32xf32>
    %427 = arith.addf %426, %425 : vector<2x32xf32>
    %428 = arith.divf %426, %427 : vector<2x32xf32>
    %429 = vector.extract_strided_slice %416 {offsets = [0, 32], sizes = [2, 32], strides = [1, 1]} : vector<2x96xf32> to vector<2x32xf32>
    %430 = vector.extract_strided_slice %419 {offsets = [0, 32], sizes = [2, 32], strides = [1, 1]} : vector<2x96xf32> to vector<2x32xf32>
    %431 = arith.addf %429, %430 : vector<2x32xf32>
    %432 = arith.negf %431 : vector<2x32xf32>
    %433 = math.exp %432 : vector<2x32xf32>
    %cst_142 = arith.constant 1.000000e+00 : f32
    %434 = vector.broadcast %cst_142 : f32 to vector<2x32xf32>
    %435 = arith.addf %434, %433 : vector<2x32xf32>
    %436 = arith.divf %434, %435 : vector<2x32xf32>
    %437 = vector.extract_strided_slice %416 {offsets = [0, 64], sizes = [2, 32], strides = [1, 1]} : vector<2x96xf32> to vector<2x32xf32>
    %438 = vector.extract_strided_slice %419 {offsets = [0, 64], sizes = [2, 32], strides = [1, 1]} : vector<2x96xf32> to vector<2x32xf32>
    %439 = vector.broadcast %26 : vector<1x32xf32> to vector<2x32xf32>
    %440 = arith.addf %438, %439 : vector<2x32xf32>
    %441 = arith.mulf %428, %440 : vector<2x32xf32>
    %442 = arith.addf %437, %441 : vector<2x32xf32>
    %443 = math.tanh %442 : vector<2x32xf32>
    %cst_143 = arith.constant 1.000000e+00 : f32
    %444 = vector.broadcast %cst_143 : f32 to vector<2x32xf32>
    %445 = arith.subf %444, %436 : vector<2x32xf32>
    %446 = arith.mulf %445, %443 : vector<2x32xf32>
    %447 = arith.mulf %436, %384 : vector<2x32xf32>
    %448 = arith.addf %446, %447 : vector<2x32xf32>
    %449 = vector.extract_strided_slice %418 {offsets = [0, 0], sizes = [2, 32], strides = [1, 1]} : vector<2x96xf32> to vector<2x32xf32>
    %450 = vector.extract_strided_slice %420 {offsets = [0, 0], sizes = [2, 32], strides = [1, 1]} : vector<2x96xf32> to vector<2x32xf32>
    %451 = arith.addf %449, %450 : vector<2x32xf32>
    %452 = arith.negf %451 : vector<2x32xf32>
    %453 = math.exp %452 : vector<2x32xf32>
    %cst_144 = arith.constant 1.000000e+00 : f32
    %454 = vector.broadcast %cst_144 : f32 to vector<2x32xf32>
    %455 = arith.addf %454, %453 : vector<2x32xf32>
    %456 = arith.divf %454, %455 : vector<2x32xf32>
    %457 = vector.extract_strided_slice %418 {offsets = [0, 32], sizes = [2, 32], strides = [1, 1]} : vector<2x96xf32> to vector<2x32xf32>
    %458 = vector.extract_strided_slice %420 {offsets = [0, 32], sizes = [2, 32], strides = [1, 1]} : vector<2x96xf32> to vector<2x32xf32>
    %459 = arith.addf %457, %458 : vector<2x32xf32>
    %460 = arith.negf %459 : vector<2x32xf32>
    %461 = math.exp %460 : vector<2x32xf32>
    %cst_145 = arith.constant 1.000000e+00 : f32
    %462 = vector.broadcast %cst_145 : f32 to vector<2x32xf32>
    %463 = arith.addf %462, %461 : vector<2x32xf32>
    %464 = arith.divf %462, %463 : vector<2x32xf32>
    %465 = vector.extract_strided_slice %418 {offsets = [0, 64], sizes = [2, 32], strides = [1, 1]} : vector<2x96xf32> to vector<2x32xf32>
    %466 = vector.extract_strided_slice %420 {offsets = [0, 64], sizes = [2, 32], strides = [1, 1]} : vector<2x96xf32> to vector<2x32xf32>
    %467 = vector.broadcast %28 : vector<1x32xf32> to vector<2x32xf32>
    %468 = arith.addf %466, %467 : vector<2x32xf32>
    %469 = arith.mulf %456, %468 : vector<2x32xf32>
    %470 = arith.addf %465, %469 : vector<2x32xf32>
    %471 = math.tanh %470 : vector<2x32xf32>
    %cst_146 = arith.constant 1.000000e+00 : f32
    %472 = vector.broadcast %cst_146 : f32 to vector<2x32xf32>
    %473 = arith.subf %472, %464 : vector<2x32xf32>
    %474 = arith.mulf %473, %471 : vector<2x32xf32>
    %475 = arith.mulf %464, %412 : vector<2x32xf32>
    %476 = arith.addf %474, %475 : vector<2x32xf32>
    %c12_147 = arith.constant 12 : index
    %c0_148 = arith.constant 0 : index
    %477 = vector.load %arg16[%c12_147, %c0_148] : memref<16x64xf32, #tpu.memory_space<vmem>>, vector<2x32xf32>
    tpu.vector_store %arg16[%c12_147, %c0_148], %448 {strides = array<i32>} : memref<16x64xf32, #tpu.memory_space<vmem>>, vector<2x32xf32>,
    %c2_149 = arith.constant 2 : index
    %c32_150 = arith.constant 32 : index
    %478 = vector.load %arg16[%c2_149, %c32_150] : memref<16x64xf32, #tpu.memory_space<vmem>>, vector<2x32xf32>
    tpu.vector_store %arg16[%c2_149, %c32_150], %476 {strides = array<i32>} : memref<16x64xf32, #tpu.memory_space<vmem>>, vector<2x32xf32>,
    %c0_151 = arith.constant 0 : index
    %c14_152 = arith.constant 14 : index
    %c0_153 = arith.constant 0 : index
    %479 = vector.load %arg15[%c0_151, %c14_152, %c0_153] : memref<2x16x96xf32, #tpu.memory_space<vmem>>, vector<1x2x96xf32>
    %480 = vector.shape_cast %479 : vector<1x2x96xf32> to vector<2x96xf32>
    %c1_154 = arith.constant 1 : index
    %c0_155 = arith.constant 0 : index
    %c0_156 = arith.constant 0 : index
    %481 = vector.load %arg15[%c1_154, %c0_155, %c0_156] : memref<2x16x96xf32, #tpu.memory_space<vmem>>, vector<1x2x96xf32>
    %482 = vector.shape_cast %481 : vector<1x2x96xf32> to vector<2x96xf32>
    %cst_157 = arith.constant dense<0.000000e+00> : vector<2x96xf32>
    %483 = tpu.matmul %448, %22, %cst_157 {dimension_numbers = #tpu.dot_dimension_numbers<[1], [0], [0], [1], [0, 0, 1, 1], [], []>} : vector<2x32xf32>, vector<32x96xf32>, vector<2x96xf32> -> vector<2x96xf32>
    %cst_158 = arith.constant dense<0.000000e+00> : vector<2x96xf32>
    %484 = tpu.matmul %476, %24, %cst_158 {dimension_numbers = #tpu.dot_dimension_numbers<[1], [0], [0], [1], [0, 0, 1, 1], [], []>} : vector<2x32xf32>, vector<32x96xf32>, vector<2x96xf32> -> vector<2x96xf32>
    %485 = vector.extract_strided_slice %480 {offsets = [0, 0], sizes = [2, 32], strides = [1, 1]} : vector<2x96xf32> to vector<2x32xf32>
    %486 = vector.extract_strided_slice %483 {offsets = [0, 0], sizes = [2, 32], strides = [1, 1]} : vector<2x96xf32> to vector<2x32xf32>
    %487 = arith.addf %485, %486 : vector<2x32xf32>
    %488 = arith.negf %487 : vector<2x32xf32>
    %489 = math.exp %488 : vector<2x32xf32>
    %cst_159 = arith.constant 1.000000e+00 : f32
    %490 = vector.broadcast %cst_159 : f32 to vector<2x32xf32>
    %491 = arith.addf %490, %489 : vector<2x32xf32>
    %492 = arith.divf %490, %491 : vector<2x32xf32>
    %493 = vector.extract_strided_slice %480 {offsets = [0, 32], sizes = [2, 32], strides = [1, 1]} : vector<2x96xf32> to vector<2x32xf32>
    %494 = vector.extract_strided_slice %483 {offsets = [0, 32], sizes = [2, 32], strides = [1, 1]} : vector<2x96xf32> to vector<2x32xf32>
    %495 = arith.addf %493, %494 : vector<2x32xf32>
    %496 = arith.negf %495 : vector<2x32xf32>
    %497 = math.exp %496 : vector<2x32xf32>
    %cst_160 = arith.constant 1.000000e+00 : f32
    %498 = vector.broadcast %cst_160 : f32 to vector<2x32xf32>
    %499 = arith.addf %498, %497 : vector<2x32xf32>
    %500 = arith.divf %498, %499 : vector<2x32xf32>
    %501 = vector.extract_strided_slice %480 {offsets = [0, 64], sizes = [2, 32], strides = [1, 1]} : vector<2x96xf32> to vector<2x32xf32>
    %502 = vector.extract_strided_slice %483 {offsets = [0, 64], sizes = [2, 32], strides = [1, 1]} : vector<2x96xf32> to vector<2x32xf32>
    %503 = vector.broadcast %26 : vector<1x32xf32> to vector<2x32xf32>
    %504 = arith.addf %502, %503 : vector<2x32xf32>
    %505 = arith.mulf %492, %504 : vector<2x32xf32>
    %506 = arith.addf %501, %505 : vector<2x32xf32>
    %507 = math.tanh %506 : vector<2x32xf32>
    %cst_161 = arith.constant 1.000000e+00 : f32
    %508 = vector.broadcast %cst_161 : f32 to vector<2x32xf32>
    %509 = arith.subf %508, %500 : vector<2x32xf32>
    %510 = arith.mulf %509, %507 : vector<2x32xf32>
    %511 = arith.mulf %500, %448 : vector<2x32xf32>
    %512 = arith.addf %510, %511 : vector<2x32xf32>
    %513 = vector.extract_strided_slice %482 {offsets = [0, 0], sizes = [2, 32], strides = [1, 1]} : vector<2x96xf32> to vector<2x32xf32>
    %514 = vector.extract_strided_slice %484 {offsets = [0, 0], sizes = [2, 32], strides = [1, 1]} : vector<2x96xf32> to vector<2x32xf32>
    %515 = arith.addf %513, %514 : vector<2x32xf32>
    %516 = arith.negf %515 : vector<2x32xf32>
    %517 = math.exp %516 : vector<2x32xf32>
    %cst_162 = arith.constant 1.000000e+00 : f32
    %518 = vector.broadcast %cst_162 : f32 to vector<2x32xf32>
    %519 = arith.addf %518, %517 : vector<2x32xf32>
    %520 = arith.divf %518, %519 : vector<2x32xf32>
    %521 = vector.extract_strided_slice %482 {offsets = [0, 32], sizes = [2, 32], strides = [1, 1]} : vector<2x96xf32> to vector<2x32xf32>
    %522 = vector.extract_strided_slice %484 {offsets = [0, 32], sizes = [2, 32], strides = [1, 1]} : vector<2x96xf32> to vector<2x32xf32>
    %523 = arith.addf %521, %522 : vector<2x32xf32>
    %524 = arith.negf %523 : vector<2x32xf32>
    %525 = math.exp %524 : vector<2x32xf32>
    %cst_163 = arith.constant 1.000000e+00 : f32
    %526 = vector.broadcast %cst_163 : f32 to vector<2x32xf32>
    %527 = arith.addf %526, %525 : vector<2x32xf32>
    %528 = arith.divf %526, %527 : vector<2x32xf32>
    %529 = vector.extract_strided_slice %482 {offsets = [0, 64], sizes = [2, 32], strides = [1, 1]} : vector<2x96xf32> to vector<2x32xf32>
    %530 = vector.extract_strided_slice %484 {offsets = [0, 64], sizes = [2, 32], strides = [1, 1]} : vector<2x96xf32> to vector<2x32xf32>
    %531 = vector.broadcast %28 : vector<1x32xf32> to vector<2x32xf32>
    %532 = arith.addf %530, %531 : vector<2x32xf32>
    %533 = arith.mulf %520, %532 : vector<2x32xf32>
    %534 = arith.addf %529, %533 : vector<2x32xf32>
    %535 = math.tanh %534 : vector<2x32xf32>
    %cst_164 = arith.constant 1.000000e+00 : f32
    %536 = vector.broadcast %cst_164 : f32 to vector<2x32xf32>
    %537 = arith.subf %536, %528 : vector<2x32xf32>
    %538 = arith.mulf %537, %535 : vector<2x32xf32>
    %539 = arith.mulf %528, %476 : vector<2x32xf32>
    %540 = arith.addf %538, %539 : vector<2x32xf32>
    %c14_165 = arith.constant 14 : index
    %c0_166 = arith.constant 0 : index
    %541 = vector.load %arg16[%c14_165, %c0_166] : memref<16x64xf32, #tpu.memory_space<vmem>>, vector<2x32xf32>
    tpu.vector_store %arg16[%c14_165, %c0_166], %512 {strides = array<i32>} : memref<16x64xf32, #tpu.memory_space<vmem>>, vector<2x32xf32>,
    %c0_167 = arith.constant 0 : index
    %c32_168 = arith.constant 32 : index
    %542 = vector.load %arg16[%c0_167, %c32_168] : memref<16x64xf32, #tpu.memory_space<vmem>>, vector<2x32xf32>
    tpu.vector_store %arg16[%c0_167, %c32_168], %540 {strides = array<i32>} : memref<16x64xf32, #tpu.memory_space<vmem>>, vector<2x32xf32>,
    %c0_169 = arith.constant 0 : index
    %c0_170 = arith.constant 0 : index
    %543 = vector.load %arg16[%c0_169, %c0_170] : memref<16x64xf32, #tpu.memory_space<vmem>>, vector<16x64xf32>
    %c0_171 = arith.constant 0 : index
    %c0_172 = arith.constant 0 : index
    %c0_173 = arith.constant 0 : index
    %544 = vector.load %arg6[%c0_171, %c0_172, %c0_173] : memref<2x64x96xf32, #tpu.memory_space<vmem>>, vector<1x64x96xf32>
    %545 = vector.shape_cast %544 : vector<1x64x96xf32> to vector<64x96xf32>
    %cst_174 = arith.constant dense<0.000000e+00> : vector<16x96xf32>
    %546 = tpu.matmul %543, %545, %cst_174 {dimension_numbers = #tpu.dot_dimension_numbers<[1], [0], [0], [1], [0, 0, 1, 1], [], []>} : vector<16x64xf32>, vector<64x96xf32>, vector<16x96xf32> -> vector<16x96xf32>
    %c0_175 = arith.constant 0 : index
    %c0_176 = arith.constant 0 : index
    %c0_177 = arith.constant 0 : index
    %547 = vector.load %arg8[%c0_175, %c0_176, %c0_177] : memref<2x1x96xf32, #tpu.memory_space<vmem>>, vector<1x1x96xf32>
    %548 = vector.shape_cast %547 : vector<1x1x96xf32> to vector<1x96xf32>
    %549 = vector.broadcast %548 : vector<1x96xf32> to vector<16x96xf32>
    %550 = arith.addf %546, %549 : vector<16x96xf32>
    %c0_178 = arith.constant 0 : index
    %c0_179 = arith.constant 0 : index
    %c0_180 = arith.constant 0 : index
    %551 = vector.load %arg17[%c0_178, %c0_179, %c0_180] : memref<2x16x96xf32, #tpu.memory_space<vmem>>, vector<1x16x96xf32>
    %552 = vector.shape_cast %551 : vector<1x16x96xf32> to vector<16x96xf32>
    %553 = vector.shape_cast %550 : vector<16x96xf32> to vector<1x16x96xf32>
    tpu.vector_store %arg17[%c0_178, %c0_179, %c0_180], %553 {strides = array<i32>} : memref<2x16x96xf32, #tpu.memory_space<vmem>>, vector<1x16x96xf32>,
    %c1_181 = arith.constant 1 : index
    %c0_182 = arith.constant 0 : index
    %c0_183 = arith.constant 0 : index
    %554 = vector.load %arg6[%c1_181, %c0_182, %c0_183] : memref<2x64x96xf32, #tpu.memory_space<vmem>>, vector<1x64x96xf32>
    %555 = vector.shape_cast %554 : vector<1x64x96xf32> to vector<64x96xf32>
    %cst_184 = arith.constant dense<0.000000e+00> : vector<16x96xf32>
    %556 = tpu.matmul %543, %555, %cst_184 {dimension_numbers = #tpu.dot_dimension_numbers<[1], [0], [0], [1], [0, 0, 1, 1], [], []>} : vector<16x64xf32>, vector<64x96xf32>, vector<16x96xf32> -> vector<16x96xf32>
    %c1_185 = arith.constant 1 : index
    %c0_186 = arith.constant 0 : index
    %c0_187 = arith.constant 0 : index
    %557 = vector.load %arg8[%c1_185, %c0_186, %c0_187] : memref<2x1x96xf32, #tpu.memory_space<vmem>>, vector<1x1x96xf32>
    %558 = vector.shape_cast %557 : vector<1x1x96xf32> to vector<1x96xf32>
    %559 = vector.broadcast %558 : vector<1x96xf32> to vector<16x96xf32>
    %560 = arith.addf %556, %559 : vector<16x96xf32>
    %c1_188 = arith.constant 1 : index
    %c0_189 = arith.constant 0 : index
    %c0_190 = arith.constant 0 : index
    %561 = vector.load %arg17[%c1_188, %c0_189, %c0_190] : memref<2x16x96xf32, #tpu.memory_space<vmem>>, vector<1x16x96xf32>
    %562 = vector.shape_cast %561 : vector<1x16x96xf32> to vector<16x96xf32>
    %563 = vector.shape_cast %560 : vector<16x96xf32> to vector<1x16x96xf32>
    tpu.vector_store %arg17[%c1_188, %c0_189, %c0_190], %563 {strides = array<i32>} : memref<2x16x96xf32, #tpu.memory_space<vmem>>, vector<1x16x96xf32>,
    %c0_191 = arith.constant 0 : index
    %c0_192 = arith.constant 0 : index
    %c0_193 = arith.constant 0 : index
    %564 = vector.load %arg7[%c0_191, %c0_192, %c0_193] : memref<2x32x96xf32, #tpu.memory_space<vmem>>, vector<1x32x96xf32>
    %565 = vector.shape_cast %564 : vector<1x32x96xf32> to vector<32x96xf32>
    %c1_194 = arith.constant 1 : index
    %c0_195 = arith.constant 0 : index
    %c0_196 = arith.constant 0 : index
    %566 = vector.load %arg7[%c1_194, %c0_195, %c0_196] : memref<2x32x96xf32, #tpu.memory_space<vmem>>, vector<1x32x96xf32>
    %567 = vector.shape_cast %566 : vector<1x32x96xf32> to vector<32x96xf32>
    %c0_197 = arith.constant 0 : index
    %c0_198 = arith.constant 0 : index
    %c0_199 = arith.constant 0 : index
    %568 = vector.load %arg9[%c0_197, %c0_198, %c0_199] : memref<2x1x32xf32, #tpu.memory_space<vmem>>, vector<1x1x32xf32>
    %569 = vector.shape_cast %568 : vector<1x1x32xf32> to vector<1x32xf32>
    %c1_200 = arith.constant 1 : index
    %c0_201 = arith.constant 0 : index
    %c0_202 = arith.constant 0 : index
    %570 = vector.load %arg9[%c1_200, %c0_201, %c0_202] : memref<2x1x32xf32, #tpu.memory_space<vmem>>, vector<1x1x32xf32>
    %571 = vector.shape_cast %570 : vector<1x1x32xf32> to vector<1x32xf32>
    %cst_203 = arith.constant 0.000000e+00 : f32
    %572 = vector.broadcast %cst_203 : f32 to vector<2x32xf32>
    %cst_204 = arith.constant 0.000000e+00 : f32
    %573 = vector.broadcast %cst_204 : f32 to vector<2x32xf32>
    %c0_205 = arith.constant 0 : index
    %c0_206 = arith.constant 0 : index
    %c0_207 = arith.constant 0 : index
    %574 = vector.load %arg17[%c0_205, %c0_206, %c0_207] : memref<2x16x96xf32, #tpu.memory_space<vmem>>, vector<1x2x96xf32>
    %575 = vector.shape_cast %574 : vector<1x2x96xf32> to vector<2x96xf32>
    %c1_208 = arith.constant 1 : index
    %c14_209 = arith.constant 14 : index
    %c0_210 = arith.constant 0 : index
    %576 = vector.load %arg17[%c1_208, %c14_209, %c0_210] : memref<2x16x96xf32, #tpu.memory_space<vmem>>, vector<1x2x96xf32>
    %577 = vector.shape_cast %576 : vector<1x2x96xf32> to vector<2x96xf32>
    %cst_211 = arith.constant dense<0.000000e+00> : vector<2x96xf32>
    %578 = tpu.matmul %572, %565, %cst_211 {dimension_numbers = #tpu.dot_dimension_numbers<[1], [0], [0], [1], [0, 0, 1, 1], [], []>} : vector<2x32xf32>, vector<32x96xf32>, vector<2x96xf32> -> vector<2x96xf32>
    %cst_212 = arith.constant dense<0.000000e+00> : vector<2x96xf32>
    %579 = tpu.matmul %573, %567, %cst_212 {dimension_numbers = #tpu.dot_dimension_numbers<[1], [0], [0], [1], [0, 0, 1, 1], [], []>} : vector<2x32xf32>, vector<32x96xf32>, vector<2x96xf32> -> vector<2x96xf32>
    %580 = vector.extract_strided_slice %575 {offsets = [0, 0], sizes = [2, 32], strides = [1, 1]} : vector<2x96xf32> to vector<2x32xf32>
    %581 = vector.extract_strided_slice %578 {offsets = [0, 0], sizes = [2, 32], strides = [1, 1]} : vector<2x96xf32> to vector<2x32xf32>
    %582 = arith.addf %580, %581 : vector<2x32xf32>
    %583 = arith.negf %582 : vector<2x32xf32>
    %584 = math.exp %583 : vector<2x32xf32>
    %cst_213 = arith.constant 1.000000e+00 : f32
    %585 = vector.broadcast %cst_213 : f32 to vector<2x32xf32>
    %586 = arith.addf %585, %584 : vector<2x32xf32>
    %587 = arith.divf %585, %586 : vector<2x32xf32>
    %588 = vector.extract_strided_slice %575 {offsets = [0, 32], sizes = [2, 32], strides = [1, 1]} : vector<2x96xf32> to vector<2x32xf32>
    %589 = vector.extract_strided_slice %578 {offsets = [0, 32], sizes = [2, 32], strides = [1, 1]} : vector<2x96xf32> to vector<2x32xf32>
    %590 = arith.addf %588, %589 : vector<2x32xf32>
    %591 = arith.negf %590 : vector<2x32xf32>
    %592 = math.exp %591 : vector<2x32xf32>
    %cst_214 = arith.constant 1.000000e+00 : f32
    %593 = vector.broadcast %cst_214 : f32 to vector<2x32xf32>
    %594 = arith.addf %593, %592 : vector<2x32xf32>
    %595 = arith.divf %593, %594 : vector<2x32xf32>
    %596 = vector.extract_strided_slice %575 {offsets = [0, 64], sizes = [2, 32], strides = [1, 1]} : vector<2x96xf32> to vector<2x32xf32>
    %597 = vector.extract_strided_slice %578 {offsets = [0, 64], sizes = [2, 32], strides = [1, 1]} : vector<2x96xf32> to vector<2x32xf32>
    %598 = vector.broadcast %569 : vector<1x32xf32> to vector<2x32xf32>
    %599 = arith.addf %597, %598 : vector<2x32xf32>
    %600 = arith.mulf %587, %599 : vector<2x32xf32>
    %601 = arith.addf %596, %600 : vector<2x32xf32>
    %602 = math.tanh %601 : vector<2x32xf32>
    %cst_215 = arith.constant 1.000000e+00 : f32
    %603 = vector.broadcast %cst_215 : f32 to vector<2x32xf32>
    %604 = arith.subf %603, %595 : vector<2x32xf32>
    %605 = arith.mulf %604, %602 : vector<2x32xf32>
    %606 = arith.mulf %595, %572 : vector<2x32xf32>
    %607 = arith.addf %605, %606 : vector<2x32xf32>
    %608 = vector.extract_strided_slice %577 {offsets = [0, 0], sizes = [2, 32], strides = [1, 1]} : vector<2x96xf32> to vector<2x32xf32>
    %609 = vector.extract_strided_slice %579 {offsets = [0, 0], sizes = [2, 32], strides = [1, 1]} : vector<2x96xf32> to vector<2x32xf32>
    %610 = arith.addf %608, %609 : vector<2x32xf32>
    %611 = arith.negf %610 : vector<2x32xf32>
    %612 = math.exp %611 : vector<2x32xf32>
    %cst_216 = arith.constant 1.000000e+00 : f32
    %613 = vector.broadcast %cst_216 : f32 to vector<2x32xf32>
    %614 = arith.addf %613, %612 : vector<2x32xf32>
    %615 = arith.divf %613, %614 : vector<2x32xf32>
    %616 = vector.extract_strided_slice %577 {offsets = [0, 32], sizes = [2, 32], strides = [1, 1]} : vector<2x96xf32> to vector<2x32xf32>
    %617 = vector.extract_strided_slice %579 {offsets = [0, 32], sizes = [2, 32], strides = [1, 1]} : vector<2x96xf32> to vector<2x32xf32>
    %618 = arith.addf %616, %617 : vector<2x32xf32>
    %619 = arith.negf %618 : vector<2x32xf32>
    %620 = math.exp %619 : vector<2x32xf32>
    %cst_217 = arith.constant 1.000000e+00 : f32
    %621 = vector.broadcast %cst_217 : f32 to vector<2x32xf32>
    %622 = arith.addf %621, %620 : vector<2x32xf32>
    %623 = arith.divf %621, %622 : vector<2x32xf32>
    %624 = vector.extract_strided_slice %577 {offsets = [0, 64], sizes = [2, 32], strides = [1, 1]} : vector<2x96xf32> to vector<2x32xf32>
    %625 = vector.extract_strided_slice %579 {offsets = [0, 64], sizes = [2, 32], strides = [1, 1]} : vector<2x96xf32> to vector<2x32xf32>
    %626 = vector.broadcast %571 : vector<1x32xf32> to vector<2x32xf32>
    %627 = arith.addf %625, %626 : vector<2x32xf32>
    %628 = arith.mulf %615, %627 : vector<2x32xf32>
    %629 = arith.addf %624, %628 : vector<2x32xf32>
    %630 = math.tanh %629 : vector<2x32xf32>
    %cst_218 = arith.constant 1.000000e+00 : f32
    %631 = vector.broadcast %cst_218 : f32 to vector<2x32xf32>
    %632 = arith.subf %631, %623 : vector<2x32xf32>
    %633 = arith.mulf %632, %630 : vector<2x32xf32>
    %634 = arith.mulf %623, %573 : vector<2x32xf32>
    %635 = arith.addf %633, %634 : vector<2x32xf32>
    %c0_219 = arith.constant 0 : index
    %c0_220 = arith.constant 0 : index
    %636 = vector.load %arg18[%c0_219, %c0_220] : memref<16x64xf32, #tpu.memory_space<vmem>>, vector<2x32xf32>
    tpu.vector_store %arg18[%c0_219, %c0_220], %607 {strides = array<i32>} : memref<16x64xf32, #tpu.memory_space<vmem>>, vector<2x32xf32>,
    %c14_221 = arith.constant 14 : index
    %c32_222 = arith.constant 32 : index
    %637 = vector.load %arg18[%c14_221, %c32_222] : memref<16x64xf32, #tpu.memory_space<vmem>>, vector<2x32xf32>
    tpu.vector_store %arg18[%c14_221, %c32_222], %635 {strides = array<i32>} : memref<16x64xf32, #tpu.memory_space<vmem>>, vector<2x32xf32>,
    %c0_223 = arith.constant 0 : index
    %c2_224 = arith.constant 2 : index
    %c0_225 = arith.constant 0 : index
    %638 = vector.load %arg17[%c0_223, %c2_224, %c0_225] : memref<2x16x96xf32, #tpu.memory_space<vmem>>, vector<1x2x96xf32>
    %639 = vector.shape_cast %638 : vector<1x2x96xf32> to vector<2x96xf32>
    %c1_226 = arith.constant 1 : index
    %c12_227 = arith.constant 12 : index
    %c0_228 = arith.constant 0 : index
    %640 = vector.load %arg17[%c1_226, %c12_227, %c0_228] : memref<2x16x96xf32, #tpu.memory_space<vmem>>, vector<1x2x96xf32>
    %641 = vector.shape_cast %640 : vector<1x2x96xf32> to vector<2x96xf32>
    %cst_229 = arith.constant dense<0.000000e+00> : vector<2x96xf32>
    %642 = tpu.matmul %607, %565, %cst_229 {dimension_numbers = #tpu.dot_dimension_numbers<[1], [0], [0], [1], [0, 0, 1, 1], [], []>} : vector<2x32xf32>, vector<32x96xf32>, vector<2x96xf32> -> vector<2x96xf32>
    %cst_230 = arith.constant dense<0.000000e+00> : vector<2x96xf32>
    %643 = tpu.matmul %635, %567, %cst_230 {dimension_numbers = #tpu.dot_dimension_numbers<[1], [0], [0], [1], [0, 0, 1, 1], [], []>} : vector<2x32xf32>, vector<32x96xf32>, vector<2x96xf32> -> vector<2x96xf32>
    %644 = vector.extract_strided_slice %639 {offsets = [0, 0], sizes = [2, 32], strides = [1, 1]} : vector<2x96xf32> to vector<2x32xf32>
    %645 = vector.extract_strided_slice %642 {offsets = [0, 0], sizes = [2, 32], strides = [1, 1]} : vector<2x96xf32> to vector<2x32xf32>
    %646 = arith.addf %644, %645 : vector<2x32xf32>
    %647 = arith.negf %646 : vector<2x32xf32>
    %648 = math.exp %647 : vector<2x32xf32>
    %cst_231 = arith.constant 1.000000e+00 : f32
    %649 = vector.broadcast %cst_231 : f32 to vector<2x32xf32>
    %650 = arith.addf %649, %648 : vector<2x32xf32>
    %651 = arith.divf %649, %650 : vector<2x32xf32>
    %652 = vector.extract_strided_slice %639 {offsets = [0, 32], sizes = [2, 32], strides = [1, 1]} : vector<2x96xf32> to vector<2x32xf32>
    %653 = vector.extract_strided_slice %642 {offsets = [0, 32], sizes = [2, 32], strides = [1, 1]} : vector<2x96xf32> to vector<2x32xf32>
    %654 = arith.addf %652, %653 : vector<2x32xf32>
    %655 = arith.negf %654 : vector<2x32xf32>
    %656 = math.exp %655 : vector<2x32xf32>
    %cst_232 = arith.constant 1.000000e+00 : f32
    %657 = vector.broadcast %cst_232 : f32 to vector<2x32xf32>
    %658 = arith.addf %657, %656 : vector<2x32xf32>
    %659 = arith.divf %657, %658 : vector<2x32xf32>
    %660 = vector.extract_strided_slice %639 {offsets = [0, 64], sizes = [2, 32], strides = [1, 1]} : vector<2x96xf32> to vector<2x32xf32>
    %661 = vector.extract_strided_slice %642 {offsets = [0, 64], sizes = [2, 32], strides = [1, 1]} : vector<2x96xf32> to vector<2x32xf32>
    %662 = vector.broadcast %569 : vector<1x32xf32> to vector<2x32xf32>
    %663 = arith.addf %661, %662 : vector<2x32xf32>
    %664 = arith.mulf %651, %663 : vector<2x32xf32>
    %665 = arith.addf %660, %664 : vector<2x32xf32>
    %666 = math.tanh %665 : vector<2x32xf32>
    %cst_233 = arith.constant 1.000000e+00 : f32
    %667 = vector.broadcast %cst_233 : f32 to vector<2x32xf32>
    %668 = arith.subf %667, %659 : vector<2x32xf32>
    %669 = arith.mulf %668, %666 : vector<2x32xf32>
    %670 = arith.mulf %659, %607 : vector<2x32xf32>
    %671 = arith.addf %669, %670 : vector<2x32xf32>
    %672 = vector.extract_strided_slice %641 {offsets = [0, 0], sizes = [2, 32], strides = [1, 1]} : vector<2x96xf32> to vector<2x32xf32>
    %673 = vector.extract_strided_slice %643 {offsets = [0, 0], sizes = [2, 32], strides = [1, 1]} : vector<2x96xf32> to vector<2x32xf32>
    %674 = arith.addf %672, %673 : vector<2x32xf32>
    %675 = arith.negf %674 : vector<2x32xf32>
    %676 = math.exp %675 : vector<2x32xf32>
    %cst_234 = arith.constant 1.000000e+00 : f32
    %677 = vector.broadcast %cst_234 : f32 to vector<2x32xf32>
    %678 = arith.addf %677, %676 : vector<2x32xf32>
    %679 = arith.divf %677, %678 : vector<2x32xf32>
    %680 = vector.extract_strided_slice %641 {offsets = [0, 32], sizes = [2, 32], strides = [1, 1]} : vector<2x96xf32> to vector<2x32xf32>
    %681 = vector.extract_strided_slice %643 {offsets = [0, 32], sizes = [2, 32], strides = [1, 1]} : vector<2x96xf32> to vector<2x32xf32>
    %682 = arith.addf %680, %681 : vector<2x32xf32>
    %683 = arith.negf %682 : vector<2x32xf32>
    %684 = math.exp %683 : vector<2x32xf32>
    %cst_235 = arith.constant 1.000000e+00 : f32
    %685 = vector.broadcast %cst_235 : f32 to vector<2x32xf32>
    %686 = arith.addf %685, %684 : vector<2x32xf32>
    %687 = arith.divf %685, %686 : vector<2x32xf32>
    %688 = vector.extract_strided_slice %641 {offsets = [0, 64], sizes = [2, 32], strides = [1, 1]} : vector<2x96xf32> to vector<2x32xf32>
    %689 = vector.extract_strided_slice %643 {offsets = [0, 64], sizes = [2, 32], strides = [1, 1]} : vector<2x96xf32> to vector<2x32xf32>
    %690 = vector.broadcast %571 : vector<1x32xf32> to vector<2x32xf32>
    %691 = arith.addf %689, %690 : vector<2x32xf32>
    %692 = arith.mulf %679, %691 : vector<2x32xf32>
    %693 = arith.addf %688, %692 : vector<2x32xf32>
    %694 = math.tanh %693 : vector<2x32xf32>
    %cst_236 = arith.constant 1.000000e+00 : f32
    %695 = vector.broadcast %cst_236 : f32 to vector<2x32xf32>
    %696 = arith.subf %695, %687 : vector<2x32xf32>
    %697 = arith.mulf %696, %694 : vector<2x32xf32>
    %698 = arith.mulf %687, %635 : vector<2x32xf32>
    %699 = arith.addf %697, %698 : vector<2x32xf32>
    %c2_237 = arith.constant 2 : index
    %c0_238 = arith.constant 0 : index
    %700 = vector.load %arg18[%c2_237, %c0_238] : memref<16x64xf32, #tpu.memory_space<vmem>>, vector<2x32xf32>
    tpu.vector_store %arg18[%c2_237, %c0_238], %671 {strides = array<i32>} : memref<16x64xf32, #tpu.memory_space<vmem>>, vector<2x32xf32>,
    %c12_239 = arith.constant 12 : index
    %c32_240 = arith.constant 32 : index
    %701 = vector.load %arg18[%c12_239, %c32_240] : memref<16x64xf32, #tpu.memory_space<vmem>>, vector<2x32xf32>
    tpu.vector_store %arg18[%c12_239, %c32_240], %699 {strides = array<i32>} : memref<16x64xf32, #tpu.memory_space<vmem>>, vector<2x32xf32>,
    %c0_241 = arith.constant 0 : index
    %c4_242 = arith.constant 4 : index
    %c0_243 = arith.constant 0 : index
    %702 = vector.load %arg17[%c0_241, %c4_242, %c0_243] : memref<2x16x96xf32, #tpu.memory_space<vmem>>, vector<1x2x96xf32>
    %703 = vector.shape_cast %702 : vector<1x2x96xf32> to vector<2x96xf32>
    %c1_244 = arith.constant 1 : index
    %c10_245 = arith.constant 10 : index
    %c0_246 = arith.constant 0 : index
    %704 = vector.load %arg17[%c1_244, %c10_245, %c0_246] : memref<2x16x96xf32, #tpu.memory_space<vmem>>, vector<1x2x96xf32>
    %705 = vector.shape_cast %704 : vector<1x2x96xf32> to vector<2x96xf32>
    %cst_247 = arith.constant dense<0.000000e+00> : vector<2x96xf32>
    %706 = tpu.matmul %671, %565, %cst_247 {dimension_numbers = #tpu.dot_dimension_numbers<[1], [0], [0], [1], [0, 0, 1, 1], [], []>} : vector<2x32xf32>, vector<32x96xf32>, vector<2x96xf32> -> vector<2x96xf32>
    %cst_248 = arith.constant dense<0.000000e+00> : vector<2x96xf32>
    %707 = tpu.matmul %699, %567, %cst_248 {dimension_numbers = #tpu.dot_dimension_numbers<[1], [0], [0], [1], [0, 0, 1, 1], [], []>} : vector<2x32xf32>, vector<32x96xf32>, vector<2x96xf32> -> vector<2x96xf32>
    %708 = vector.extract_strided_slice %703 {offsets = [0, 0], sizes = [2, 32], strides = [1, 1]} : vector<2x96xf32> to vector<2x32xf32>
    %709 = vector.extract_strided_slice %706 {offsets = [0, 0], sizes = [2, 32], strides = [1, 1]} : vector<2x96xf32> to vector<2x32xf32>
    %710 = arith.addf %708, %709 : vector<2x32xf32>
    %711 = arith.negf %710 : vector<2x32xf32>
    %712 = math.exp %711 : vector<2x32xf32>
    %cst_249 = arith.constant 1.000000e+00 : f32
    %713 = vector.broadcast %cst_249 : f32 to vector<2x32xf32>
    %714 = arith.addf %713, %712 : vector<2x32xf32>
    %715 = arith.divf %713, %714 : vector<2x32xf32>
    %716 = vector.extract_strided_slice %703 {offsets = [0, 32], sizes = [2, 32], strides = [1, 1]} : vector<2x96xf32> to vector<2x32xf32>
    %717 = vector.extract_strided_slice %706 {offsets = [0, 32], sizes = [2, 32], strides = [1, 1]} : vector<2x96xf32> to vector<2x32xf32>
    %718 = arith.addf %716, %717 : vector<2x32xf32>
    %719 = arith.negf %718 : vector<2x32xf32>
    %720 = math.exp %719 : vector<2x32xf32>
    %cst_250 = arith.constant 1.000000e+00 : f32
    %721 = vector.broadcast %cst_250 : f32 to vector<2x32xf32>
    %722 = arith.addf %721, %720 : vector<2x32xf32>
    %723 = arith.divf %721, %722 : vector<2x32xf32>
    %724 = vector.extract_strided_slice %703 {offsets = [0, 64], sizes = [2, 32], strides = [1, 1]} : vector<2x96xf32> to vector<2x32xf32>
    %725 = vector.extract_strided_slice %706 {offsets = [0, 64], sizes = [2, 32], strides = [1, 1]} : vector<2x96xf32> to vector<2x32xf32>
    %726 = vector.broadcast %569 : vector<1x32xf32> to vector<2x32xf32>
    %727 = arith.addf %725, %726 : vector<2x32xf32>
    %728 = arith.mulf %715, %727 : vector<2x32xf32>
    %729 = arith.addf %724, %728 : vector<2x32xf32>
    %730 = math.tanh %729 : vector<2x32xf32>
    %cst_251 = arith.constant 1.000000e+00 : f32
    %731 = vector.broadcast %cst_251 : f32 to vector<2x32xf32>
    %732 = arith.subf %731, %723 : vector<2x32xf32>
    %733 = arith.mulf %732, %730 : vector<2x32xf32>
    %734 = arith.mulf %723, %671 : vector<2x32xf32>
    %735 = arith.addf %733, %734 : vector<2x32xf32>
    %736 = vector.extract_strided_slice %705 {offsets = [0, 0], sizes = [2, 32], strides = [1, 1]} : vector<2x96xf32> to vector<2x32xf32>
    %737 = vector.extract_strided_slice %707 {offsets = [0, 0], sizes = [2, 32], strides = [1, 1]} : vector<2x96xf32> to vector<2x32xf32>
    %738 = arith.addf %736, %737 : vector<2x32xf32>
    %739 = arith.negf %738 : vector<2x32xf32>
    %740 = math.exp %739 : vector<2x32xf32>
    %cst_252 = arith.constant 1.000000e+00 : f32
    %741 = vector.broadcast %cst_252 : f32 to vector<2x32xf32>
    %742 = arith.addf %741, %740 : vector<2x32xf32>
    %743 = arith.divf %741, %742 : vector<2x32xf32>
    %744 = vector.extract_strided_slice %705 {offsets = [0, 32], sizes = [2, 32], strides = [1, 1]} : vector<2x96xf32> to vector<2x32xf32>
    %745 = vector.extract_strided_slice %707 {offsets = [0, 32], sizes = [2, 32], strides = [1, 1]} : vector<2x96xf32> to vector<2x32xf32>
    %746 = arith.addf %744, %745 : vector<2x32xf32>
    %747 = arith.negf %746 : vector<2x32xf32>
    %748 = math.exp %747 : vector<2x32xf32>
    %cst_253 = arith.constant 1.000000e+00 : f32
    %749 = vector.broadcast %cst_253 : f32 to vector<2x32xf32>
    %750 = arith.addf %749, %748 : vector<2x32xf32>
    %751 = arith.divf %749, %750 : vector<2x32xf32>
    %752 = vector.extract_strided_slice %705 {offsets = [0, 64], sizes = [2, 32], strides = [1, 1]} : vector<2x96xf32> to vector<2x32xf32>
    %753 = vector.extract_strided_slice %707 {offsets = [0, 64], sizes = [2, 32], strides = [1, 1]} : vector<2x96xf32> to vector<2x32xf32>
    %754 = vector.broadcast %571 : vector<1x32xf32> to vector<2x32xf32>
    %755 = arith.addf %753, %754 : vector<2x32xf32>
    %756 = arith.mulf %743, %755 : vector<2x32xf32>
    %757 = arith.addf %752, %756 : vector<2x32xf32>
    %758 = math.tanh %757 : vector<2x32xf32>
    %cst_254 = arith.constant 1.000000e+00 : f32
    %759 = vector.broadcast %cst_254 : f32 to vector<2x32xf32>
    %760 = arith.subf %759, %751 : vector<2x32xf32>
    %761 = arith.mulf %760, %758 : vector<2x32xf32>
    %762 = arith.mulf %751, %699 : vector<2x32xf32>
    %763 = arith.addf %761, %762 : vector<2x32xf32>
    %c4_255 = arith.constant 4 : index
    %c0_256 = arith.constant 0 : index
    %764 = vector.load %arg18[%c4_255, %c0_256] : memref<16x64xf32, #tpu.memory_space<vmem>>, vector<2x32xf32>
    tpu.vector_store %arg18[%c4_255, %c0_256], %735 {strides = array<i32>} : memref<16x64xf32, #tpu.memory_space<vmem>>, vector<2x32xf32>,
    %c10_257 = arith.constant 10 : index
    %c32_258 = arith.constant 32 : index
    %765 = vector.load %arg18[%c10_257, %c32_258] : memref<16x64xf32, #tpu.memory_space<vmem>>, vector<2x32xf32>
    tpu.vector_store %arg18[%c10_257, %c32_258], %763 {strides = array<i32>} : memref<16x64xf32, #tpu.memory_space<vmem>>, vector<2x32xf32>,
    %c0_259 = arith.constant 0 : index
    %c6_260 = arith.constant 6 : index
    %c0_261 = arith.constant 0 : index
    %766 = vector.load %arg17[%c0_259, %c6_260, %c0_261] : memref<2x16x96xf32, #tpu.memory_space<vmem>>, vector<1x2x96xf32>
    %767 = vector.shape_cast %766 : vector<1x2x96xf32> to vector<2x96xf32>
    %c1_262 = arith.constant 1 : index
    %c8_263 = arith.constant 8 : index
    %c0_264 = arith.constant 0 : index
    %768 = vector.load %arg17[%c1_262, %c8_263, %c0_264] : memref<2x16x96xf32, #tpu.memory_space<vmem>>, vector<1x2x96xf32>
    %769 = vector.shape_cast %768 : vector<1x2x96xf32> to vector<2x96xf32>
    %cst_265 = arith.constant dense<0.000000e+00> : vector<2x96xf32>
    %770 = tpu.matmul %735, %565, %cst_265 {dimension_numbers = #tpu.dot_dimension_numbers<[1], [0], [0], [1], [0, 0, 1, 1], [], []>} : vector<2x32xf32>, vector<32x96xf32>, vector<2x96xf32> -> vector<2x96xf32>
    %cst_266 = arith.constant dense<0.000000e+00> : vector<2x96xf32>
    %771 = tpu.matmul %763, %567, %cst_266 {dimension_numbers = #tpu.dot_dimension_numbers<[1], [0], [0], [1], [0, 0, 1, 1], [], []>} : vector<2x32xf32>, vector<32x96xf32>, vector<2x96xf32> -> vector<2x96xf32>
    %772 = vector.extract_strided_slice %767 {offsets = [0, 0], sizes = [2, 32], strides = [1, 1]} : vector<2x96xf32> to vector<2x32xf32>
    %773 = vector.extract_strided_slice %770 {offsets = [0, 0], sizes = [2, 32], strides = [1, 1]} : vector<2x96xf32> to vector<2x32xf32>
    %774 = arith.addf %772, %773 : vector<2x32xf32>
    %775 = arith.negf %774 : vector<2x32xf32>
    %776 = math.exp %775 : vector<2x32xf32>
    %cst_267 = arith.constant 1.000000e+00 : f32
    %777 = vector.broadcast %cst_267 : f32 to vector<2x32xf32>
    %778 = arith.addf %777, %776 : vector<2x32xf32>
    %779 = arith.divf %777, %778 : vector<2x32xf32>
    %780 = vector.extract_strided_slice %767 {offsets = [0, 32], sizes = [2, 32], strides = [1, 1]} : vector<2x96xf32> to vector<2x32xf32>
    %781 = vector.extract_strided_slice %770 {offsets = [0, 32], sizes = [2, 32], strides = [1, 1]} : vector<2x96xf32> to vector<2x32xf32>
    %782 = arith.addf %780, %781 : vector<2x32xf32>
    %783 = arith.negf %782 : vector<2x32xf32>
    %784 = math.exp %783 : vector<2x32xf32>
    %cst_268 = arith.constant 1.000000e+00 : f32
    %785 = vector.broadcast %cst_268 : f32 to vector<2x32xf32>
    %786 = arith.addf %785, %784 : vector<2x32xf32>
    %787 = arith.divf %785, %786 : vector<2x32xf32>
    %788 = vector.extract_strided_slice %767 {offsets = [0, 64], sizes = [2, 32], strides = [1, 1]} : vector<2x96xf32> to vector<2x32xf32>
    %789 = vector.extract_strided_slice %770 {offsets = [0, 64], sizes = [2, 32], strides = [1, 1]} : vector<2x96xf32> to vector<2x32xf32>
    %790 = vector.broadcast %569 : vector<1x32xf32> to vector<2x32xf32>
    %791 = arith.addf %789, %790 : vector<2x32xf32>
    %792 = arith.mulf %779, %791 : vector<2x32xf32>
    %793 = arith.addf %788, %792 : vector<2x32xf32>
    %794 = math.tanh %793 : vector<2x32xf32>
    %cst_269 = arith.constant 1.000000e+00 : f32
    %795 = vector.broadcast %cst_269 : f32 to vector<2x32xf32>
    %796 = arith.subf %795, %787 : vector<2x32xf32>
    %797 = arith.mulf %796, %794 : vector<2x32xf32>
    %798 = arith.mulf %787, %735 : vector<2x32xf32>
    %799 = arith.addf %797, %798 : vector<2x32xf32>
    %800 = vector.extract_strided_slice %769 {offsets = [0, 0], sizes = [2, 32], strides = [1, 1]} : vector<2x96xf32> to vector<2x32xf32>
    %801 = vector.extract_strided_slice %771 {offsets = [0, 0], sizes = [2, 32], strides = [1, 1]} : vector<2x96xf32> to vector<2x32xf32>
    %802 = arith.addf %800, %801 : vector<2x32xf32>
    %803 = arith.negf %802 : vector<2x32xf32>
    %804 = math.exp %803 : vector<2x32xf32>
    %cst_270 = arith.constant 1.000000e+00 : f32
    %805 = vector.broadcast %cst_270 : f32 to vector<2x32xf32>
    %806 = arith.addf %805, %804 : vector<2x32xf32>
    %807 = arith.divf %805, %806 : vector<2x32xf32>
    %808 = vector.extract_strided_slice %769 {offsets = [0, 32], sizes = [2, 32], strides = [1, 1]} : vector<2x96xf32> to vector<2x32xf32>
    %809 = vector.extract_strided_slice %771 {offsets = [0, 32], sizes = [2, 32], strides = [1, 1]} : vector<2x96xf32> to vector<2x32xf32>
    %810 = arith.addf %808, %809 : vector<2x32xf32>
    %811 = arith.negf %810 : vector<2x32xf32>
    %812 = math.exp %811 : vector<2x32xf32>
    %cst_271 = arith.constant 1.000000e+00 : f32
    %813 = vector.broadcast %cst_271 : f32 to vector<2x32xf32>
    %814 = arith.addf %813, %812 : vector<2x32xf32>
    %815 = arith.divf %813, %814 : vector<2x32xf32>
    %816 = vector.extract_strided_slice %769 {offsets = [0, 64], sizes = [2, 32], strides = [1, 1]} : vector<2x96xf32> to vector<2x32xf32>
    %817 = vector.extract_strided_slice %771 {offsets = [0, 64], sizes = [2, 32], strides = [1, 1]} : vector<2x96xf32> to vector<2x32xf32>
    %818 = vector.broadcast %571 : vector<1x32xf32> to vector<2x32xf32>
    %819 = arith.addf %817, %818 : vector<2x32xf32>
    %820 = arith.mulf %807, %819 : vector<2x32xf32>
    %821 = arith.addf %816, %820 : vector<2x32xf32>
    %822 = math.tanh %821 : vector<2x32xf32>
    %cst_272 = arith.constant 1.000000e+00 : f32
    %823 = vector.broadcast %cst_272 : f32 to vector<2x32xf32>
    %824 = arith.subf %823, %815 : vector<2x32xf32>
    %825 = arith.mulf %824, %822 : vector<2x32xf32>
    %826 = arith.mulf %815, %763 : vector<2x32xf32>
    %827 = arith.addf %825, %826 : vector<2x32xf32>
    %c6_273 = arith.constant 6 : index
    %c0_274 = arith.constant 0 : index
    %828 = vector.load %arg18[%c6_273, %c0_274] : memref<16x64xf32, #tpu.memory_space<vmem>>, vector<2x32xf32>
    tpu.vector_store %arg18[%c6_273, %c0_274], %799 {strides = array<i32>} : memref<16x64xf32, #tpu.memory_space<vmem>>, vector<2x32xf32>,
    %c8_275 = arith.constant 8 : index
    %c32_276 = arith.constant 32 : index
    %829 = vector.load %arg18[%c8_275, %c32_276] : memref<16x64xf32, #tpu.memory_space<vmem>>, vector<2x32xf32>
    tpu.vector_store %arg18[%c8_275, %c32_276], %827 {strides = array<i32>} : memref<16x64xf32, #tpu.memory_space<vmem>>, vector<2x32xf32>,
    %c0_277 = arith.constant 0 : index
    %c8_278 = arith.constant 8 : index
    %c0_279 = arith.constant 0 : index
    %830 = vector.load %arg17[%c0_277, %c8_278, %c0_279] : memref<2x16x96xf32, #tpu.memory_space<vmem>>, vector<1x2x96xf32>
    %831 = vector.shape_cast %830 : vector<1x2x96xf32> to vector<2x96xf32>
    %c1_280 = arith.constant 1 : index
    %c6_281 = arith.constant 6 : index
    %c0_282 = arith.constant 0 : index
    %832 = vector.load %arg17[%c1_280, %c6_281, %c0_282] : memref<2x16x96xf32, #tpu.memory_space<vmem>>, vector<1x2x96xf32>
    %833 = vector.shape_cast %832 : vector<1x2x96xf32> to vector<2x96xf32>
    %cst_283 = arith.constant dense<0.000000e+00> : vector<2x96xf32>
    %834 = tpu.matmul %799, %565, %cst_283 {dimension_numbers = #tpu.dot_dimension_numbers<[1], [0], [0], [1], [0, 0, 1, 1], [], []>} : vector<2x32xf32>, vector<32x96xf32>, vector<2x96xf32> -> vector<2x96xf32>
    %cst_284 = arith.constant dense<0.000000e+00> : vector<2x96xf32>
    %835 = tpu.matmul %827, %567, %cst_284 {dimension_numbers = #tpu.dot_dimension_numbers<[1], [0], [0], [1], [0, 0, 1, 1], [], []>} : vector<2x32xf32>, vector<32x96xf32>, vector<2x96xf32> -> vector<2x96xf32>
    %836 = vector.extract_strided_slice %831 {offsets = [0, 0], sizes = [2, 32], strides = [1, 1]} : vector<2x96xf32> to vector<2x32xf32>
    %837 = vector.extract_strided_slice %834 {offsets = [0, 0], sizes = [2, 32], strides = [1, 1]} : vector<2x96xf32> to vector<2x32xf32>
    %838 = arith.addf %836, %837 : vector<2x32xf32>
    %839 = arith.negf %838 : vector<2x32xf32>
    %840 = math.exp %839 : vector<2x32xf32>
    %cst_285 = arith.constant 1.000000e+00 : f32
    %841 = vector.broadcast %cst_285 : f32 to vector<2x32xf32>
    %842 = arith.addf %841, %840 : vector<2x32xf32>
    %843 = arith.divf %841, %842 : vector<2x32xf32>
    %844 = vector.extract_strided_slice %831 {offsets = [0, 32], sizes = [2, 32], strides = [1, 1]} : vector<2x96xf32> to vector<2x32xf32>
    %845 = vector.extract_strided_slice %834 {offsets = [0, 32], sizes = [2, 32], strides = [1, 1]} : vector<2x96xf32> to vector<2x32xf32>
    %846 = arith.addf %844, %845 : vector<2x32xf32>
    %847 = arith.negf %846 : vector<2x32xf32>
    %848 = math.exp %847 : vector<2x32xf32>
    %cst_286 = arith.constant 1.000000e+00 : f32
    %849 = vector.broadcast %cst_286 : f32 to vector<2x32xf32>
    %850 = arith.addf %849, %848 : vector<2x32xf32>
    %851 = arith.divf %849, %850 : vector<2x32xf32>
    %852 = vector.extract_strided_slice %831 {offsets = [0, 64], sizes = [2, 32], strides = [1, 1]} : vector<2x96xf32> to vector<2x32xf32>
    %853 = vector.extract_strided_slice %834 {offsets = [0, 64], sizes = [2, 32], strides = [1, 1]} : vector<2x96xf32> to vector<2x32xf32>
    %854 = vector.broadcast %569 : vector<1x32xf32> to vector<2x32xf32>
    %855 = arith.addf %853, %854 : vector<2x32xf32>
    %856 = arith.mulf %843, %855 : vector<2x32xf32>
    %857 = arith.addf %852, %856 : vector<2x32xf32>
    %858 = math.tanh %857 : vector<2x32xf32>
    %cst_287 = arith.constant 1.000000e+00 : f32
    %859 = vector.broadcast %cst_287 : f32 to vector<2x32xf32>
    %860 = arith.subf %859, %851 : vector<2x32xf32>
    %861 = arith.mulf %860, %858 : vector<2x32xf32>
    %862 = arith.mulf %851, %799 : vector<2x32xf32>
    %863 = arith.addf %861, %862 : vector<2x32xf32>
    %864 = vector.extract_strided_slice %833 {offsets = [0, 0], sizes = [2, 32], strides = [1, 1]} : vector<2x96xf32> to vector<2x32xf32>
    %865 = vector.extract_strided_slice %835 {offsets = [0, 0], sizes = [2, 32], strides = [1, 1]} : vector<2x96xf32> to vector<2x32xf32>
    %866 = arith.addf %864, %865 : vector<2x32xf32>
    %867 = arith.negf %866 : vector<2x32xf32>
    %868 = math.exp %867 : vector<2x32xf32>
    %cst_288 = arith.constant 1.000000e+00 : f32
    %869 = vector.broadcast %cst_288 : f32 to vector<2x32xf32>
    %870 = arith.addf %869, %868 : vector<2x32xf32>
    %871 = arith.divf %869, %870 : vector<2x32xf32>
    %872 = vector.extract_strided_slice %833 {offsets = [0, 32], sizes = [2, 32], strides = [1, 1]} : vector<2x96xf32> to vector<2x32xf32>
    %873 = vector.extract_strided_slice %835 {offsets = [0, 32], sizes = [2, 32], strides = [1, 1]} : vector<2x96xf32> to vector<2x32xf32>
    %874 = arith.addf %872, %873 : vector<2x32xf32>
    %875 = arith.negf %874 : vector<2x32xf32>
    %876 = math.exp %875 : vector<2x32xf32>
    %cst_289 = arith.constant 1.000000e+00 : f32
    %877 = vector.broadcast %cst_289 : f32 to vector<2x32xf32>
    %878 = arith.addf %877, %876 : vector<2x32xf32>
    %879 = arith.divf %877, %878 : vector<2x32xf32>
    %880 = vector.extract_strided_slice %833 {offsets = [0, 64], sizes = [2, 32], strides = [1, 1]} : vector<2x96xf32> to vector<2x32xf32>
    %881 = vector.extract_strided_slice %835 {offsets = [0, 64], sizes = [2, 32], strides = [1, 1]} : vector<2x96xf32> to vector<2x32xf32>
    %882 = vector.broadcast %571 : vector<1x32xf32> to vector<2x32xf32>
    %883 = arith.addf %881, %882 : vector<2x32xf32>
    %884 = arith.mulf %871, %883 : vector<2x32xf32>
    %885 = arith.addf %880, %884 : vector<2x32xf32>
    %886 = math.tanh %885 : vector<2x32xf32>
    %cst_290 = arith.constant 1.000000e+00 : f32
    %887 = vector.broadcast %cst_290 : f32 to vector<2x32xf32>
    %888 = arith.subf %887, %879 : vector<2x32xf32>
    %889 = arith.mulf %888, %886 : vector<2x32xf32>
    %890 = arith.mulf %879, %827 : vector<2x32xf32>
    %891 = arith.addf %889, %890 : vector<2x32xf32>
    %c8_291 = arith.constant 8 : index
    %c0_292 = arith.constant 0 : index
    %892 = vector.load %arg18[%c8_291, %c0_292] : memref<16x64xf32, #tpu.memory_space<vmem>>, vector<2x32xf32>
    tpu.vector_store %arg18[%c8_291, %c0_292], %863 {strides = array<i32>} : memref<16x64xf32, #tpu.memory_space<vmem>>, vector<2x32xf32>,
    %c6_293 = arith.constant 6 : index
    %c32_294 = arith.constant 32 : index
    %893 = vector.load %arg18[%c6_293, %c32_294] : memref<16x64xf32, #tpu.memory_space<vmem>>, vector<2x32xf32>
    tpu.vector_store %arg18[%c6_293, %c32_294], %891 {strides = array<i32>} : memref<16x64xf32, #tpu.memory_space<vmem>>, vector<2x32xf32>,
    %c0_295 = arith.constant 0 : index
    %c10_296 = arith.constant 10 : index
    %c0_297 = arith.constant 0 : index
    %894 = vector.load %arg17[%c0_295, %c10_296, %c0_297] : memref<2x16x96xf32, #tpu.memory_space<vmem>>, vector<1x2x96xf32>
    %895 = vector.shape_cast %894 : vector<1x2x96xf32> to vector<2x96xf32>
    %c1_298 = arith.constant 1 : index
    %c4_299 = arith.constant 4 : index
    %c0_300 = arith.constant 0 : index
    %896 = vector.load %arg17[%c1_298, %c4_299, %c0_300] : memref<2x16x96xf32, #tpu.memory_space<vmem>>, vector<1x2x96xf32>
    %897 = vector.shape_cast %896 : vector<1x2x96xf32> to vector<2x96xf32>
    %cst_301 = arith.constant dense<0.000000e+00> : vector<2x96xf32>
    %898 = tpu.matmul %863, %565, %cst_301 {dimension_numbers = #tpu.dot_dimension_numbers<[1], [0], [0], [1], [0, 0, 1, 1], [], []>} : vector<2x32xf32>, vector<32x96xf32>, vector<2x96xf32> -> vector<2x96xf32>
    %cst_302 = arith.constant dense<0.000000e+00> : vector<2x96xf32>
    %899 = tpu.matmul %891, %567, %cst_302 {dimension_numbers = #tpu.dot_dimension_numbers<[1], [0], [0], [1], [0, 0, 1, 1], [], []>} : vector<2x32xf32>, vector<32x96xf32>, vector<2x96xf32> -> vector<2x96xf32>
    %900 = vector.extract_strided_slice %895 {offsets = [0, 0], sizes = [2, 32], strides = [1, 1]} : vector<2x96xf32> to vector<2x32xf32>
    %901 = vector.extract_strided_slice %898 {offsets = [0, 0], sizes = [2, 32], strides = [1, 1]} : vector<2x96xf32> to vector<2x32xf32>
    %902 = arith.addf %900, %901 : vector<2x32xf32>
    %903 = arith.negf %902 : vector<2x32xf32>
    %904 = math.exp %903 : vector<2x32xf32>
    %cst_303 = arith.constant 1.000000e+00 : f32
    %905 = vector.broadcast %cst_303 : f32 to vector<2x32xf32>
    %906 = arith.addf %905, %904 : vector<2x32xf32>
    %907 = arith.divf %905, %906 : vector<2x32xf32>
    %908 = vector.extract_strided_slice %895 {offsets = [0, 32], sizes = [2, 32], strides = [1, 1]} : vector<2x96xf32> to vector<2x32xf32>
    %909 = vector.extract_strided_slice %898 {offsets = [0, 32], sizes = [2, 32], strides = [1, 1]} : vector<2x96xf32> to vector<2x32xf32>
    %910 = arith.addf %908, %909 : vector<2x32xf32>
    %911 = arith.negf %910 : vector<2x32xf32>
    %912 = math.exp %911 : vector<2x32xf32>
    %cst_304 = arith.constant 1.000000e+00 : f32
    %913 = vector.broadcast %cst_304 : f32 to vector<2x32xf32>
    %914 = arith.addf %913, %912 : vector<2x32xf32>
    %915 = arith.divf %913, %914 : vector<2x32xf32>
    %916 = vector.extract_strided_slice %895 {offsets = [0, 64], sizes = [2, 32], strides = [1, 1]} : vector<2x96xf32> to vector<2x32xf32>
    %917 = vector.extract_strided_slice %898 {offsets = [0, 64], sizes = [2, 32], strides = [1, 1]} : vector<2x96xf32> to vector<2x32xf32>
    %918 = vector.broadcast %569 : vector<1x32xf32> to vector<2x32xf32>
    %919 = arith.addf %917, %918 : vector<2x32xf32>
    %920 = arith.mulf %907, %919 : vector<2x32xf32>
    %921 = arith.addf %916, %920 : vector<2x32xf32>
    %922 = math.tanh %921 : vector<2x32xf32>
    %cst_305 = arith.constant 1.000000e+00 : f32
    %923 = vector.broadcast %cst_305 : f32 to vector<2x32xf32>
    %924 = arith.subf %923, %915 : vector<2x32xf32>
    %925 = arith.mulf %924, %922 : vector<2x32xf32>
    %926 = arith.mulf %915, %863 : vector<2x32xf32>
    %927 = arith.addf %925, %926 : vector<2x32xf32>
    %928 = vector.extract_strided_slice %897 {offsets = [0, 0], sizes = [2, 32], strides = [1, 1]} : vector<2x96xf32> to vector<2x32xf32>
    %929 = vector.extract_strided_slice %899 {offsets = [0, 0], sizes = [2, 32], strides = [1, 1]} : vector<2x96xf32> to vector<2x32xf32>
    %930 = arith.addf %928, %929 : vector<2x32xf32>
    %931 = arith.negf %930 : vector<2x32xf32>
    %932 = math.exp %931 : vector<2x32xf32>
    %cst_306 = arith.constant 1.000000e+00 : f32
    %933 = vector.broadcast %cst_306 : f32 to vector<2x32xf32>
    %934 = arith.addf %933, %932 : vector<2x32xf32>
    %935 = arith.divf %933, %934 : vector<2x32xf32>
    %936 = vector.extract_strided_slice %897 {offsets = [0, 32], sizes = [2, 32], strides = [1, 1]} : vector<2x96xf32> to vector<2x32xf32>
    %937 = vector.extract_strided_slice %899 {offsets = [0, 32], sizes = [2, 32], strides = [1, 1]} : vector<2x96xf32> to vector<2x32xf32>
    %938 = arith.addf %936, %937 : vector<2x32xf32>
    %939 = arith.negf %938 : vector<2x32xf32>
    %940 = math.exp %939 : vector<2x32xf32>
    %cst_307 = arith.constant 1.000000e+00 : f32
    %941 = vector.broadcast %cst_307 : f32 to vector<2x32xf32>
    %942 = arith.addf %941, %940 : vector<2x32xf32>
    %943 = arith.divf %941, %942 : vector<2x32xf32>
    %944 = vector.extract_strided_slice %897 {offsets = [0, 64], sizes = [2, 32], strides = [1, 1]} : vector<2x96xf32> to vector<2x32xf32>
    %945 = vector.extract_strided_slice %899 {offsets = [0, 64], sizes = [2, 32], strides = [1, 1]} : vector<2x96xf32> to vector<2x32xf32>
    %946 = vector.broadcast %571 : vector<1x32xf32> to vector<2x32xf32>
    %947 = arith.addf %945, %946 : vector<2x32xf32>
    %948 = arith.mulf %935, %947 : vector<2x32xf32>
    %949 = arith.addf %944, %948 : vector<2x32xf32>
    %950 = math.tanh %949 : vector<2x32xf32>
    %cst_308 = arith.constant 1.000000e+00 : f32
    %951 = vector.broadcast %cst_308 : f32 to vector<2x32xf32>
    %952 = arith.subf %951, %943 : vector<2x32xf32>
    %953 = arith.mulf %952, %950 : vector<2x32xf32>
    %954 = arith.mulf %943, %891 : vector<2x32xf32>
    %955 = arith.addf %953, %954 : vector<2x32xf32>
    %c10_309 = arith.constant 10 : index
    %c0_310 = arith.constant 0 : index
    %956 = vector.load %arg18[%c10_309, %c0_310] : memref<16x64xf32, #tpu.memory_space<vmem>>, vector<2x32xf32>
    tpu.vector_store %arg18[%c10_309, %c0_310], %927 {strides = array<i32>} : memref<16x64xf32, #tpu.memory_space<vmem>>, vector<2x32xf32>,
    %c4_311 = arith.constant 4 : index
    %c32_312 = arith.constant 32 : index
    %957 = vector.load %arg18[%c4_311, %c32_312] : memref<16x64xf32, #tpu.memory_space<vmem>>, vector<2x32xf32>
    tpu.vector_store %arg18[%c4_311, %c32_312], %955 {strides = array<i32>} : memref<16x64xf32, #tpu.memory_space<vmem>>, vector<2x32xf32>,
    %c0_313 = arith.constant 0 : index
    %c12_314 = arith.constant 12 : index
    %c0_315 = arith.constant 0 : index
    %958 = vector.load %arg17[%c0_313, %c12_314, %c0_315] : memref<2x16x96xf32, #tpu.memory_space<vmem>>, vector<1x2x96xf32>
    %959 = vector.shape_cast %958 : vector<1x2x96xf32> to vector<2x96xf32>
    %c1_316 = arith.constant 1 : index
    %c2_317 = arith.constant 2 : index
    %c0_318 = arith.constant 0 : index
    %960 = vector.load %arg17[%c1_316, %c2_317, %c0_318] : memref<2x16x96xf32, #tpu.memory_space<vmem>>, vector<1x2x96xf32>
    %961 = vector.shape_cast %960 : vector<1x2x96xf32> to vector<2x96xf32>
    %cst_319 = arith.constant dense<0.000000e+00> : vector<2x96xf32>
    %962 = tpu.matmul %927, %565, %cst_319 {dimension_numbers = #tpu.dot_dimension_numbers<[1], [0], [0], [1], [0, 0, 1, 1], [], []>} : vector<2x32xf32>, vector<32x96xf32>, vector<2x96xf32> -> vector<2x96xf32>
    %cst_320 = arith.constant dense<0.000000e+00> : vector<2x96xf32>
    %963 = tpu.matmul %955, %567, %cst_320 {dimension_numbers = #tpu.dot_dimension_numbers<[1], [0], [0], [1], [0, 0, 1, 1], [], []>} : vector<2x32xf32>, vector<32x96xf32>, vector<2x96xf32> -> vector<2x96xf32>
    %964 = vector.extract_strided_slice %959 {offsets = [0, 0], sizes = [2, 32], strides = [1, 1]} : vector<2x96xf32> to vector<2x32xf32>
    %965 = vector.extract_strided_slice %962 {offsets = [0, 0], sizes = [2, 32], strides = [1, 1]} : vector<2x96xf32> to vector<2x32xf32>
    %966 = arith.addf %964, %965 : vector<2x32xf32>
    %967 = arith.negf %966 : vector<2x32xf32>
    %968 = math.exp %967 : vector<2x32xf32>
    %cst_321 = arith.constant 1.000000e+00 : f32
    %969 = vector.broadcast %cst_321 : f32 to vector<2x32xf32>
    %970 = arith.addf %969, %968 : vector<2x32xf32>
    %971 = arith.divf %969, %970 : vector<2x32xf32>
    %972 = vector.extract_strided_slice %959 {offsets = [0, 32], sizes = [2, 32], strides = [1, 1]} : vector<2x96xf32> to vector<2x32xf32>
    %973 = vector.extract_strided_slice %962 {offsets = [0, 32], sizes = [2, 32], strides = [1, 1]} : vector<2x96xf32> to vector<2x32xf32>
    %974 = arith.addf %972, %973 : vector<2x32xf32>
    %975 = arith.negf %974 : vector<2x32xf32>
    %976 = math.exp %975 : vector<2x32xf32>
    %cst_322 = arith.constant 1.000000e+00 : f32
    %977 = vector.broadcast %cst_322 : f32 to vector<2x32xf32>
    %978 = arith.addf %977, %976 : vector<2x32xf32>
    %979 = arith.divf %977, %978 : vector<2x32xf32>
    %980 = vector.extract_strided_slice %959 {offsets = [0, 64], sizes = [2, 32], strides = [1, 1]} : vector<2x96xf32> to vector<2x32xf32>
    %981 = vector.extract_strided_slice %962 {offsets = [0, 64], sizes = [2, 32], strides = [1, 1]} : vector<2x96xf32> to vector<2x32xf32>
    %982 = vector.broadcast %569 : vector<1x32xf32> to vector<2x32xf32>
    %983 = arith.addf %981, %982 : vector<2x32xf32>
    %984 = arith.mulf %971, %983 : vector<2x32xf32>
    %985 = arith.addf %980, %984 : vector<2x32xf32>
    %986 = math.tanh %985 : vector<2x32xf32>
    %cst_323 = arith.constant 1.000000e+00 : f32
    %987 = vector.broadcast %cst_323 : f32 to vector<2x32xf32>
    %988 = arith.subf %987, %979 : vector<2x32xf32>
    %989 = arith.mulf %988, %986 : vector<2x32xf32>
    %990 = arith.mulf %979, %927 : vector<2x32xf32>
    %991 = arith.addf %989, %990 : vector<2x32xf32>
    %992 = vector.extract_strided_slice %961 {offsets = [0, 0], sizes = [2, 32], strides = [1, 1]} : vector<2x96xf32> to vector<2x32xf32>
    %993 = vector.extract_strided_slice %963 {offsets = [0, 0], sizes = [2, 32], strides = [1, 1]} : vector<2x96xf32> to vector<2x32xf32>
    %994 = arith.addf %992, %993 : vector<2x32xf32>
    %995 = arith.negf %994 : vector<2x32xf32>
    %996 = math.exp %995 : vector<2x32xf32>
    %cst_324 = arith.constant 1.000000e+00 : f32
    %997 = vector.broadcast %cst_324 : f32 to vector<2x32xf32>
    %998 = arith.addf %997, %996 : vector<2x32xf32>
    %999 = arith.divf %997, %998 : vector<2x32xf32>
    %1000 = vector.extract_strided_slice %961 {offsets = [0, 32], sizes = [2, 32], strides = [1, 1]} : vector<2x96xf32> to vector<2x32xf32>
    %1001 = vector.extract_strided_slice %963 {offsets = [0, 32], sizes = [2, 32], strides = [1, 1]} : vector<2x96xf32> to vector<2x32xf32>
    %1002 = arith.addf %1000, %1001 : vector<2x32xf32>
    %1003 = arith.negf %1002 : vector<2x32xf32>
    %1004 = math.exp %1003 : vector<2x32xf32>
    %cst_325 = arith.constant 1.000000e+00 : f32
    %1005 = vector.broadcast %cst_325 : f32 to vector<2x32xf32>
    %1006 = arith.addf %1005, %1004 : vector<2x32xf32>
    %1007 = arith.divf %1005, %1006 : vector<2x32xf32>
    %1008 = vector.extract_strided_slice %961 {offsets = [0, 64], sizes = [2, 32], strides = [1, 1]} : vector<2x96xf32> to vector<2x32xf32>
    %1009 = vector.extract_strided_slice %963 {offsets = [0, 64], sizes = [2, 32], strides = [1, 1]} : vector<2x96xf32> to vector<2x32xf32>
    %1010 = vector.broadcast %571 : vector<1x32xf32> to vector<2x32xf32>
    %1011 = arith.addf %1009, %1010 : vector<2x32xf32>
    %1012 = arith.mulf %999, %1011 : vector<2x32xf32>
    %1013 = arith.addf %1008, %1012 : vector<2x32xf32>
    %1014 = math.tanh %1013 : vector<2x32xf32>
    %cst_326 = arith.constant 1.000000e+00 : f32
    %1015 = vector.broadcast %cst_326 : f32 to vector<2x32xf32>
    %1016 = arith.subf %1015, %1007 : vector<2x32xf32>
    %1017 = arith.mulf %1016, %1014 : vector<2x32xf32>
    %1018 = arith.mulf %1007, %955 : vector<2x32xf32>
    %1019 = arith.addf %1017, %1018 : vector<2x32xf32>
    %c12_327 = arith.constant 12 : index
    %c0_328 = arith.constant 0 : index
    %1020 = vector.load %arg18[%c12_327, %c0_328] : memref<16x64xf32, #tpu.memory_space<vmem>>, vector<2x32xf32>
    tpu.vector_store %arg18[%c12_327, %c0_328], %991 {strides = array<i32>} : memref<16x64xf32, #tpu.memory_space<vmem>>, vector<2x32xf32>,
    %c2_329 = arith.constant 2 : index
    %c32_330 = arith.constant 32 : index
    %1021 = vector.load %arg18[%c2_329, %c32_330] : memref<16x64xf32, #tpu.memory_space<vmem>>, vector<2x32xf32>
    tpu.vector_store %arg18[%c2_329, %c32_330], %1019 {strides = array<i32>} : memref<16x64xf32, #tpu.memory_space<vmem>>, vector<2x32xf32>,
    %c0_331 = arith.constant 0 : index
    %c14_332 = arith.constant 14 : index
    %c0_333 = arith.constant 0 : index
    %1022 = vector.load %arg17[%c0_331, %c14_332, %c0_333] : memref<2x16x96xf32, #tpu.memory_space<vmem>>, vector<1x2x96xf32>
    %1023 = vector.shape_cast %1022 : vector<1x2x96xf32> to vector<2x96xf32>
    %c1_334 = arith.constant 1 : index
    %c0_335 = arith.constant 0 : index
    %c0_336 = arith.constant 0 : index
    %1024 = vector.load %arg17[%c1_334, %c0_335, %c0_336] : memref<2x16x96xf32, #tpu.memory_space<vmem>>, vector<1x2x96xf32>
    %1025 = vector.shape_cast %1024 : vector<1x2x96xf32> to vector<2x96xf32>
    %cst_337 = arith.constant dense<0.000000e+00> : vector<2x96xf32>
    %1026 = tpu.matmul %991, %565, %cst_337 {dimension_numbers = #tpu.dot_dimension_numbers<[1], [0], [0], [1], [0, 0, 1, 1], [], []>} : vector<2x32xf32>, vector<32x96xf32>, vector<2x96xf32> -> vector<2x96xf32>
    %cst_338 = arith.constant dense<0.000000e+00> : vector<2x96xf32>
    %1027 = tpu.matmul %1019, %567, %cst_338 {dimension_numbers = #tpu.dot_dimension_numbers<[1], [0], [0], [1], [0, 0, 1, 1], [], []>} : vector<2x32xf32>, vector<32x96xf32>, vector<2x96xf32> -> vector<2x96xf32>
    %1028 = vector.extract_strided_slice %1023 {offsets = [0, 0], sizes = [2, 32], strides = [1, 1]} : vector<2x96xf32> to vector<2x32xf32>
    %1029 = vector.extract_strided_slice %1026 {offsets = [0, 0], sizes = [2, 32], strides = [1, 1]} : vector<2x96xf32> to vector<2x32xf32>
    %1030 = arith.addf %1028, %1029 : vector<2x32xf32>
    %1031 = arith.negf %1030 : vector<2x32xf32>
    %1032 = math.exp %1031 : vector<2x32xf32>
    %cst_339 = arith.constant 1.000000e+00 : f32
    %1033 = vector.broadcast %cst_339 : f32 to vector<2x32xf32>
    %1034 = arith.addf %1033, %1032 : vector<2x32xf32>
    %1035 = arith.divf %1033, %1034 : vector<2x32xf32>
    %1036 = vector.extract_strided_slice %1023 {offsets = [0, 32], sizes = [2, 32], strides = [1, 1]} : vector<2x96xf32> to vector<2x32xf32>
    %1037 = vector.extract_strided_slice %1026 {offsets = [0, 32], sizes = [2, 32], strides = [1, 1]} : vector<2x96xf32> to vector<2x32xf32>
    %1038 = arith.addf %1036, %1037 : vector<2x32xf32>
    %1039 = arith.negf %1038 : vector<2x32xf32>
    %1040 = math.exp %1039 : vector<2x32xf32>
    %cst_340 = arith.constant 1.000000e+00 : f32
    %1041 = vector.broadcast %cst_340 : f32 to vector<2x32xf32>
    %1042 = arith.addf %1041, %1040 : vector<2x32xf32>
    %1043 = arith.divf %1041, %1042 : vector<2x32xf32>
    %1044 = vector.extract_strided_slice %1023 {offsets = [0, 64], sizes = [2, 32], strides = [1, 1]} : vector<2x96xf32> to vector<2x32xf32>
    %1045 = vector.extract_strided_slice %1026 {offsets = [0, 64], sizes = [2, 32], strides = [1, 1]} : vector<2x96xf32> to vector<2x32xf32>
    %1046 = vector.broadcast %569 : vector<1x32xf32> to vector<2x32xf32>
    %1047 = arith.addf %1045, %1046 : vector<2x32xf32>
    %1048 = arith.mulf %1035, %1047 : vector<2x32xf32>
    %1049 = arith.addf %1044, %1048 : vector<2x32xf32>
    %1050 = math.tanh %1049 : vector<2x32xf32>
    %cst_341 = arith.constant 1.000000e+00 : f32
    %1051 = vector.broadcast %cst_341 : f32 to vector<2x32xf32>
    %1052 = arith.subf %1051, %1043 : vector<2x32xf32>
    %1053 = arith.mulf %1052, %1050 : vector<2x32xf32>
    %1054 = arith.mulf %1043, %991 : vector<2x32xf32>
    %1055 = arith.addf %1053, %1054 : vector<2x32xf32>
    %1056 = vector.extract_strided_slice %1025 {offsets = [0, 0], sizes = [2, 32], strides = [1, 1]} : vector<2x96xf32> to vector<2x32xf32>
    %1057 = vector.extract_strided_slice %1027 {offsets = [0, 0], sizes = [2, 32], strides = [1, 1]} : vector<2x96xf32> to vector<2x32xf32>
    %1058 = arith.addf %1056, %1057 : vector<2x32xf32>
    %1059 = arith.negf %1058 : vector<2x32xf32>
    %1060 = math.exp %1059 : vector<2x32xf32>
    %cst_342 = arith.constant 1.000000e+00 : f32
    %1061 = vector.broadcast %cst_342 : f32 to vector<2x32xf32>
    %1062 = arith.addf %1061, %1060 : vector<2x32xf32>
    %1063 = arith.divf %1061, %1062 : vector<2x32xf32>
    %1064 = vector.extract_strided_slice %1025 {offsets = [0, 32], sizes = [2, 32], strides = [1, 1]} : vector<2x96xf32> to vector<2x32xf32>
    %1065 = vector.extract_strided_slice %1027 {offsets = [0, 32], sizes = [2, 32], strides = [1, 1]} : vector<2x96xf32> to vector<2x32xf32>
    %1066 = arith.addf %1064, %1065 : vector<2x32xf32>
    %1067 = arith.negf %1066 : vector<2x32xf32>
    %1068 = math.exp %1067 : vector<2x32xf32>
    %cst_343 = arith.constant 1.000000e+00 : f32
    %1069 = vector.broadcast %cst_343 : f32 to vector<2x32xf32>
    %1070 = arith.addf %1069, %1068 : vector<2x32xf32>
    %1071 = arith.divf %1069, %1070 : vector<2x32xf32>
    %1072 = vector.extract_strided_slice %1025 {offsets = [0, 64], sizes = [2, 32], strides = [1, 1]} : vector<2x96xf32> to vector<2x32xf32>
    %1073 = vector.extract_strided_slice %1027 {offsets = [0, 64], sizes = [2, 32], strides = [1, 1]} : vector<2x96xf32> to vector<2x32xf32>
    %1074 = vector.broadcast %571 : vector<1x32xf32> to vector<2x32xf32>
    %1075 = arith.addf %1073, %1074 : vector<2x32xf32>
    %1076 = arith.mulf %1063, %1075 : vector<2x32xf32>
    %1077 = arith.addf %1072, %1076 : vector<2x32xf32>
    %1078 = math.tanh %1077 : vector<2x32xf32>
    %cst_344 = arith.constant 1.000000e+00 : f32
    %1079 = vector.broadcast %cst_344 : f32 to vector<2x32xf32>
    %1080 = arith.subf %1079, %1071 : vector<2x32xf32>
    %1081 = arith.mulf %1080, %1078 : vector<2x32xf32>
    %1082 = arith.mulf %1071, %1019 : vector<2x32xf32>
    %1083 = arith.addf %1081, %1082 : vector<2x32xf32>
    %c14_345 = arith.constant 14 : index
    %c0_346 = arith.constant 0 : index
    %1084 = vector.load %arg18[%c14_345, %c0_346] : memref<16x64xf32, #tpu.memory_space<vmem>>, vector<2x32xf32>
    tpu.vector_store %arg18[%c14_345, %c0_346], %1055 {strides = array<i32>} : memref<16x64xf32, #tpu.memory_space<vmem>>, vector<2x32xf32>,
    %c0_347 = arith.constant 0 : index
    %c32_348 = arith.constant 32 : index
    %1085 = vector.load %arg18[%c0_347, %c32_348] : memref<16x64xf32, #tpu.memory_space<vmem>>, vector<2x32xf32>
    tpu.vector_store %arg18[%c0_347, %c32_348], %1083 {strides = array<i32>} : memref<16x64xf32, #tpu.memory_space<vmem>>, vector<2x32xf32>,
    %c0_349 = arith.constant 0 : index
    %c0_350 = arith.constant 0 : index
    %1086 = vector.load %arg18[%c0_349, %c0_350] : memref<16x64xf32, #tpu.memory_space<vmem>>, vector<16x64xf32>
    %cst_351 = arith.constant 0.000000e+00 : f32
    %1087 = vector.broadcast %cst_351 : f32 to vector<16x64xf32>
    %1088 = arith.cmpf oge, %1086, %1087 : vector<16x64xf32>
    %cst_352 = arith.constant 0.00999999977 : f32
    %1089 = vector.broadcast %cst_352 : f32 to vector<16x64xf32>
    %1090 = arith.mulf %1089, %1086 : vector<16x64xf32>
    %1091 = arith.select %1088, %1086, %1090 : vector<16x64xi1>, vector<16x64xf32>
    %c0_353 = arith.constant 0 : index
    %c0_354 = arith.constant 0 : index
    %1092 = vector.load %arg10[%c0_353, %c0_354] : memref<64x32xf32, #tpu.memory_space<vmem>>, vector<64x32xf32>
    %cst_355 = arith.constant dense<0.000000e+00> : vector<16x32xf32>
    %1093 = tpu.matmul %1091, %1092, %cst_355 {dimension_numbers = #tpu.dot_dimension_numbers<[1], [0], [0], [1], [0, 0, 1, 1], [], []>} : vector<16x64xf32>, vector<64x32xf32>, vector<16x32xf32> -> vector<16x32xf32>
    %c0_356 = arith.constant 0 : index
    %c0_357 = arith.constant 0 : index
    %1094 = vector.load %arg11[%c0_356, %c0_357] : memref<1x32xf32, #tpu.memory_space<vmem>>, vector<1x32xf32>
    %1095 = vector.broadcast %1094 : vector<1x32xf32> to vector<16x32xf32>
    %1096 = arith.addf %1093, %1095 : vector<16x32xf32>
    %1097 = arith.addf %0, %1096 : vector<16x32xf32>
    %cst_358 = arith.constant 0.000000e+00 : f32
    %1098 = vector.broadcast %cst_358 : f32 to vector<16x32xf32>
    %1099 = arith.cmpf oge, %1097, %1098 : vector<16x32xf32>
    %cst_359 = arith.constant 0.00999999977 : f32
    %1100 = vector.broadcast %cst_359 : f32 to vector<16x32xf32>
    %1101 = arith.mulf %1100, %1097 : vector<16x32xf32>
    %1102 = arith.select %1099, %1097, %1101 : vector<16x32xi1>, vector<16x32xf32>
    %c0_360 = arith.constant 0 : index
    %c0_361 = arith.constant 0 : index
    %1103 = vector.load %arg12[%c0_360, %c0_361] : memref<1x32xf32, #tpu.memory_space<vmem>>, vector<1x32xf32>
    %1104 = vector.broadcast %1103 : vector<1x32xf32> to vector<16x32xf32>
    %1105 = arith.mulf %1102, %1104 : vector<16x32xf32>
    %cst_362 = arith.constant dense<0.000000e+00> : vector<16xf32>
    %1106 = vector.multi_reduction <add>, %1105, %cst_362 [1] : vector<16x32xf32> to vector<16xf32>
    %1107 = vector.shape_cast %1106 : vector<16xf32> to vector<16x1xf32>
    %c0_363 = arith.constant 0 : index
    %c0_364 = arith.constant 0 : index
    %1108 = vector.load %arg13[%c0_363, %c0_364] : memref<1x1xf32, #tpu.memory_space<vmem>>, vector<1x1xf32>
    %1109 = vector.broadcast %1108 : vector<1x1xf32> to vector<16x1xf32>
    %1110 = arith.addf %1107, %1109 : vector<16x1xf32>
    %c0_365 = arith.constant 0 : index
    %c0_366 = arith.constant 0 : index
    %1111 = vector.load %arg1[%c0_365, %c0_366] : memref<16x1xf32, #tpu.memory_space<vmem>>, vector<16x1xf32>
    %cst_367 = arith.constant 1.000000e+00 : f32
    %1112 = vector.broadcast %cst_367 : f32 to vector<16x1xf32>
    %1113 = arith.subf %1112, %1111 : vector<16x1xf32>
    %1114 = arith.mulf %1110, %1113 : vector<16x1xf32>
    %cst_368 = arith.constant 1.000000e+30 : f32
    %1115 = vector.broadcast %cst_368 : f32 to vector<16x1xf32>
    %1116 = arith.mulf %1115, %1111 : vector<16x1xf32>
    %1117 = arith.subf %1114, %1116 : vector<16x1xf32>
    %c0_369 = arith.constant 0 : index
    %c0_370 = arith.constant 0 : index
    %1118 = vector.load %arg14[%c0_369, %c0_370] : memref<16x1xf32, #tpu.memory_space<vmem>>, vector<16x1xf32>
    tpu.vector_store %arg14[%c0_369, %c0_370], %1117 {strides = array<i32>} : memref<16x1xf32, #tpu.memory_space<vmem>>, vector<16x1xf32>,
    return
  }
}

</mosaic_0001>

<llo_original>
// kernel: pooler_start_logits_gru.1
$region0: #{pooler_start_logits_gru.1}
  #allocation0 [shape = 'u32[]', space=smem, size = 0x4, offset = 0x4, fixed_abs, tag = 'smem constant byte address 0x4 - core index']
  #allocation1 [shape = 'u32[144,128]{1,0:T(1,128)}', space=vmem, size = 0x12000, scoped, tag = 'internal scratch']
  #allocation2 [shape = 'f32[2,16,96]{2,1,0:T(8,128)}', space=vmem, size = 0x4000, scoped, tag = 'scratch operand']
  #allocation3 [shape = 'f32[16,64]{1,0:T(8,128)}', space=vmem, size = 0x2000, scoped, tag = 'scratch operand']
  #allocation4 [shape = 'f32[2,16,96]{2,1,0:T(8,128)}', space=vmem, size = 0x4000, scoped, tag = 'scratch operand']
  #allocation5 [shape = 'f32[16,64]{1,0:T(8,128)}', space=vmem, size = 0x2000, scoped, tag = 'scratch operand']
  #allocation6 [shape = 'f32[1,1]{1,0:T(1,128)S(1)}', space=vmem, size = 0x200, scoped, tag = 'scoped memory for pooler_start_logits_gru.1']
  %s0 = inlined_call_operand.vmem [shape: f32[16,32], index: 0, kind: input, shape index: {}]
  %s1 = inlined_call_operand.vmem [shape: f32[16,1], index: 1, kind: input, shape index: {}]
  %s2 = inlined_call_operand.vmem [shape: f32[2,32,96], index: 2, kind: input, shape index: {}]
  %s3 = inlined_call_operand.hbm [shape: f32[2,32,96], index: 3, kind: input, shape index: {}]
  %s4 = inlined_call_operand.vmem [shape: f32[2,1,96], index: 4, kind: input, shape index: {}]
  %s5 = inlined_call_operand.vmem [shape: f32[2,1,32], index: 5, kind: input, shape index: {}]
  %s6 = inlined_call_operand.vmem [shape: f32[2,64,96], index: 6, kind: input, shape index: {}]
  %s7 = inlined_call_operand.hbm [shape: f32[2,32,96], index: 7, kind: input, shape index: {}]
  %s8 = inlined_call_operand.vmem [shape: f32[2,1,96], index: 8, kind: input, shape index: {}]
  %s9 = inlined_call_operand.vmem [shape: f32[2,1,32], index: 9, kind: input, shape index: {}]
  %s10 = inlined_call_operand.vmem [shape: f32[64,32], index: 10, kind: input, shape index: {}]
  %s11 = inlined_call_operand.vmem [shape: f32[1,32], index: 11, kind: input, shape index: {}]
  %s12 = inlined_call_operand.vmem [shape: f32[1,32], index: 12, kind: input, shape index: {}]
  %s13 = inlined_call_operand.<no memory space> [shape: f32[1,1], index: 13, kind: input, shape index: {}]
  %s14 = inlined_call_operand.vmem [shape: f32[16,1], index: 14, kind: output, shape index: {}]
  %s15 = sld [smem:[#allocation0]]
  $region74: #{pooler_start_logits_gru.1} parent=0
    _
  %s17 = ssub.s32 1, %s15
  %s18 = scalar_select 0, %s17, %s15
  %v19 = vstv %s13
  %20 = vst [vmem:[#allocation6] sm:$0x1] %v19
  $region1: #{pooler_start_logits_gru.1} parent=0
    #allocation7 [shape = 'u8[32768]{0}', space=vmem, size = 0x8000, scoped, tag = 'input window, operand 3, single buffered']
    #allocation8 [shape = 's32[1]{0}', space=sflag, size = 0x4, scoped, tag = 'scoped memory for pooler_start_logits_gru.1']
    #allocation9 [shape = 'u8[32768]{0}', space=vmem, size = 0x8000, scoped, tag = 'input window, operand 7, single buffered']
    #allocation10 [shape = 's32[1]{0}', space=sflag, size = 0x4, scoped, tag = 'scoped memory for pooler_start_logits_gru.1']
    %21 = vsyncpa [#allocation8], 0
    %22 = vsyncpa [#allocation10], 0
    // Predicated region
    $region2: #{pooler_start_logits_gru.1} parent=1 // pred_check
      _
    $region3: #{pooler_start_logits_gru.1} parent=1 // pred_check_branch
      %24 = sbr.rel (0) target = $region5
    $region4: #{pooler_start_logits_gru.1} parent=1 // pred_region
      _
    $region5: #{pooler_start_logits_gru.1} parent=1 // pred_fallthru
      _
    // Predicated region
    $region6: #{pooler_start_logits_gru.1} parent=1 // pred_check
      _
    $region7: #{pooler_start_logits_gru.1} parent=1 // pred_check_branch
      %26 = sbr.rel (0) target = $region9
    $region8: #{pooler_start_logits_gru.1} parent=1 // pred_region
      _
    $region9: #{pooler_start_logits_gru.1} parent=1 // pred_fallthru
      _
    // Predicated region
    $region10: #{pooler_start_logits_gru.1} parent=1 // pred_check
      _
    $region11: #{pooler_start_logits_gru.1} parent=1 // pred_check_branch
      %28 = sbr.rel (0) target = $region13
    $region12: #{pooler_start_logits_gru.1} parent=1 // pred_region
      _
    $region13: #{pooler_start_logits_gru.1} parent=1 // pred_fallthru
      _
    // Predicated region
    $region14: #{pooler_start_logits_gru.1} parent=1 // pred_check
      _
    $region15: #{pooler_start_logits_gru.1} parent=1 // pred_check_branch
      %30 = sbr.rel (0) target = $region17
    $region16: #{pooler_start_logits_gru.1} parent=1 // pred_region
      %s32 = ssub.s32 1024, 1024
      %33 = vsyncadd [#allocation8], %s32
      %s34 = sshll.u32 [#allocation7], 4
      %s35 = int_to_ptr.vmem [resolvable:$true] %s34
      %40 = dma.hbm_to_vmem [thread:$0]  %s3, 1024, %s35, [#allocation8], 128, 128, 8
    $region17: #{pooler_start_logits_gru.1} parent=1 // pred_fallthru
      _
    // Predicated region
    $region18: #{pooler_start_logits_gru.1} parent=1 // pred_check
      _
    $region19: #{pooler_start_logits_gru.1} parent=1 // pred_check_branch
      %42 = sbr.rel (0) target = $region21
    $region20: #{pooler_start_logits_gru.1} parent=1 // pred_region
      _
    $region21: #{pooler_start_logits_gru.1} parent=1 // pred_fallthru
      _
    // Predicated region
    $region22: #{pooler_start_logits_gru.1} parent=1 // pred_check
      _
    $region23: #{pooler_start_logits_gru.1} parent=1 // pred_check_branch
      %44 = sbr.rel (0) target = $region25
    $region24: #{pooler_start_logits_gru.1} parent=1 // pred_region
      _
    $region25: #{pooler_start_logits_gru.1} parent=1 // pred_fallthru
      _
    // Predicated region
    $region26: #{pooler_start_logits_gru.1} parent=1 // pred_check
      _
    $region27: #{pooler_start_logits_gru.1} parent=1 // pred_check_branch
      %46 = sbr.rel (0) target = $region29
    $region28: #{pooler_start_logits_gru.1} parent=1 // pred_region
      _
    $region29: #{pooler_start_logits_gru.1} parent=1 // pred_fallthru
      _
    // Predicated region
    $region30: #{pooler_start_logits_gru.1} parent=1 // pred_check
      _
    $region31: #{pooler_start_logits_gru.1} parent=1 // pred_check_branch
      %48 = sbr.rel (0) target = $region33
    $region32: #{pooler_start_logits_gru.1} parent=1 // pred_region
      %s50 = ssub.s32 1024, 1024
      %51 = vsyncadd [#allocation10], %s50
      %s52 = sshll.u32 [#allocation9], 4
      %s53 = int_to_ptr.vmem [resolvable:$true] %s52
      %58 = dma.hbm_to_vmem [thread:$0]  %s7, 1024, %s53, [#allocation10], 128, 128, 8
    $region33: #{pooler_start_logits_gru.1} parent=1 // pred_fallthru
      _
    // Predicated region
    $region34: #{pooler_start_logits_gru.1} parent=1 // pred_check
      _
    $region35: #{pooler_start_logits_gru.1} parent=1 // pred_check_branch
      %60 = sbr.rel (0) target = $region37
    $region36: #{pooler_start_logits_gru.1} parent=1 // pred_region
      _
    $region37: #{pooler_start_logits_gru.1} parent=1 // pred_fallthru
      _
    // Predicated region
    $region38: #{pooler_start_logits_gru.1} parent=1 // pred_check
      _
    $region39: #{pooler_start_logits_gru.1} parent=1 // pred_check_branch
      %62 = sbr.rel (0) target = $region41
    $region40: #{pooler_start_logits_gru.1} parent=1 // pred_region
      _
    $region41: #{pooler_start_logits_gru.1} parent=1 // pred_fallthru
      _
    // Predicated region
    $region42: #{pooler_start_logits_gru.1} parent=1 // pred_check
      _
    $region43: #{pooler_start_logits_gru.1} parent=1 // pred_check_branch
      %64 = sbr.rel (0) target = $region45
    $region44: #{pooler_start_logits_gru.1} parent=1 // pred_region
      _
    $region45: #{pooler_start_logits_gru.1} parent=1 // pred_fallthru
      _
    // Predicated region
    $region46: #{pooler_start_logits_gru.1} parent=1 // pred_check
      _
    $region47: #{pooler_start_logits_gru.1} parent=1 // pred_check_branch
      %66 = sbr.rel (0) target = $region49
    $region48: #{pooler_start_logits_gru.1} parent=1 // pred_region
      _
    $region49: #{pooler_start_logits_gru.1} parent=1 // pred_fallthru
      _
    // Predicated region
    $region50: #{pooler_start_logits_gru.1} parent=1 // pred_check
      _
    $region51: #{pooler_start_logits_gru.1} parent=1 // pred_check_branch
      %68 = sbr.rel (0) target = $region53
    $region52: #{pooler_start_logits_gru.1} parent=1 // pred_region
      _
    $region53: #{pooler_start_logits_gru.1} parent=1 // pred_fallthru
      _
    // Predicated region
    $region54: #{pooler_start_logits_gru.1} parent=1 // pred_check
      _
    $region55: #{pooler_start_logits_gru.1} parent=1 // pred_check_branch
      %70 = sbr.rel (0) target = $region57
    $region56: #{pooler_start_logits_gru.1} parent=1 // pred_region
      _
    $region57: #{pooler_start_logits_gru.1} parent=1 // pred_fallthru
      _
    // Predicated region
    $region58: #{pooler_start_logits_gru.1} parent=1 // pred_check
      _
    $region59: #{pooler_start_logits_gru.1} parent=1 // pred_check_branch
      %72 = sbr.rel (0) target = $region61
    $region60: #{pooler_start_logits_gru.1} parent=1 // pred_region
      %73 = dma.done [#allocation8], 1024
    $region61: #{pooler_start_logits_gru.1} parent=1 // pred_fallthru
      _
    // Predicated region
    $region62: #{pooler_start_logits_gru.1} parent=1 // pred_check
      _
    $region63: #{pooler_start_logits_gru.1} parent=1 // pred_check_branch
      %75 = sbr.rel (0) target = $region65
    $region64: #{pooler_start_logits_gru.1} parent=1 // pred_region
      %76 = dma.done [#allocation10], 1024
    $region65: #{pooler_start_logits_gru.1} parent=1 // pred_fallthru
      _
    %v77 = vld [vmem:[%s0] sm:$0xff]
    %v78 = vld [vmem:[%s0 + $0x8] sm:$0xff]
    %v79 = vld [vmem:[%s2] sm:$0xff]
    %v80 = vld [vmem:[%s2 + $0x8] sm:$0xff]
    %v81 = vld [vmem:[%s2 + $0x10] sm:$0xff]
    %v82 = vld [vmem:[%s2 + $0x18] sm:$0xff]
    %v83 = vld [vmem:[%s4] sm:$0x1]
    %v85 = vlaneseq
    %v86 = vshrl.u32 %v85, 7
    %v87 = vsub.s32 0, %v86
    %v88 = vrot.slane %v83, %v87
    %vm90 = vcmask 261120
    %v92 = vsel %vm90, %v77, 0
    %v95 = vsel %vm90, %v78, 0
    %97 = vmatprep.subr.mxu0 0.0
    %98 = vmatpush1.msra.mxu0 %v79
    %99 = vmatprep.subr.mxu0 0.0
    %100 = vmatpush1.msra.mxu0 %v80
    %101 = vmatprep.subr.mxu0 0.0
    %102 = vmatpush1.msra.mxu0 %v81
    %103 = vmatprep.subr.mxu0 0.0
    %104 = vmatpush1.msra.mxu0 %v82
    %105 = vmatprep.subr.mxu0 0.0
    %106 = vmatpush1.msra.mxu0 0.0
    %107 = vmatprep.subr.mxu0 0.0
    %108 = vmatpush1.msra.mxu0 0.0
    %109 = vmatprep.subr.mxu0 0.0
    %110 = vmatpush1.msra.mxu0 0.0
    %111 = vmatprep.subr.mxu0 0.0
    %112 = vmatpush1.msra.mxu0 0.0
    %113 = vmatprep.subr.mxu0 0.0
    %114 = vmatpush1.msra.mxu0 0.0
    %115 = vmatprep.subr.mxu0 0.0
    %116 = vmatpush1.msra.mxu0 0.0
    %117 = vmatprep.subr.mxu0 0.0
    %118 = vmatpush1.msra.mxu0 0.0
    %119 = vmatprep.subr.mxu0 0.0
    %120 = vmatpush1.msra.mxu0 0.0
    %121 = vmatprep.subr.mxu0 0.0
    %122 = vmatpush1.msra.mxu0 0.0
    %123 = vmatprep.subr.mxu0 0.0
    %124 = vmatpush1.msra.mxu0 0.0
    %125 = vmatprep.subr.mxu0 0.0
    %126 = vmatpush1.msra.mxu0 0.0
    %127 = vmatprep.subr.mxu0 0.0
    %128 = vmatpush1.msra.mxu0 0.0
    %129 = vmatprep.subr.mxu0 0.0
    %130 = vmatpush1.msra.mxu0 0.0
    %131 = vmatprep.subr.mxu0 0.0
    %132 = vmatpush1.msra.mxu0 0.0
    %133 = vmatprep.subr.mxu0 0.0
    %134 = vmatpush1.msra.mxu0 0.0
    %135 = vmatprep.subr.mxu0 0.0
    %136 = vmatpush1.msra.mxu0 0.0
    %137 = vmatprep.subr.mxu0 0.0
    %138 = vmatpush1.msra.mxu0 0.0
    %139 = vmatprep.subr.mxu0 0.0
    %140 = vmatpush1.msra.mxu0 0.0
    %141 = vmatprep.subr.mxu0 0.0
    %142 = vmatpush1.msra.mxu0 0.0
    %143 = vmatprep.subr.mxu0 0.0
    %144 = vmatpush1.msra.mxu0 0.0
    %145 = vmatprep.subr.mxu0 0.0
    %146 = vmatpush1.msra.mxu0 0.0
    %147 = vmatprep.subr.mxu0 0.0
    %148 = vmatpush1.msra.mxu0 0.0
    %149 = vmatprep.subr.mxu0 0.0
    %150 = vmatpush1.msra.mxu0 0.0
    %151 = vmatprep.subr.mxu0 0.0
    %152 = vmatpush1.msra.mxu0 0.0
    %153 = vmatprep.subr.mxu0 0.0
    %154 = vmatpush1.msra.mxu0 0.0
    %155 = vmatprep.subr.mxu0 0.0
    %156 = vmatpush1.msra.mxu0 0.0
    %157 = vmatprep.subr.mxu0 0.0
    %158 = vmatpush1.msra.mxu0 0.0
    %159 = vmatprep.subr.mxu0 0.0
    %160 = vmatpush1.msra.mxu0 0.0
    %161 = vmatprep.mubr.f32.mxu0 0.0
    %162 = vmatmul.mubr.f32.gmra.mrb[0].mxu0 %v92
    %v163 = vpop.f32.mrb[0].mxu0
    %v164 = vadd.f32 %v88, %v163
    %v165 = vpop.f32.mrb[0].mxu0
    %166 = vmatprep.mubr.f32.mxu0 0.0
    %167 = vmatmul.mubr.f32.gmra.mrb[0].mxu0 %v95
    %v168 = vpop.f32.mrb[0].mxu0
    %v169 = vadd.f32 %v88, %v168
    %v170 = vpop.f32.mrb[0].mxu0
    %171 = vdwg.mxu0
    %vm172 = vcmask 785408
    %173 = vst.msk [vmem:[#allocation2] sm:$0xff] %vm172, %v164
    %174 = vst.msk [vmem:[#allocation2 + $0x8] sm:$0xff] %vm172, %v169
    %s175 = scalar_lea.vmem %s2, 32
    %v176 = vld [vmem:[%s175] sm:$0xff]
    %v177 = vld [vmem:[%s175 + $0x8] sm:$0xff]
    %v178 = vld [vmem:[%s175 + $0x10] sm:$0xff]
    %v179 = vld [vmem:[%s175 + $0x18] sm:$0xff]
    %s180 = scalar_lea.vmem %s4, 1
    %v181 = vld [vmem:[%s180] sm:$0x1]
    %v183 = vlaneseq
    %v184 = vshrl.u32 %v183, 7
    %v185 = vsub.s32 0, %v184
    %v186 = vrot.slane %v181, %v185
    %188 = vmatprep.subr.mxu0 0.0
    %189 = vmatpush1.msra.mxu0 %v176
    %190 = vmatprep.subr.mxu0 0.0
    %191 = vmatpush1.msra.mxu0 %v177
    %192 = vmatprep.subr.mxu0 0.0
    %193 = vmatpush1.msra.mxu0 %v178
    %194 = vmatprep.subr.mxu0 0.0
    %195 = vmatpush1.msra.mxu0 %v179
    %196 = vmatprep.subr.mxu0 0.0
    %197 = vmatpush1.msra.mxu0 0.0
    %198 = vmatprep.subr.mxu0 0.0
    %199 = vmatpush1.msra.mxu0 0.0
    %200 = vmatprep.subr.mxu0 0.0
    %201 = vmatpush1.msra.mxu0 0.0
    %202 = vmatprep.subr.mxu0 0.0
    %203 = vmatpush1.msra.mxu0 0.0
    %204 = vmatprep.subr.mxu0 0.0
    %205 = vmatpush1.msra.mxu0 0.0
    %206 = vmatprep.subr.mxu0 0.0
    %207 = vmatpush1.msra.mxu0 0.0
    %208 = vmatprep.subr.mxu0 0.0
    %209 = vmatpush1.msra.mxu0 0.0
    %210 = vmatprep.subr.mxu0 0.0
    %211 = vmatpush1.msra.mxu0 0.0
    %212 = vmatprep.subr.mxu0 0.0
    %213 = vmatpush1.msra.mxu0 0.0
    %214 = vmatprep.subr.mxu0 0.0
    %215 = vmatpush1.msra.mxu0 0.0
    %216 = vmatprep.subr.mxu0 0.0
    %217 = vmatpush1.msra.mxu0 0.0
    %218 = vmatprep.subr.mxu0 0.0
    %219 = vmatpush1.msra.mxu0 0.0
    %220 = vmatprep.subr.mxu0 0.0
    %221 = vmatpush1.msra.mxu0 0.0
    %222 = vmatprep.subr.mxu0 0.0
    %223 = vmatpush1.msra.mxu0 0.0
    %224 = vmatprep.subr.mxu0 0.0
    %225 = vmatpush1.msra.mxu0 0.0
    %226 = vmatprep.subr.mxu0 0.0
    %227 = vmatpush1.msra.mxu0 0.0
    %228 = vmatprep.subr.mxu0 0.0
    %229 = vmatpush1.msra.mxu0 0.0
    %230 = vmatprep.subr.mxu0 0.0
    %231 = vmatpush1.msra.mxu0 0.0
    %232 = vmatprep.subr.mxu0 0.0
    %233 = vmatpush1.msra.mxu0 0.0
    %234 = vmatprep.subr.mxu0 0.0
    %235 = vmatpush1.msra.mxu0 0.0
    %236 = vmatprep.subr.mxu0 0.0
    %237 = vmatpush1.msra.mxu0 0.0
    %238 = vmatprep.subr.mxu0 0.0
    %239 = vmatpush1.msra.mxu0 0.0
    %240 = vmatprep.subr.mxu0 0.0
    %241 = vmatpush1.msra.mxu0 0.0
    %242 = vmatprep.subr.mxu0 0.0
    %243 = vmatpush1.msra.mxu0 0.0
    %244 = vmatprep.subr.mxu0 0.0
    %245 = vmatpush1.msra.mxu0 0.0
    %246 = vmatprep.subr.mxu0 0.0
    %247 = vmatpush1.msra.mxu0 0.0
    %248 = vmatprep.subr.mxu0 0.0
    %249 = vmatpush1.msra.mxu0 0.0
    %250 = vmatprep.subr.mxu0 0.0
    %251 = vmatpush1.msra.mxu0 0.0
    %252 = vmatprep.mubr.f32.mxu0 0.0
    %253 = vmatmul.mubr.f32.gmra.mrb[0].mxu0 %v92
    %v254 = vpop.f32.mrb[0].mxu0
    %v255 = vadd.f32 %v186, %v254
    %v256 = vpop.f32.mrb[0].mxu0
    %257 = vmatprep.mubr.f32.mxu0 0.0
    %258 = vmatmul.mubr.f32.gmra.mrb[0].mxu0 %v95
    %v259 = vpop.f32.mrb[0].mxu0
    %v260 = vadd.f32 %v186, %v259
    %v261 = vpop.f32.mrb[0].mxu0
    %262 = vdwg.mxu0
    %s263 = scalar_lea.vmem [#allocation2], 16
    %264 = vst.msk [vmem:[%s263] sm:$0xff] %vm172, %v255
    %265 = vst.msk [vmem:[%s263 + $0x8] sm:$0xff] %vm172, %v260
    %v266 = vld [vmem:[#allocation7] sm:$0xff]
    %v267 = vld [vmem:[#allocation7 + $0x8] sm:$0xff]
    %v268 = vld [vmem:[#allocation7 + $0x10] sm:$0xff]
    %v269 = vld [vmem:[#allocation7 + $0x18] sm:$0xff]
    %s270 = scalar_lea.vmem [#allocation7], 32
    %v271 = vld [vmem:[%s270] sm:$0xff]
    %v272 = vld [vmem:[%s270 + $0x8] sm:$0xff]
    %v273 = vld [vmem:[%s270 + $0x10] sm:$0xff]
    %v274 = vld [vmem:[%s270 + $0x18] sm:$0xff]
    %v275 = vld [vmem:[%s5] sm:$0x1]
    %s276 = scalar_lea.vmem %s5, 1
    %v277 = vld [vmem:[%s276] sm:$0x1]
    %v278 = vld [vmem:[#allocation2] sm:$0x3]
    %v279 = vld [vmem:[%s263 + $0xe] sm:$0x3]
    %v281 = vsel %vm90, 0.0, 0
    %283 = vmatprep.subr.mxu0 0.0
    %284 = vmatpush1.msra.mxu0 %v266
    %285 = vmatprep.subr.mxu0 0.0
    %286 = vmatpush1.msra.mxu0 %v267
    %287 = vmatprep.subr.mxu0 0.0
    %288 = vmatpush1.msra.mxu0 %v268
    %289 = vmatprep.subr.mxu0 0.0
    %290 = vmatpush1.msra.mxu0 %v269
    %291 = vmatprep.subr.mxu0 0.0
    %292 = vmatpush1.msra.mxu0 0.0
    %293 = vmatprep.subr.mxu0 0.0
    %294 = vmatpush1.msra.mxu0 0.0
    %295 = vmatprep.subr.mxu0 0.0
    %296 = vmatpush1.msra.mxu0 0.0
    %297 = vmatprep.subr.mxu0 0.0
    %298 = vmatpush1.msra.mxu0 0.0
    %299 = vmatprep.subr.mxu0 0.0
    %300 = vmatpush1.msra.mxu0 0.0
    %301 = vmatprep.subr.mxu0 0.0
    %302 = vmatpush1.msra.mxu0 0.0
    %303 = vmatprep.subr.mxu0 0.0
    %304 = vmatpush1.msra.mxu0 0.0
    %305 = vmatprep.subr.mxu0 0.0
    %306 = vmatpush1.msra.mxu0 0.0
    %307 = vmatprep.subr.mxu0 0.0
    %308 = vmatpush1.msra.mxu0 0.0
    %309 = vmatprep.subr.mxu0 0.0
    %310 = vmatpush1.msra.mxu0 0.0
    %311 = vmatprep.subr.mxu0 0.0
    %312 = vmatpush1.msra.mxu0 0.0
    %313 = vmatprep.subr.mxu0 0.0
    %314 = vmatpush1.msra.mxu0 0.0
    %315 = vmatprep.subr.mxu0 0.0
    %316 = vmatpush1.msra.mxu0 0.0
    %317 = vmatprep.subr.mxu0 0.0
    %318 = vmatpush1.msra.mxu0 0.0
    %319 = vmatprep.subr.mxu0 0.0
    %320 = vmatpush1.msra.mxu0 0.0
    %321 = vmatprep.subr.mxu0 0.0
    %322 = vmatpush1.msra.mxu0 0.0
    %323 = vmatprep.subr.mxu0 0.0
    %324 = vmatpush1.msra.mxu0 0.0
    %325 = vmatprep.subr.mxu0 0.0
    %326 = vmatpush1.msra.mxu0 0.0
    %327 = vmatprep.subr.mxu0 0.0
    %328 = vmatpush1.msra.mxu0 0.0
    %329 = vmatprep.subr.mxu0 0.0
    %330 = vmatpush1.msra.mxu0 0.0
    %331 = vmatprep.subr.mxu0 0.0
    %332 = vmatpush1.msra.mxu0 0.0
    %333 = vmatprep.subr.mxu0 0.0
    %334 = vmatpush1.msra.mxu0 0.0
    %335 = vmatprep.subr.mxu0 0.0
    %336 = vmatpush1.msra.mxu0 0.0
    %337 = vmatprep.subr.mxu0 0.0
    %338 = vmatpush1.msra.mxu0 0.0
    %339 = vmatprep.subr.mxu0 0.0
    %340 = vmatpush1.msra.mxu0 0.0
    %341 = vmatprep.subr.mxu0 0.0
    %342 = vmatpush1.msra.mxu0 0.0
    %343 = vmatprep.subr.mxu0 0.0
    %344 = vmatpush1.msra.mxu0 0.0
    %345 = vmatprep.subr.mxu0 0.0
    %346 = vmatpush1.msra.mxu0 0.0
    %347 = vmatprep.mubr.f32.mxu0 0.0
    %348 = vmatmul.mubr.f32.gmra.mrb[0].mxu0 %v281
    %v349 = vpop.f32.mrb[0].mxu0
    %v350 = vadd.f32 0.0, %v349
    %v351 = vpop.f32.mrb[0].mxu0
    %352 = vdwg.mxu0
    %353 = vmatprep.subr.mxu0 0.0
    %354 = vmatpush1.msra.mxu0 %v271
    %355 = vmatprep.subr.mxu0 0.0
    %356 = vmatpush1.msra.mxu0 %v272
    %357 = vmatprep.subr.mxu0 0.0
    %358 = vmatpush1.msra.mxu0 %v273
    %359 = vmatprep.subr.mxu0 0.0
    %360 = vmatpush1.msra.mxu0 %v274
    %361 = vmatprep.subr.mxu0 0.0
    %362 = vmatpush1.msra.mxu0 0.0
    %363 = vmatprep.subr.mxu0 0.0
    %364 = vmatpush1.msra.mxu0 0.0
    %365 = vmatprep.subr.mxu0 0.0
    %366 = vmatpush1.msra.mxu0 0.0
    %367 = vmatprep.subr.mxu0 0.0
    %368 = vmatpush1.msra.mxu0 0.0
    %369 = vmatprep.subr.mxu0 0.0
    %370 = vmatpush1.msra.mxu0 0.0
    %371 = vmatprep.subr.mxu0 0.0
    %372 = vmatpush1.msra.mxu0 0.0
    %373 = vmatprep.subr.mxu0 0.0
    %374 = vmatpush1.msra.mxu0 0.0
    %375 = vmatprep.subr.mxu0 0.0
    %376 = vmatpush1.msra.mxu0 0.0
    %377 = vmatprep.subr.mxu0 0.0
    %378 = vmatpush1.msra.mxu0 0.0
    %379 = vmatprep.subr.mxu0 0.0
    %380 = vmatpush1.msra.mxu0 0.0
    %381 = vmatprep.subr.mxu0 0.0
    %382 = vmatpush1.msra.mxu0 0.0
    %383 = vmatprep.subr.mxu0 0.0
    %384 = vmatpush1.msra.mxu0 0.0
    %385 = vmatprep.subr.mxu0 0.0
    %386 = vmatpush1.msra.mxu0 0.0
    %387 = vmatprep.subr.mxu0 0.0
    %388 = vmatpush1.msra.mxu0 0.0
    %389 = vmatprep.subr.mxu0 0.0
    %390 = vmatpush1.msra.mxu0 0.0
    %391 = vmatprep.subr.mxu0 0.0
    %392 = vmatpush1.msra.mxu0 0.0
    %393 = vmatprep.subr.mxu0 0.0
    %394 = vmatpush1.msra.mxu0 0.0
    %395 = vmatprep.subr.mxu0 0.0
    %396 = vmatpush1.msra.mxu0 0.0
    %397 = vmatprep.subr.mxu0 0.0
    %398 = vmatpush1.msra.mxu0 0.0
    %399 = vmatprep.subr.mxu0 0.0
    %400 = vmatpush1.msra.mxu0 0.0
    %401 = vmatprep.subr.mxu0 0.0
    %402 = vmatpush1.msra.mxu0 0.0
    %403 = vmatprep.subr.mxu0 0.0
    %404 = vmatpush1.msra.mxu0 0.0
    %405 = vmatprep.subr.mxu0 0.0
    %406 = vmatpush1.msra.mxu0 0.0
    %407 = vmatprep.subr.mxu0 0.0
    %408 = vmatpush1.msra.mxu0 0.0
    %409 = vmatprep.subr.mxu0 0.0
    %410 = vmatpush1.msra.mxu0 0.0
    %411 = vmatprep.subr.mxu0 0.0
    %412 = vmatpush1.msra.mxu0 0.0
    %413 = vmatprep.subr.mxu0 0.0
    %414 = vmatpush1.msra.mxu0 0.0
    %415 = vmatprep.subr.mxu0 0.0
    %416 = vmatpush1.msra.mxu0 0.0
    %417 = vmatprep.mubr.f32.mxu0 0.0
    %418 = vmatmul.mubr.f32.gmra.mrb[0].mxu0 %v281
    %v419 = vpop.f32.mrb[0].mxu0
    %v420 = vadd.f32 0.0, %v419
    %v421 = vpop.f32.mrb[0].mxu0
    %422 = vdwg.mxu0
    %v423 = vadd.f32 %v278, %v350
    %v424 = vxor.u32 %v423, 2147483648
    %v425 = vmul.f32 %v424, 1.442695
    %v426 = vpow.pop %v425
    %v427 = vadd.f32 %v426, 1.0
    %v428 = vrcp.pop %v427
    %v429 = vmul.f32 1.0, %v428
    %v431 = vlaneseq
    %v432 = vshrl.u32 %v431, 7
    %v433 = vsub.s32 0, %v432
    %v434 = vrot.slane %v275, %v433
    %435 = vrot.lane.b32.xlu0 %v434, 64
    %v436 = vpop.permute.xlu0 %435
    %v438 = vadd.f32 %v350, %v436
    %440 = vrot.lane.b32.xlu0 %v438, 64
    %v441 = vpop.permute.xlu0 %440
    %v443 = vmul.f32 %v429, %v441
    %445 = vrot.lane.b32.xlu0 %v443, 64
    %v446 = vpop.permute.xlu0 %445
    %v448 = vadd.f32 %v278, %v446
    %v449 = vtanh.pop %v448
    %v450 = vsub.f32 1.0, %v429
    %452 = vrot.lane.b32.xlu0 %v449, 96
    %v453 = vpop.permute.xlu0 %452
    %v455 = vmul.f32 %v450, %v453
    %v456 = vmul.f32 %v429, 0.0
    %v457 = vadd.f32 %v455, %v456
    %v458 = vadd.f32 %v279, %v420
    %v459 = vxor.u32 %v458, 2147483648
    %v460 = vmul.f32 %v459, 1.442695
    %v461 = vpow.pop %v460
    %v462 = vadd.f32 %v461, 1.0
    %v463 = vrcp.pop %v462
    %v464 = vmul.f32 1.0, %v463
    %v466 = vlaneseq
    %v467 = vshrl.u32 %v466, 7
    %v468 = vsub.s32 0, %v467
    %v469 = vrot.slane %v277, %v468
    %470 = vrot.lane.b32.xlu0 %v469, 64
    %v471 = vpop.permute.xlu0 %470
    %v473 = vadd.f32 %v420, %v471
    %475 = vrot.lane.b32.xlu0 %v473, 64
    %v476 = vpop.permute.xlu0 %475
    %v478 = vmul.f32 %v464, %v476
    %480 = vrot.lane.b32.xlu0 %v478, 64
    %v481 = vpop.permute.xlu0 %480
    %v483 = vadd.f32 %v279, %v481
    %v484 = vtanh.pop %v483
    %v485 = vsub.f32 1.0, %v464
    %487 = vrot.lane.b32.xlu0 %v484, 96
    %v488 = vpop.permute.xlu0 %487
    %v490 = vmul.f32 %v485, %v488
    %v491 = vmul.f32 %v464, 0.0
    %v492 = vadd.f32 %v490, %v491
    %494 = vrot.lane.b32.xlu0 %v457, 96
    %v495 = vpop.permute.xlu0 %494
    %vm497 = vcmask 254976
    %498 = vst.msk [vmem:[#allocation3] sm:$0x3] %vm497, %v495
    %vm499 = vcmask 517376
    %500 = vst.msk [vmem:[#allocation3 + $0xe] sm:$0x3] %vm499, %v492
    %v501 = vld [vmem:[#allocation2 + $0x2] sm:$0x3]
    %v502 = vld [vmem:[%s263 + $0xc] sm:$0x3]
    %v503 = vsel %vm90, %v495, 0
    %505 = vmatprep.subr.mxu0 0.0
    %506 = vmatpush1.msra.mxu0 %v266
    %507 = vmatprep.subr.mxu0 0.0
    %508 = vmatpush1.msra.mxu0 %v267
    %509 = vmatprep.subr.mxu0 0.0
    %510 = vmatpush1.msra.mxu0 %v268
    %511 = vmatprep.subr.mxu0 0.0
    %512 = vmatpush1.msra.mxu0 %v269
    %513 = vmatprep.subr.mxu0 0.0
    %514 = vmatpush1.msra.mxu0 0.0
    %515 = vmatprep.subr.mxu0 0.0
    %516 = vmatpush1.msra.mxu0 0.0
    %517 = vmatprep.subr.mxu0 0.0
    %518 = vmatpush1.msra.mxu0 0.0
    %519 = vmatprep.subr.mxu0 0.0
    %520 = vmatpush1.msra.mxu0 0.0
    %521 = vmatprep.subr.mxu0 0.0
    %522 = vmatpush1.msra.mxu0 0.0
    %523 = vmatprep.subr.mxu0 0.0
    %524 = vmatpush1.msra.mxu0 0.0
    %525 = vmatprep.subr.mxu0 0.0
    %526 = vmatpush1.msra.mxu0 0.0
    %527 = vmatprep.subr.mxu0 0.0
    %528 = vmatpush1.msra.mxu0 0.0
    %529 = vmatprep.subr.mxu0 0.0
    %530 = vmatpush1.msra.mxu0 0.0
    %531 = vmatprep.subr.mxu0 0.0
    %532 = vmatpush1.msra.mxu0 0.0
    %533 = vmatprep.subr.mxu0 0.0
    %534 = vmatpush1.msra.mxu0 0.0
    %535 = vmatprep.subr.mxu0 0.0
    %536 = vmatpush1.msra.mxu0 0.0
    %537 = vmatprep.subr.mxu0 0.0
    %538 = vmatpush1.msra.mxu0 0.0
    %539 = vmatprep.subr.mxu0 0.0
    %540 = vmatpush1.msra.mxu0 0.0
    %541 = vmatprep.subr.mxu0 0.0
    %542 = vmatpush1.msra.mxu0 0.0
    %543 = vmatprep.subr.mxu0 0.0
    %544 = vmatpush1.msra.mxu0 0.0
    %545 = vmatprep.subr.mxu0 0.0
    %546 = vmatpush1.msra.mxu0 0.0
    %547 = vmatprep.subr.mxu0 0.0
    %548 = vmatpush1.msra.mxu0 0.0
    %549 = vmatprep.subr.mxu0 0.0
    %550 = vmatpush1.msra.mxu0 0.0
    %551 = vmatprep.subr.mxu0 0.0
    %552 = vmatpush1.msra.mxu0 0.0
    %553 = vmatprep.subr.mxu0 0.0
    %554 = vmatpush1.msra.mxu0 0.0
    %555 = vmatprep.subr.mxu0 0.0
    %556 = vmatpush1.msra.mxu0 0.0
    %557 = vmatprep.subr.mxu0 0.0
    %558 = vmatpush1.msra.mxu0 0.0
    %559 = vmatprep.subr.mxu0 0.0
    %560 = vmatpush1.msra.mxu0 0.0
    %561 = vmatprep.subr.mxu0 0.0
    %562 = vmatpush1.msra.mxu0 0.0
    %563 = vmatprep.subr.mxu0 0.0
    %564 = vmatpush1.msra.mxu0 0.0
    %565 = vmatprep.subr.mxu0 0.0
    %566 = vmatpush1.msra.mxu0 0.0
    %567 = vmatprep.subr.mxu0 0.0
    %568 = vmatpush1.msra.mxu0 0.0
    %569 = vmatprep.mubr.f32.mxu0 0.0
    %570 = vmatmul.mubr.f32.gmra.mrb[0].mxu0 %v503
    %v571 = vpop.f32.mrb[0].mxu0
    %v572 = vadd.f32 0.0, %v571
    %v573 = vpop.f32.mrb[0].mxu0
    %574 = vdwg.mxu0
    %576 = vrot.lane.b32.xlu0 %v492, 96
    %v577 = vpop.permute.xlu0 %576
    %v578 = vsel %vm90, %v577, 0
    %580 = vmatprep.subr.mxu0 0.0
    %581 = vmatpush1.msra.mxu0 %v271
    %582 = vmatprep.subr.mxu0 0.0
    %583 = vmatpush1.msra.mxu0 %v272
    %584 = vmatprep.subr.mxu0 0.0
    %585 = vmatpush1.msra.mxu0 %v273
    %586 = vmatprep.subr.mxu0 0.0
    %587 = vmatpush1.msra.mxu0 %v274
    %588 = vmatprep.subr.mxu0 0.0
    %589 = vmatpush1.msra.mxu0 0.0
    %590 = vmatprep.subr.mxu0 0.0
    %591 = vmatpush1.msra.mxu0 0.0
    %592 = vmatprep.subr.mxu0 0.0
    %593 = vmatpush1.msra.mxu0 0.0
    %594 = vmatprep.subr.mxu0 0.0
    %595 = vmatpush1.msra.mxu0 0.0
    %596 = vmatprep.subr.mxu0 0.0
    %597 = vmatpush1.msra.mxu0 0.0
    %598 = vmatprep.subr.mxu0 0.0
    %599 = vmatpush1.msra.mxu0 0.0
    %600 = vmatprep.subr.mxu0 0.0
    %601 = vmatpush1.msra.mxu0 0.0
    %602 = vmatprep.subr.mxu0 0.0
    %603 = vmatpush1.msra.mxu0 0.0
    %604 = vmatprep.subr.mxu0 0.0
    %605 = vmatpush1.msra.mxu0 0.0
    %606 = vmatprep.subr.mxu0 0.0
    %607 = vmatpush1.msra.mxu0 0.0
    %608 = vmatprep.subr.mxu0 0.0
    %609 = vmatpush1.msra.mxu0 0.0
    %610 = vmatprep.subr.mxu0 0.0
    %611 = vmatpush1.msra.mxu0 0.0
    %612 = vmatprep.subr.mxu0 0.0
    %613 = vmatpush1.msra.mxu0 0.0
    %614 = vmatprep.subr.mxu0 0.0
    %615 = vmatpush1.msra.mxu0 0.0
    %616 = vmatprep.subr.mxu0 0.0
    %617 = vmatpush1.msra.mxu0 0.0
    %618 = vmatprep.subr.mxu0 0.0
    %619 = vmatpush1.msra.mxu0 0.0
    %620 = vmatprep.subr.mxu0 0.0
    %621 = vmatpush1.msra.mxu0 0.0
    %622 = vmatprep.subr.mxu0 0.0
    %623 = vmatpush1.msra.mxu0 0.0
    %624 = vmatprep.subr.mxu0 0.0
    %625 = vmatpush1.msra.mxu0 0.0
    %626 = vmatprep.subr.mxu0 0.0
    %627 = vmatpush1.msra.mxu0 0.0
    %628 = vmatprep.subr.mxu0 0.0
    %629 = vmatpush1.msra.mxu0 0.0
    %630 = vmatprep.subr.mxu0 0.0
    %631 = vmatpush1.msra.mxu0 0.0
    %632 = vmatprep.subr.mxu0 0.0
    %633 = vmatpush1.msra.mxu0 0.0
    %634 = vmatprep.subr.mxu0 0.0
    %635 = vmatpush1.msra.mxu0 0.0
    %636 = vmatprep.subr.mxu0 0.0
    %637 = vmatpush1.msra.mxu0 0.0
    %638 = vmatprep.subr.mxu0 0.0
    %639 = vmatpush1.msra.mxu0 0.0
    %640 = vmatprep.subr.mxu0 0.0
    %641 = vmatpush1.msra.mxu0 0.0
    %642 = vmatprep.subr.mxu0 0.0
    %643 = vmatpush1.msra.mxu0 0.0
    %644 = vmatprep.mubr.f32.mxu0 0.0
    %645 = vmatmul.mubr.f32.gmra.mrb[0].mxu0 %v578
    %v646 = vpop.f32.mrb[0].mxu0
    %v647 = vadd.f32 0.0, %v646
    %v648 = vpop.f32.mrb[0].mxu0
    %649 = vdwg.mxu0
    %v650 = vadd.f32 %v501, %v572
    %v651 = vxor.u32 %v650, 2147483648
    %v652 = vmul.f32 %v651, 1.442695
    %v653 = vpow.pop %v652
    %v654 = vadd.f32 %v653, 1.0
    %v655 = vrcp.pop %v654
    %v656 = vmul.f32 1.0, %v655
    %v657 = vadd.f32 %v572, %v436
    %659 = vrot.lane.b32.xlu0 %v657, 64
    %v660 = vpop.permute.xlu0 %659
    %v662 = vmul.f32 %v656, %v660
    %664 = vrot.lane.b32.xlu0 %v662, 64
    %v665 = vpop.permute.xlu0 %664
    %v667 = vadd.f32 %v501, %v665
    %v668 = vtanh.pop %v667
    %v669 = vsub.f32 1.0, %v656
    %671 = vrot.lane.b32.xlu0 %v668, 96
    %v672 = vpop.permute.xlu0 %671
    %v674 = vmul.f32 %v669, %v672
    %v675 = vmul.f32 %v656, %v457
    %v676 = vadd.f32 %v674, %v675
    %v677 = vadd.f32 %v502, %v647
    %v678 = vxor.u32 %v677, 2147483648
    %v679 = vmul.f32 %v678, 1.442695
    %v680 = vpow.pop %v679
    %v681 = vadd.f32 %v680, 1.0
    %v682 = vrcp.pop %v681
    %v683 = vmul.f32 1.0, %v682
    %v684 = vadd.f32 %v647, %v471
    %686 = vrot.lane.b32.xlu0 %v684, 64
    %v687 = vpop.permute.xlu0 %686
    %v689 = vmul.f32 %v683, %v687
    %691 = vrot.lane.b32.xlu0 %v689, 64
    %v692 = vpop.permute.xlu0 %691
    %v694 = vadd.f32 %v502, %v692
    %v695 = vtanh.pop %v694
    %v696 = vsub.f32 1.0, %v683
    %698 = vrot.lane.b32.xlu0 %v695, 96
    %v699 = vpop.permute.xlu0 %698
    %v701 = vmul.f32 %v696, %v699
    %v702 = vmul.f32 %v683, %v492
    %v703 = vadd.f32 %v701, %v702
    %705 = vrot.lane.b32.xlu0 %v676, 96
    %v706 = vpop.permute.xlu0 %705
    %708 = vst.msk [vmem:[#allocation3 + $0x2] sm:$0x3] %vm497, %v706
    %709 = vst.msk [vmem:[#allocation3 + $0xc] sm:$0x3] %vm499, %v703
    %v710 = vld [vmem:[#allocation2 + $0x4] sm:$0x3]
    %v711 = vld [vmem:[%s263 + $0xa] sm:$0x3]
    %v712 = vsel %vm90, %v706, 0
    %714 = vmatprep.subr.mxu0 0.0
    %715 = vmatpush1.msra.mxu0 %v266
    %716 = vmatprep.subr.mxu0 0.0
    %717 = vmatpush1.msra.mxu0 %v267
    %718 = vmatprep.subr.mxu0 0.0
    %719 = vmatpush1.msra.mxu0 %v268
    %720 = vmatprep.subr.mxu0 0.0
    %721 = vmatpush1.msra.mxu0 %v269
    %722 = vmatprep.subr.mxu0 0.0
    %723 = vmatpush1.msra.mxu0 0.0
    %724 = vmatprep.subr.mxu0 0.0
    %725 = vmatpush1.msra.mxu0 0.0
    %726 = vmatprep.subr.mxu0 0.0
    %727 = vmatpush1.msra.mxu0 0.0
    %728 = vmatprep.subr.mxu0 0.0
    %729 = vmatpush1.msra.mxu0 0.0
    %730 = vmatprep.subr.mxu0 0.0
    %731 = vmatpush1.msra.mxu0 0.0
    %732 = vmatprep.subr.mxu0 0.0
    %733 = vmatpush1.msra.mxu0 0.0
    %734 = vmatprep.subr.mxu0 0.0
    %735 = vmatpush1.msra.mxu0 0.0
    %736 = vmatprep.subr.mxu0 0.0
    %737 = vmatpush1.msra.mxu0 0.0
    %738 = vmatprep.subr.mxu0 0.0
    %739 = vmatpush1.msra.mxu0 0.0
    %740 = vmatprep.subr.mxu0 0.0
    %741 = vmatpush1.msra.mxu0 0.0
    %742 = vmatprep.subr.mxu0 0.0
    %743 = vmatpush1.msra.mxu0 0.0
    %744 = vmatprep.subr.mxu0 0.0
    %745 = vmatpush1.msra.mxu0 0.0
    %746 = vmatprep.subr.mxu0 0.0
    %747 = vmatpush1.msra.mxu0 0.0
    %748 = vmatprep.subr.mxu0 0.0
    %749 = vmatpush1.msra.mxu0 0.0
    %750 = vmatprep.subr.mxu0 0.0
    %751 = vmatpush1.msra.mxu0 0.0
    %752 = vmatprep.subr.mxu0 0.0
    %753 = vmatpush1.msra.mxu0 0.0
    %754 = vmatprep.subr.mxu0 0.0
    %755 = vmatpush1.msra.mxu0 0.0
    %756 = vmatprep.subr.mxu0 0.0
    %757 = vmatpush1.msra.mxu0 0.0
    %758 = vmatprep.subr.mxu0 0.0
    %759 = vmatpush1.msra.mxu0 0.0
    %760 = vmatprep.subr.mxu0 0.0
    %761 = vmatpush1.msra.mxu0 0.0
    %762 = vmatprep.subr.mxu0 0.0
    %763 = vmatpush1.msra.mxu0 0.0
    %764 = vmatprep.subr.mxu0 0.0
    %765 = vmatpush1.msra.mxu0 0.0
    %766 = vmatprep.subr.mxu0 0.0
    %767 = vmatpush1.msra.mxu0 0.0
    %768 = vmatprep.subr.mxu0 0.0
    %769 = vmatpush1.msra.mxu0 0.0
    %770 = vmatprep.subr.mxu0 0.0
    %771 = vmatpush1.msra.mxu0 0.0
    %772 = vmatprep.subr.mxu0 0.0
    %773 = vmatpush1.msra.mxu0 0.0
    %774 = vmatprep.subr.mxu0 0.0
    %775 = vmatpush1.msra.mxu0 0.0
    %776 = vmatprep.subr.mxu0 0.0
    %777 = vmatpush1.msra.mxu0 0.0
    %778 = vmatprep.mubr.f32.mxu0 0.0
    %779 = vmatmul.mubr.f32.gmra.mrb[0].mxu0 %v712
    %v780 = vpop.f32.mrb[0].mxu0
    %v781 = vadd.f32 0.0, %v780
    %v782 = vpop.f32.mrb[0].mxu0
    %783 = vdwg.mxu0
    %785 = vrot.lane.b32.xlu0 %v703, 96
    %v786 = vpop.permute.xlu0 %785
    %v787 = vsel %vm90, %v786, 0
    %789 = vmatprep.subr.mxu0 0.0
    %790 = vmatpush1.msra.mxu0 %v271
    %791 = vmatprep.subr.mxu0 0.0
    %792 = vmatpush1.msra.mxu0 %v272
    %793 = vmatprep.subr.mxu0 0.0
    %794 = vmatpush1.msra.mxu0 %v273
    %795 = vmatprep.subr.mxu0 0.0
    %796 = vmatpush1.msra.mxu0 %v274
    %797 = vmatprep.subr.mxu0 0.0
    %798 = vmatpush1.msra.mxu0 0.0
    %799 = vmatprep.subr.mxu0 0.0
    %800 = vmatpush1.msra.mxu0 0.0
    %801 = vmatprep.subr.mxu0 0.0
    %802 = vmatpush1.msra.mxu0 0.0
    %803 = vmatprep.subr.mxu0 0.0
    %804 = vmatpush1.msra.mxu0 0.0
    %805 = vmatprep.subr.mxu0 0.0
    %806 = vmatpush1.msra.mxu0 0.0
    %807 = vmatprep.subr.mxu0 0.0
    %808 = vmatpush1.msra.mxu0 0.0
    %809 = vmatprep.subr.mxu0 0.0
    %810 = vmatpush1.msra.mxu0 0.0
    %811 = vmatprep.subr.mxu0 0.0
    %812 = vmatpush1.msra.mxu0 0.0
    %813 = vmatprep.subr.mxu0 0.0
    %814 = vmatpush1.msra.mxu0 0.0
    %815 = vmatprep.subr.mxu0 0.0
    %816 = vmatpush1.msra.mxu0 0.0
    %817 = vmatprep.subr.mxu0 0.0
    %818 = vmatpush1.msra.mxu0 0.0
    %819 = vmatprep.subr.mxu0 0.0
    %820 = vmatpush1.msra.mxu0 0.0
    %821 = vmatprep.subr.mxu0 0.0
    %822 = vmatpush1.msra.mxu0 0.0
    %823 = vmatprep.subr.mxu0 0.0
    %824 = vmatpush1.msra.mxu0 0.0
    %825 = vmatprep.subr.mxu0 0.0
    %826 = vmatpush1.msra.mxu0 0.0
    %827 = vmatprep.subr.mxu0 0.0
    %828 = vmatpush1.msra.mxu0 0.0
    %829 = vmatprep.subr.mxu0 0.0
    %830 = vmatpush1.msra.mxu0 0.0
    %831 = vmatprep.subr.mxu0 0.0
    %832 = vmatpush1.msra.mxu0 0.0
    %833 = vmatprep.subr.mxu0 0.0
    %834 = vmatpush1.msra.mxu0 0.0
    %835 = vmatprep.subr.mxu0 0.0
    %836 = vmatpush1.msra.mxu0 0.0
    %837 = vmatprep.subr.mxu0 0.0
    %838 = vmatpush1.msra.mxu0 0.0
    %839 = vmatprep.subr.mxu0 0.0
    %840 = vmatpush1.msra.mxu0 0.0
    %841 = vmatprep.subr.mxu0 0.0
    %842 = vmatpush1.msra.mxu0 0.0
    %843 = vmatprep.subr.mxu0 0.0
    %844 = vmatpush1.msra.mxu0 0.0
    %845 = vmatprep.subr.mxu0 0.0
    %846 = vmatpush1.msra.mxu0 0.0
    %847 = vmatprep.subr.mxu0 0.0
    %848 = vmatpush1.msra.mxu0 0.0
    %849 = vmatprep.subr.mxu0 0.0
    %850 = vmatpush1.msra.mxu0 0.0
    %851 = vmatprep.subr.mxu0 0.0
    %852 = vmatpush1.msra.mxu0 0.0
    %853 = vmatprep.mubr.f32.mxu0 0.0
    %854 = vmatmul.mubr.f32.gmra.mrb[0].mxu0 %v787
    %v855 = vpop.f32.mrb[0].mxu0
    %v856 = vadd.f32 0.0, %v855
    %v857 = vpop.f32.mrb[0].mxu0
    %858 = vdwg.mxu0
    %v859 = vadd.f32 %v710, %v781
    %v860 = vxor.u32 %v859, 2147483648
    %v861 = vmul.f32 %v860, 1.442695
    %v862 = vpow.pop %v861
    %v863 = vadd.f32 %v862, 1.0
    %v864 = vrcp.pop %v863
    %v865 = vmul.f32 1.0, %v864
    %v866 = vadd.f32 %v781, %v436
    %868 = vrot.lane.b32.xlu0 %v866, 64
    %v869 = vpop.permute.xlu0 %868
    %v871 = vmul.f32 %v865, %v869
    %873 = vrot.lane.b32.xlu0 %v871, 64
    %v874 = vpop.permute.xlu0 %873
    %v876 = vadd.f32 %v710, %v874
    %v877 = vtanh.pop %v876
    %v878 = vsub.f32 1.0, %v865
    %880 = vrot.lane.b32.xlu0 %v877, 96
    %v881 = vpop.permute.xlu0 %880
    %v883 = vmul.f32 %v878, %v881
    %v884 = vmul.f32 %v865, %v676
    %v885 = vadd.f32 %v883, %v884
    %v886 = vadd.f32 %v711, %v856
    %v887 = vxor.u32 %v886, 2147483648
    %v888 = vmul.f32 %v887, 1.442695
    %v889 = vpow.pop %v888
    %v890 = vadd.f32 %v889, 1.0
    %v891 = vrcp.pop %v890
    %v892 = vmul.f32 1.0, %v891
    %v893 = vadd.f32 %v856, %v471
    %895 = vrot.lane.b32.xlu0 %v893, 64
    %v896 = vpop.permute.xlu0 %895
    %v898 = vmul.f32 %v892, %v896
    %900 = vrot.lane.b32.xlu0 %v898, 64
    %v901 = vpop.permute.xlu0 %900
    %v903 = vadd.f32 %v711, %v901
    %v904 = vtanh.pop %v903
    %v905 = vsub.f32 1.0, %v892
    %907 = vrot.lane.b32.xlu0 %v904, 96
    %v908 = vpop.permute.xlu0 %907
    %v910 = vmul.f32 %v905, %v908
    %v911 = vmul.f32 %v892, %v703
    %v912 = vadd.f32 %v910, %v911
    %914 = vrot.lane.b32.xlu0 %v885, 96
    %v915 = vpop.permute.xlu0 %914
    %917 = vst.msk [vmem:[#allocation3 + $0x4] sm:$0x3] %vm497, %v915
    %918 = vst.msk [vmem:[#allocation3 + $0xa] sm:$0x3] %vm499, %v912
    %v919 = vld [vmem:[#allocation2 + $0x6] sm:$0x3]
    %v920 = vld [vmem:[%s263 + $0x8] sm:$0x3]
    %v921 = vsel %vm90, %v915, 0
    %923 = vmatprep.subr.mxu0 0.0
    %924 = vmatpush1.msra.mxu0 %v266
    %925 = vmatprep.subr.mxu0 0.0
    %926 = vmatpush1.msra.mxu0 %v267
    %927 = vmatprep.subr.mxu0 0.0
    %928 = vmatpush1.msra.mxu0 %v268
    %929 = vmatprep.subr.mxu0 0.0
    %930 = vmatpush1.msra.mxu0 %v269
    %931 = vmatprep.subr.mxu0 0.0
    %932 = vmatpush1.msra.mxu0 0.0
    %933 = vmatprep.subr.mxu0 0.0
    %934 = vmatpush1.msra.mxu0 0.0
    %935 = vmatprep.subr.mxu0 0.0
    %936 = vmatpush1.msra.mxu0 0.0
    %937 = vmatprep.subr.mxu0 0.0
    %938 = vmatpush1.msra.mxu0 0.0
    %939 = vmatprep.subr.mxu0 0.0
    %940 = vmatpush1.msra.mxu0 0.0
    %941 = vmatprep.subr.mxu0 0.0
    %942 = vmatpush1.msra.mxu0 0.0
    %943 = vmatprep.subr.mxu0 0.0
    %944 = vmatpush1.msra.mxu0 0.0
    %945 = vmatprep.subr.mxu0 0.0
    %946 = vmatpush1.msra.mxu0 0.0
    %947 = vmatprep.subr.mxu0 0.0
    %948 = vmatpush1.msra.mxu0 0.0
    %949 = vmatprep.subr.mxu0 0.0
    %950 = vmatpush1.msra.mxu0 0.0
    %951 = vmatprep.subr.mxu0 0.0
    %952 = vmatpush1.msra.mxu0 0.0
    %953 = vmatprep.subr.mxu0 0.0
    %954 = vmatpush1.msra.mxu0 0.0
    %955 = vmatprep.subr.mxu0 0.0
    %956 = vmatpush1.msra.mxu0 0.0
    %957 = vmatprep.subr.mxu0 0.0
    %958 = vmatpush1.msra.mxu0 0.0
    %959 = vmatprep.subr.mxu0 0.0
    %960 = vmatpush1.msra.mxu0 0.0
    %961 = vmatprep.subr.mxu0 0.0
    %962 = vmatpush1.msra.mxu0 0.0
    %963 = vmatprep.subr.mxu0 0.0
    %964 = vmatpush1.msra.mxu0 0.0
    %965 = vmatprep.subr.mxu0 0.0
    %966 = vmatpush1.msra.mxu0 0.0
    %967 = vmatprep.subr.mxu0 0.0
    %968 = vmatpush1.msra.mxu0 0.0
    %969 = vmatprep.subr.mxu0 0.0
    %970 = vmatpush1.msra.mxu0 0.0
    %971 = vmatprep.subr.mxu0 0.0
    %972 = vmatpush1.msra.mxu0 0.0
    %973 = vmatprep.subr.mxu0 0.0
    %974 = vmatpush1.msra.mxu0 0.0
    %975 = vmatprep.subr.mxu0 0.0
    %976 = vmatpush1.msra.mxu0 0.0
    %977 = vmatprep.subr.mxu0 0.0
    %978 = vmatpush1.msra.mxu0 0.0
    %979 = vmatprep.subr.mxu0 0.0
    %980 = vmatpush1.msra.mxu0 0.0
    %981 = vmatprep.subr.mxu0 0.0
    %982 = vmatpush1.msra.mxu0 0.0
    %983 = vmatprep.subr.mxu0 0.0
    %984 = vmatpush1.msra.mxu0 0.0
    %985 = vmatprep.subr.mxu0 0.0
    %986 = vmatpush1.msra.mxu0 0.0
    %987 = vmatprep.mubr.f32.mxu0 0.0
    %988 = vmatmul.mubr.f32.gmra.mrb[0].mxu0 %v921
    %v989 = vpop.f32.mrb[0].mxu0
    %v990 = vadd.f32 0.0, %v989
    %v991 = vpop.f32.mrb[0].mxu0
    %992 = vdwg.mxu0
    %994 = vrot.lane.b32.xlu0 %v912, 96
    %v995 = vpop.permute.xlu0 %994
    %v996 = vsel %vm90, %v995, 0
    %998 = vmatprep.subr.mxu0 0.0
    %999 = vmatpush1.msra.mxu0 %v271
    %1000 = vmatprep.subr.mxu0 0.0
    %1001 = vmatpush1.msra.mxu0 %v272
    %1002 = vmatprep.subr.mxu0 0.0
    %1003 = vmatpush1.msra.mxu0 %v273
    %1004 = vmatprep.subr.mxu0 0.0
    %1005 = vmatpush1.msra.mxu0 %v274
    %1006 = vmatprep.subr.mxu0 0.0
    %1007 = vmatpush1.msra.mxu0 0.0
    %1008 = vmatprep.subr.mxu0 0.0
    %1009 = vmatpush1.msra.mxu0 0.0
    %1010 = vmatprep.subr.mxu0 0.0
    %1011 = vmatpush1.msra.mxu0 0.0
    %1012 = vmatprep.subr.mxu0 0.0
    %1013 = vmatpush1.msra.mxu0 0.0
    %1014 = vmatprep.subr.mxu0 0.0
    %1015 = vmatpush1.msra.mxu0 0.0
    %1016 = vmatprep.subr.mxu0 0.0
    %1017 = vmatpush1.msra.mxu0 0.0
    %1018 = vmatprep.subr.mxu0 0.0
    %1019 = vmatpush1.msra.mxu0 0.0
    %1020 = vmatprep.subr.mxu0 0.0
    %1021 = vmatpush1.msra.mxu0 0.0
    %1022 = vmatprep.subr.mxu0 0.0
    %1023 = vmatpush1.msra.mxu0 0.0
    %1024 = vmatprep.subr.mxu0 0.0
    %1025 = vmatpush1.msra.mxu0 0.0
    %1026 = vmatprep.subr.mxu0 0.0
    %1027 = vmatpush1.msra.mxu0 0.0
    %1028 = vmatprep.subr.mxu0 0.0
    %1029 = vmatpush1.msra.mxu0 0.0
    %1030 = vmatprep.subr.mxu0 0.0
    %1031 = vmatpush1.msra.mxu0 0.0
    %1032 = vmatprep.subr.mxu0 0.0
    %1033 = vmatpush1.msra.mxu0 0.0
    %1034 = vmatprep.subr.mxu0 0.0
    %1035 = vmatpush1.msra.mxu0 0.0
    %1036 = vmatprep.subr.mxu0 0.0
    %1037 = vmatpush1.msra.mxu0 0.0
    %1038 = vmatprep.subr.mxu0 0.0
    %1039 = vmatpush1.msra.mxu0 0.0
    %1040 = vmatprep.subr.mxu0 0.0
    %1041 = vmatpush1.msra.mxu0 0.0
    %1042 = vmatprep.subr.mxu0 0.0
    %1043 = vmatpush1.msra.mxu0 0.0
    %1044 = vmatprep.subr.mxu0 0.0
    %1045 = vmatpush1.msra.mxu0 0.0
    %1046 = vmatprep.subr.mxu0 0.0
    %1047 = vmatpush1.msra.mxu0 0.0
    %1048 = vmatprep.subr.mxu0 0.0
    %1049 = vmatpush1.msra.mxu0 0.0
    %1050 = vmatprep.subr.mxu0 0.0
    %1051 = vmatpush1.msra.mxu0 0.0
    %1052 = vmatprep.subr.mxu0 0.0
    %1053 = vmatpush1.msra.mxu0 0.0
    %1054 = vmatprep.subr.mxu0 0.0
    %1055 = vmatpush1.msra.mxu0 0.0
    %1056 = vmatprep.subr.mxu0 0.0
    %1057 = vmatpush1.msra.mxu0 0.0
    %1058 = vmatprep.subr.mxu0 0.0
    %1059 = vmatpush1.msra.mxu0 0.0
    %1060 = vmatprep.subr.mxu0 0.0
    %1061 = vmatpush1.msra.mxu0 0.0
    %1062 = vmatprep.mubr.f32.mxu0 0.0
    %1063 = vmatmul.mubr.f32.gmra.mrb[0].mxu0 %v996
    %v1064 = vpop.f32.mrb[0].mxu0
    %v1065 = vadd.f32 0.0, %v1064
    %v1066 = vpop.f32.mrb[0].mxu0
    %1067 = vdwg.mxu0
    %v1068 = vadd.f32 %v919, %v990
    %v1069 = vxor.u32 %v1068, 2147483648
    %v1070 = vmul.f32 %v1069, 1.442695
    %v1071 = vpow.pop %v1070
    %v1072 = vadd.f32 %v1071, 1.0
    %v1073 = vrcp.pop %v1072
    %v1074 = vmul.f32 1.0, %v1073
    %v1075 = vadd.f32 %v990, %v436
    %1077 = vrot.lane.b32.xlu0 %v1075, 64
    %v1078 = vpop.permute.xlu0 %1077
    %v1080 = vmul.f32 %v1074, %v1078
    %1082 = vrot.lane.b32.xlu0 %v1080, 64
    %v1083 = vpop.permute.xlu0 %1082
    %v1085 = vadd.f32 %v919, %v1083
    %v1086 = vtanh.pop %v1085
    %v1087 = vsub.f32 1.0, %v1074
    %1089 = vrot.lane.b32.xlu0 %v1086, 96
    %v1090 = vpop.permute.xlu0 %1089
    %v1092 = vmul.f32 %v1087, %v1090
    %v1093 = vmul.f32 %v1074, %v885
    %v1094 = vadd.f32 %v1092, %v1093
    %v1095 = vadd.f32 %v920, %v1065
    %v1096 = vxor.u32 %v1095, 2147483648
    %v1097 = vmul.f32 %v1096, 1.442695
    %v1098 = vpow.pop %v1097
    %v1099 = vadd.f32 %v1098, 1.0
    %v1100 = vrcp.pop %v1099
    %v1101 = vmul.f32 1.0, %v1100
    %v1102 = vadd.f32 %v1065, %v471
    %1104 = vrot.lane.b32.xlu0 %v1102, 64
    %v1105 = vpop.permute.xlu0 %1104
    %v1107 = vmul.f32 %v1101, %v1105
    %1109 = vrot.lane.b32.xlu0 %v1107, 64
    %v1110 = vpop.permute.xlu0 %1109
    %v1112 = vadd.f32 %v920, %v1110
    %v1113 = vtanh.pop %v1112
    %v1114 = vsub.f32 1.0, %v1101
    %1116 = vrot.lane.b32.xlu0 %v1113, 96
    %v1117 = vpop.permute.xlu0 %1116
    %v1119 = vmul.f32 %v1114, %v1117
    %v1120 = vmul.f32 %v1101, %v912
    %v1121 = vadd.f32 %v1119, %v1120
    %1123 = vrot.lane.b32.xlu0 %v1094, 96
    %v1124 = vpop.permute.xlu0 %1123
    %1126 = vst.msk [vmem:[#allocation3 + $0x6] sm:$0x3] %vm497, %v1124
    %1127 = vst.msk [vmem:[#allocation3 + $0x8] sm:$0x3] %vm499, %v1121
    %v1128 = vld [vmem:[#allocation2 + $0x8] sm:$0x3]
    %v1129 = vld [vmem:[%s263 + $0x6] sm:$0x3]
    %v1130 = vsel %vm90, %v1124, 0
    %1132 = vmatprep.subr.mxu0 0.0
    %1133 = vmatpush1.msra.mxu0 %v266
    %1134 = vmatprep.subr.mxu0 0.0
    %1135 = vmatpush1.msra.mxu0 %v267
    %1136 = vmatprep.subr.mxu0 0.0
    %1137 = vmatpush1.msra.mxu0 %v268
    %1138 = vmatprep.subr.mxu0 0.0
    %1139 = vmatpush1.msra.mxu0 %v269
    %1140 = vmatprep.subr.mxu0 0.0
    %1141 = vmatpush1.msra.mxu0 0.0
    %1142 = vmatprep.subr.mxu0 0.0
    %1143 = vmatpush1.msra.mxu0 0.0
    %1144 = vmatprep.subr.mxu0 0.0
    %1145 = vmatpush1.msra.mxu0 0.0
    %1146 = vmatprep.subr.mxu0 0.0
    %1147 = vmatpush1.msra.mxu0 0.0
    %1148 = vmatprep.subr.mxu0 0.0
    %1149 = vmatpush1.msra.mxu0 0.0
    %1150 = vmatprep.subr.mxu0 0.0
    %1151 = vmatpush1.msra.mxu0 0.0
    %1152 = vmatprep.subr.mxu0 0.0
    %1153 = vmatpush1.msra.mxu0 0.0
    %1154 = vmatprep.subr.mxu0 0.0
    %1155 = vmatpush1.msra.mxu0 0.0
    %1156 = vmatprep.subr.mxu0 0.0
    %1157 = vmatpush1.msra.mxu0 0.0
    %1158 = vmatprep.subr.mxu0 0.0
    %1159 = vmatpush1.msra.mxu0 0.0
    %1160 = vmatprep.subr.mxu0 0.0
    %1161 = vmatpush1.msra.mxu0 0.0
    %1162 = vmatprep.subr.mxu0 0.0
    %1163 = vmatpush1.msra.mxu0 0.0
    %1164 = vmatprep.subr.mxu0 0.0
    %1165 = vmatpush1.msra.mxu0 0.0
    %1166 = vmatprep.subr.mxu0 0.0
    %1167 = vmatpush1.msra.mxu0 0.0
    %1168 = vmatprep.subr.mxu0 0.0
    %1169 = vmatpush1.msra.mxu0 0.0
    %1170 = vmatprep.subr.mxu0 0.0
    %1171 = vmatpush1.msra.mxu0 0.0
    %1172 = vmatprep.subr.mxu0 0.0
    %1173 = vmatpush1.msra.mxu0 0.0
    %1174 = vmatprep.subr.mxu0 0.0
    %1175 = vmatpush1.msra.mxu0 0.0
    %1176 = vmatprep.subr.mxu0 0.0
    %1177 = vmatpush1.msra.mxu0 0.0
    %1178 = vmatprep.subr.mxu0 0.0
    %1179 = vmatpush1.msra.mxu0 0.0
    %1180 = vmatprep.subr.mxu0 0.0
    %1181 = vmatpush1.msra.mxu0 0.0
    %1182 = vmatprep.subr.mxu0 0.0
    %1183 = vmatpush1.msra.mxu0 0.0
    %1184 = vmatprep.subr.mxu0 0.0
    %1185 = vmatpush1.msra.mxu0 0.0
    %1186 = vmatprep.subr.mxu0 0.0
    %1187 = vmatpush1.msra.mxu0 0.0
    %1188 = vmatprep.subr.mxu0 0.0
    %1189 = vmatpush1.msra.mxu0 0.0
    %1190 = vmatprep.subr.mxu0 0.0
    %1191 = vmatpush1.msra.mxu0 0.0
    %1192 = vmatprep.subr.mxu0 0.0
    %1193 = vmatpush1.msra.mxu0 0.0
    %1194 = vmatprep.subr.mxu0 0.0
    %1195 = vmatpush1.msra.mxu0 0.0
    %1196 = vmatprep.mubr.f32.mxu0 0.0
    %1197 = vmatmul.mubr.f32.gmra.mrb[0].mxu0 %v1130
    %v1198 = vpop.f32.mrb[0].mxu0
    %v1199 = vadd.f32 0.0, %v1198
    %v1200 = vpop.f32.mrb[0].mxu0
    %1201 = vdwg.mxu0
    %1203 = vrot.lane.b32.xlu0 %v1121, 96
    %v1204 = vpop.permute.xlu0 %1203
    %v1205 = vsel %vm90, %v1204, 0
    %1207 = vmatprep.subr.mxu0 0.0
    %1208 = vmatpush1.msra.mxu0 %v271
    %1209 = vmatprep.subr.mxu0 0.0
    %1210 = vmatpush1.msra.mxu0 %v272
    %1211 = vmatprep.subr.mxu0 0.0
    %1212 = vmatpush1.msra.mxu0 %v273
    %1213 = vmatprep.subr.mxu0 0.0
    %1214 = vmatpush1.msra.mxu0 %v274
    %1215 = vmatprep.subr.mxu0 0.0
    %1216 = vmatpush1.msra.mxu0 0.0
    %1217 = vmatprep.subr.mxu0 0.0
    %1218 = vmatpush1.msra.mxu0 0.0
    %1219 = vmatprep.subr.mxu0 0.0
    %1220 = vmatpush1.msra.mxu0 0.0
    %1221 = vmatprep.subr.mxu0 0.0
    %1222 = vmatpush1.msra.mxu0 0.0
    %1223 = vmatprep.subr.mxu0 0.0
    %1224 = vmatpush1.msra.mxu0 0.0
    %1225 = vmatprep.subr.mxu0 0.0
    %1226 = vmatpush1.msra.mxu0 0.0
    %1227 = vmatprep.subr.mxu0 0.0
    %1228 = vmatpush1.msra.mxu0 0.0
    %1229 = vmatprep.subr.mxu0 0.0
    %1230 = vmatpush1.msra.mxu0 0.0
    %1231 = vmatprep.subr.mxu0 0.0
    %1232 = vmatpush1.msra.mxu0 0.0
    %1233 = vmatprep.subr.mxu0 0.0
    %1234 = vmatpush1.msra.mxu0 0.0
    %1235 = vmatprep.subr.mxu0 0.0
    %1236 = vmatpush1.msra.mxu0 0.0
    %1237 = vmatprep.subr.mxu0 0.0
    %1238 = vmatpush1.msra.mxu0 0.0
    %1239 = vmatprep.subr.mxu0 0.0
    %1240 = vmatpush1.msra.mxu0 0.0
    %1241 = vmatprep.subr.mxu0 0.0
    %1242 = vmatpush1.msra.mxu0 0.0
    %1243 = vmatprep.subr.mxu0 0.0
    %1244 = vmatpush1.msra.mxu0 0.0
    %1245 = vmatprep.subr.mxu0 0.0
    %1246 = vmatpush1.msra.mxu0 0.0
    %1247 = vmatprep.subr.mxu0 0.0
    %1248 = vmatpush1.msra.mxu0 0.0
    %1249 = vmatprep.subr.mxu0 0.0
    %1250 = vmatpush1.msra.mxu0 0.0
    %1251 = vmatprep.subr.mxu0 0.0
    %1252 = vmatpush1.msra.mxu0 0.0
    %1253 = vmatprep.subr.mxu0 0.0
    %1254 = vmatpush1.msra.mxu0 0.0
    %1255 = vmatprep.subr.mxu0 0.0
    %1256 = vmatpush1.msra.mxu0 0.0
    %1257 = vmatprep.subr.mxu0 0.0
    %1258 = vmatpush1.msra.mxu0 0.0
    %1259 = vmatprep.subr.mxu0 0.0
    %1260 = vmatpush1.msra.mxu0 0.0
    %1261 = vmatprep.subr.mxu0 0.0
    %1262 = vmatpush1.msra.mxu0 0.0
    %1263 = vmatprep.subr.mxu0 0.0
    %1264 = vmatpush1.msra.mxu0 0.0
    %1265 = vmatprep.subr.mxu0 0.0
    %1266 = vmatpush1.msra.mxu0 0.0
    %1267 = vmatprep.subr.mxu0 0.0
    %1268 = vmatpush1.msra.mxu0 0.0
    %1269 = vmatprep.subr.mxu0 0.0
    %1270 = vmatpush1.msra.mxu0 0.0
    %1271 = vmatprep.mubr.f32.mxu0 0.0
    %1272 = vmatmul.mubr.f32.gmra.mrb[0].mxu0 %v1205
    %v1273 = vpop.f32.mrb[0].mxu0
    %v1274 = vadd.f32 0.0, %v1273
    %v1275 = vpop.f32.mrb[0].mxu0
    %1276 = vdwg.mxu0
    %v1277 = vadd.f32 %v1128, %v1199
    %v1278 = vxor.u32 %v1277, 2147483648
    %v1279 = vmul.f32 %v1278, 1.442695
    %v1280 = vpow.pop %v1279
    %v1281 = vadd.f32 %v1280, 1.0
    %v1282 = vrcp.pop %v1281
    %v1283 = vmul.f32 1.0, %v1282
    %v1284 = vadd.f32 %v1199, %v436
    %1286 = vrot.lane.b32.xlu0 %v1284, 64
    %v1287 = vpop.permute.xlu0 %1286
    %v1289 = vmul.f32 %v1283, %v1287
    %1291 = vrot.lane.b32.xlu0 %v1289, 64
    %v1292 = vpop.permute.xlu0 %1291
    %v1294 = vadd.f32 %v1128, %v1292
    %v1295 = vtanh.pop %v1294
    %v1296 = vsub.f32 1.0, %v1283
    %1298 = vrot.lane.b32.xlu0 %v1295, 96
    %v1299 = vpop.permute.xlu0 %1298
    %v1301 = vmul.f32 %v1296, %v1299
    %v1302 = vmul.f32 %v1283, %v1094
    %v1303 = vadd.f32 %v1301, %v1302
    %v1304 = vadd.f32 %v1129, %v1274
    %v1305 = vxor.u32 %v1304, 2147483648
    %v1306 = vmul.f32 %v1305, 1.442695
    %v1307 = vpow.pop %v1306
    %v1308 = vadd.f32 %v1307, 1.0
    %v1309 = vrcp.pop %v1308
    %v1310 = vmul.f32 1.0, %v1309
    %v1311 = vadd.f32 %v1274, %v471
    %1313 = vrot.lane.b32.xlu0 %v1311, 64
    %v1314 = vpop.permute.xlu0 %1313
    %v1316 = vmul.f32 %v1310, %v1314
    %1318 = vrot.lane.b32.xlu0 %v1316, 64
    %v1319 = vpop.permute.xlu0 %1318
    %v1321 = vadd.f32 %v1129, %v1319
    %v1322 = vtanh.pop %v1321
    %v1323 = vsub.f32 1.0, %v1310
    %1325 = vrot.lane.b32.xlu0 %v1322, 96
    %v1326 = vpop.permute.xlu0 %1325
    %v1328 = vmul.f32 %v1323, %v1326
    %v1329 = vmul.f32 %v1310, %v1121
    %v1330 = vadd.f32 %v1328, %v1329
    %1332 = vrot.lane.b32.xlu0 %v1303, 96
    %v1333 = vpop.permute.xlu0 %1332
    %1335 = vst.msk [vmem:[#allocation3 + $0x8] sm:$0x3] %vm497, %v1333
    %1336 = vst.msk [vmem:[#allocation3 + $0x6] sm:$0x3] %vm499, %v1330
    %v1337 = vld [vmem:[#allocation2 + $0xa] sm:$0x3]
    %v1338 = vld [vmem:[%s263 + $0x4] sm:$0x3]
    %v1339 = vsel %vm90, %v1333, 0
    %1341 = vmatprep.subr.mxu0 0.0
    %1342 = vmatpush1.msra.mxu0 %v266
    %1343 = vmatprep.subr.mxu0 0.0
    %1344 = vmatpush1.msra.mxu0 %v267
    %1345 = vmatprep.subr.mxu0 0.0
    %1346 = vmatpush1.msra.mxu0 %v268
    %1347 = vmatprep.subr.mxu0 0.0
    %1348 = vmatpush1.msra.mxu0 %v269
    %1349 = vmatprep.subr.mxu0 0.0
    %1350 = vmatpush1.msra.mxu0 0.0
    %1351 = vmatprep.subr.mxu0 0.0
    %1352 = vmatpush1.msra.mxu0 0.0
    %1353 = vmatprep.subr.mxu0 0.0
    %1354 = vmatpush1.msra.mxu0 0.0
    %1355 = vmatprep.subr.mxu0 0.0
    %1356 = vmatpush1.msra.mxu0 0.0
    %1357 = vmatprep.subr.mxu0 0.0
    %1358 = vmatpush1.msra.mxu0 0.0
    %1359 = vmatprep.subr.mxu0 0.0
    %1360 = vmatpush1.msra.mxu0 0.0
    %1361 = vmatprep.subr.mxu0 0.0
    %1362 = vmatpush1.msra.mxu0 0.0
    %1363 = vmatprep.subr.mxu0 0.0
    %1364 = vmatpush1.msra.mxu0 0.0
    %1365 = vmatprep.subr.mxu0 0.0
    %1366 = vmatpush1.msra.mxu0 0.0
    %1367 = vmatprep.subr.mxu0 0.0
    %1368 = vmatpush1.msra.mxu0 0.0
    %1369 = vmatprep.subr.mxu0 0.0
    %1370 = vmatpush1.msra.mxu0 0.0
    %1371 = vmatprep.subr.mxu0 0.0
    %1372 = vmatpush1.msra.mxu0 0.0
    %1373 = vmatprep.subr.mxu0 0.0
    %1374 = vmatpush1.msra.mxu0 0.0
    %1375 = vmatprep.subr.mxu0 0.0
    %1376 = vmatpush1.msra.mxu0 0.0
    %1377 = vmatprep.subr.mxu0 0.0
    %1378 = vmatpush1.msra.mxu0 0.0
    %1379 = vmatprep.subr.mxu0 0.0
    %1380 = vmatpush1.msra.mxu0 0.0
    %1381 = vmatprep.subr.mxu0 0.0
    %1382 = vmatpush1.msra.mxu0 0.0
    %1383 = vmatprep.subr.mxu0 0.0
    %1384 = vmatpush1.msra.mxu0 0.0
    %1385 = vmatprep.subr.mxu0 0.0
    %1386 = vmatpush1.msra.mxu0 0.0
    %1387 = vmatprep.subr.mxu0 0.0
    %1388 = vmatpush1.msra.mxu0 0.0
    %1389 = vmatprep.subr.mxu0 0.0
    %1390 = vmatpush1.msra.mxu0 0.0
    %1391 = vmatprep.subr.mxu0 0.0
    %1392 = vmatpush1.msra.mxu0 0.0
    %1393 = vmatprep.subr.mxu0 0.0
    %1394 = vmatpush1.msra.mxu0 0.0
    %1395 = vmatprep.subr.mxu0 0.0
    %1396 = vmatpush1.msra.mxu0 0.0
    %1397 = vmatprep.subr.mxu0 0.0
    %1398 = vmatpush1.msra.mxu0 0.0
    %1399 = vmatprep.subr.mxu0 0.0
    %1400 = vmatpush1.msra.mxu0 0.0
    %1401 = vmatprep.subr.mxu0 0.0
    %1402 = vmatpush1.msra.mxu0 0.0
    %1403 = vmatprep.subr.mxu0 0.0
    %1404 = vmatpush1.msra.mxu0 0.0
    %1405 = vmatprep.mubr.f32.mxu0 0.0
    %1406 = vmatmul.mubr.f32.gmra.mrb[0].mxu0 %v1339
    %v1407 = vpop.f32.mrb[0].mxu0
    %v1408 = vadd.f32 0.0, %v1407
    %v1409 = vpop.f32.mrb[0].mxu0
    %1410 = vdwg.mxu0
    %1412 = vrot.lane.b32.xlu0 %v1330, 96
    %v1413 = vpop.permute.xlu0 %1412
    %v1414 = vsel %vm90, %v1413, 0
    %1416 = vmatprep.subr.mxu0 0.0
    %1417 = vmatpush1.msra.mxu0 %v271
    %1418 = vmatprep.subr.mxu0 0.0
    %1419 = vmatpush1.msra.mxu0 %v272
    %1420 = vmatprep.subr.mxu0 0.0
    %1421 = vmatpush1.msra.mxu0 %v273
    %1422 = vmatprep.subr.mxu0 0.0
    %1423 = vmatpush1.msra.mxu0 %v274
    %1424 = vmatprep.subr.mxu0 0.0
    %1425 = vmatpush1.msra.mxu0 0.0
    %1426 = vmatprep.subr.mxu0 0.0
    %1427 = vmatpush1.msra.mxu0 0.0
    %1428 = vmatprep.subr.mxu0 0.0
    %1429 = vmatpush1.msra.mxu0 0.0
    %1430 = vmatprep.subr.mxu0 0.0
    %1431 = vmatpush1.msra.mxu0 0.0
    %1432 = vmatprep.subr.mxu0 0.0
    %1433 = vmatpush1.msra.mxu0 0.0
    %1434 = vmatprep.subr.mxu0 0.0
    %1435 = vmatpush1.msra.mxu0 0.0
    %1436 = vmatprep.subr.mxu0 0.0
    %1437 = vmatpush1.msra.mxu0 0.0
    %1438 = vmatprep.subr.mxu0 0.0
    %1439 = vmatpush1.msra.mxu0 0.0
    %1440 = vmatprep.subr.mxu0 0.0
    %1441 = vmatpush1.msra.mxu0 0.0
    %1442 = vmatprep.subr.mxu0 0.0
    %1443 = vmatpush1.msra.mxu0 0.0
    %1444 = vmatprep.subr.mxu0 0.0
    %1445 = vmatpush1.msra.mxu0 0.0
    %1446 = vmatprep.subr.mxu0 0.0
    %1447 = vmatpush1.msra.mxu0 0.0
    %1448 = vmatprep.subr.mxu0 0.0
    %1449 = vmatpush1.msra.mxu0 0.0
    %1450 = vmatprep.subr.mxu0 0.0
    %1451 = vmatpush1.msra.mxu0 0.0
    %1452 = vmatprep.subr.mxu0 0.0
    %1453 = vmatpush1.msra.mxu0 0.0
    %1454 = vmatprep.subr.mxu0 0.0
    %1455 = vmatpush1.msra.mxu0 0.0
    %1456 = vmatprep.subr.mxu0 0.0
    %1457 = vmatpush1.msra.mxu0 0.0
    %1458 = vmatprep.subr.mxu0 0.0
    %1459 = vmatpush1.msra.mxu0 0.0
    %1460 = vmatprep.subr.mxu0 0.0
    %1461 = vmatpush1.msra.mxu0 0.0
    %1462 = vmatprep.subr.mxu0 0.0
    %1463 = vmatpush1.msra.mxu0 0.0
    %1464 = vmatprep.subr.mxu0 0.0
    %1465 = vmatpush1.msra.mxu0 0.0
    %1466 = vmatprep.subr.mxu0 0.0
    %1467 = vmatpush1.msra.mxu0 0.0
    %1468 = vmatprep.subr.mxu0 0.0
    %1469 = vmatpush1.msra.mxu0 0.0
    %1470 = vmatprep.subr.mxu0 0.0
    %1471 = vmatpush1.msra.mxu0 0.0
    %1472 = vmatprep.subr.mxu0 0.0
    %1473 = vmatpush1.msra.mxu0 0.0
    %1474 = vmatprep.subr.mxu0 0.0
    %1475 = vmatpush1.msra.mxu0 0.0
    %1476 = vmatprep.subr.mxu0 0.0
    %1477 = vmatpush1.msra.mxu0 0.0
    %1478 = vmatprep.subr.mxu0 0.0
    %1479 = vmatpush1.msra.mxu0 0.0
    %1480 = vmatprep.mubr.f32.mxu0 0.0
    %1481 = vmatmul.mubr.f32.gmra.mrb[0].mxu0 %v1414
    %v1482 = vpop.f32.mrb[0].mxu0
    %v1483 = vadd.f32 0.0, %v1482
    %v1484 = vpop.f32.mrb[0].mxu0
    %1485 = vdwg.mxu0
    %v1486 = vadd.f32 %v1337, %v1408
    %v1487 = vxor.u32 %v1486, 2147483648
    %v1488 = vmul.f32 %v1487, 1.442695
    %v1489 = vpow.pop %v1488
    %v1490 = vadd.f32 %v1489, 1.0
    %v1491 = vrcp.pop %v1490
    %v1492 = vmul.f32 1.0, %v1491
    %v1493 = vadd.f32 %v1408, %v436
    %1495 = vrot.lane.b32.xlu0 %v1493, 64
    %v1496 = vpop.permute.xlu0 %1495
    %v1498 = vmul.f32 %v1492, %v1496
    %1500 = vrot.lane.b32.xlu0 %v1498, 64
    %v1501 = vpop.permute.xlu0 %1500
    %v1503 = vadd.f32 %v1337, %v1501
    %v1504 = vtanh.pop %v1503
    %v1505 = vsub.f32 1.0, %v1492
    %1507 = vrot.lane.b32.xlu0 %v1504, 96
    %v1508 = vpop.permute.xlu0 %1507
    %v1510 = vmul.f32 %v1505, %v1508
    %v1511 = vmul.f32 %v1492, %v1303
    %v1512 = vadd.f32 %v1510, %v1511
    %v1513 = vadd.f32 %v1338, %v1483
    %v1514 = vxor.u32 %v1513, 2147483648
    %v1515 = vmul.f32 %v1514, 1.442695
    %v1516 = vpow.pop %v1515
    %v1517 = vadd.f32 %v1516, 1.0
    %v1518 = vrcp.pop %v1517
    %v1519 = vmul.f32 1.0, %v1518
    %v1520 = vadd.f32 %v1483, %v471
    %1522 = vrot.lane.b32.xlu0 %v1520, 64
    %v1523 = vpop.permute.xlu0 %1522
    %v1525 = vmul.f32 %v1519, %v1523
    %1527 = vrot.lane.b32.xlu0 %v1525, 64
    %v1528 = vpop.permute.xlu0 %1527
    %v1530 = vadd.f32 %v1338, %v1528
    %v1531 = vtanh.pop %v1530
    %v1532 = vsub.f32 1.0, %v1519
    %1534 = vrot.lane.b32.xlu0 %v1531, 96
    %v1535 = vpop.permute.xlu0 %1534
    %v1537 = vmul.f32 %v1532, %v1535
    %v1538 = vmul.f32 %v1519, %v1330
    %v1539 = vadd.f32 %v1537, %v1538
    %1541 = vrot.lane.b32.xlu0 %v1512, 96
    %v1542 = vpop.permute.xlu0 %1541
    %1544 = vst.msk [vmem:[#allocation3 + $0xa] sm:$0x3] %vm497, %v1542
    %1545 = vst.msk [vmem:[#allocation3 + $0x4] sm:$0x3] %vm499, %v1539
    %v1546 = vld [vmem:[#allocation2 + $0xc] sm:$0x3]
    %v1547 = vld [vmem:[%s263 + $0x2] sm:$0x3]
    %v1548 = vsel %vm90, %v1542, 0
    %1550 = vmatprep.subr.mxu0 0.0
    %1551 = vmatpush1.msra.mxu0 %v266
    %1552 = vmatprep.subr.mxu0 0.0
    %1553 = vmatpush1.msra.mxu0 %v267
    %1554 = vmatprep.subr.mxu0 0.0
    %1555 = vmatpush1.msra.mxu0 %v268
    %1556 = vmatprep.subr.mxu0 0.0
    %1557 = vmatpush1.msra.mxu0 %v269
    %1558 = vmatprep.subr.mxu0 0.0
    %1559 = vmatpush1.msra.mxu0 0.0
    %1560 = vmatprep.subr.mxu0 0.0
    %1561 = vmatpush1.msra.mxu0 0.0
    %1562 = vmatprep.subr.mxu0 0.0
    %1563 = vmatpush1.msra.mxu0 0.0
    %1564 = vmatprep.subr.mxu0 0.0
    %1565 = vmatpush1.msra.mxu0 0.0
    %1566 = vmatprep.subr.mxu0 0.0
    %1567 = vmatpush1.msra.mxu0 0.0
    %1568 = vmatprep.subr.mxu0 0.0
    %1569 = vmatpush1.msra.mxu0 0.0
    %1570 = vmatprep.subr.mxu0 0.0
    %1571 = vmatpush1.msra.mxu0 0.0
    %1572 = vmatprep.subr.mxu0 0.0
    %1573 = vmatpush1.msra.mxu0 0.0
    %1574 = vmatprep.subr.mxu0 0.0
    %1575 = vmatpush1.msra.mxu0 0.0
    %1576 = vmatprep.subr.mxu0 0.0
    %1577 = vmatpush1.msra.mxu0 0.0
    %1578 = vmatprep.subr.mxu0 0.0
    %1579 = vmatpush1.msra.mxu0 0.0
    %1580 = vmatprep.subr.mxu0 0.0
    %1581 = vmatpush1.msra.mxu0 0.0
    %1582 = vmatprep.subr.mxu0 0.0
    %1583 = vmatpush1.msra.mxu0 0.0
    %1584 = vmatprep.subr.mxu0 0.0
    %1585 = vmatpush1.msra.mxu0 0.0
    %1586 = vmatprep.subr.mxu0 0.0
    %1587 = vmatpush1.msra.mxu0 0.0
    %1588 = vmatprep.subr.mxu0 0.0
    %1589 = vmatpush1.msra.mxu0 0.0
    %1590 = vmatprep.subr.mxu0 0.0
    %1591 = vmatpush1.msra.mxu0 0.0
    %1592 = vmatprep.subr.mxu0 0.0
    %1593 = vmatpush1.msra.mxu0 0.0
    %1594 = vmatprep.subr.mxu0 0.0
    %1595 = vmatpush1.msra.mxu0 0.0
    %1596 = vmatprep.subr.mxu0 0.0
    %1597 = vmatpush1.msra.mxu0 0.0
    %1598 = vmatprep.subr.mxu0 0.0
    %1599 = vmatpush1.msra.mxu0 0.0
    %1600 = vmatprep.subr.mxu0 0.0
    %1601 = vmatpush1.msra.mxu0 0.0
    %1602 = vmatprep.subr.mxu0 0.0
    %1603 = vmatpush1.msra.mxu0 0.0
    %1604 = vmatprep.subr.mxu0 0.0
    %1605 = vmatpush1.msra.mxu0 0.0
    %1606 = vmatprep.subr.mxu0 0.0
    %1607 = vmatpush1.msra.mxu0 0.0
    %1608 = vmatprep.subr.mxu0 0.0
    %1609 = vmatpush1.msra.mxu0 0.0
    %1610 = vmatprep.subr.mxu0 0.0
    %1611 = vmatpush1.msra.mxu0 0.0
    %1612 = vmatprep.subr.mxu0 0.0
    %1613 = vmatpush1.msra.mxu0 0.0
    %1614 = vmatprep.mubr.f32.mxu0 0.0
    %1615 = vmatmul.mubr.f32.gmra.mrb[0].mxu0 %v1548
    %v1616 = vpop.f32.mrb[0].mxu0
    %v1617 = vadd.f32 0.0, %v1616
    %v1618 = vpop.f32.mrb[0].mxu0
    %1619 = vdwg.mxu0
    %1621 = vrot.lane.b32.xlu0 %v1539, 96
    %v1622 = vpop.permute.xlu0 %1621
    %v1623 = vsel %vm90, %v1622, 0
    %1625 = vmatprep.subr.mxu0 0.0
    %1626 = vmatpush1.msra.mxu0 %v271
    %1627 = vmatprep.subr.mxu0 0.0
    %1628 = vmatpush1.msra.mxu0 %v272
    %1629 = vmatprep.subr.mxu0 0.0
    %1630 = vmatpush1.msra.mxu0 %v273
    %1631 = vmatprep.subr.mxu0 0.0
    %1632 = vmatpush1.msra.mxu0 %v274
    %1633 = vmatprep.subr.mxu0 0.0
    %1634 = vmatpush1.msra.mxu0 0.0
    %1635 = vmatprep.subr.mxu0 0.0
    %1636 = vmatpush1.msra.mxu0 0.0
    %1637 = vmatprep.subr.mxu0 0.0
    %1638 = vmatpush1.msra.mxu0 0.0
    %1639 = vmatprep.subr.mxu0 0.0
    %1640 = vmatpush1.msra.mxu0 0.0
    %1641 = vmatprep.subr.mxu0 0.0
    %1642 = vmatpush1.msra.mxu0 0.0
    %1643 = vmatprep.subr.mxu0 0.0
    %1644 = vmatpush1.msra.mxu0 0.0
    %1645 = vmatprep.subr.mxu0 0.0
    %1646 = vmatpush1.msra.mxu0 0.0
    %1647 = vmatprep.subr.mxu0 0.0
    %1648 = vmatpush1.msra.mxu0 0.0
    %1649 = vmatprep.subr.mxu0 0.0
    %1650 = vmatpush1.msra.mxu0 0.0
    %1651 = vmatprep.subr.mxu0 0.0
    %1652 = vmatpush1.msra.mxu0 0.0
    %1653 = vmatprep.subr.mxu0 0.0
    %1654 = vmatpush1.msra.mxu0 0.0
    %1655 = vmatprep.subr.mxu0 0.0
    %1656 = vmatpush1.msra.mxu0 0.0
    %1657 = vmatprep.subr.mxu0 0.0
    %1658 = vmatpush1.msra.mxu0 0.0
    %1659 = vmatprep.subr.mxu0 0.0
    %1660 = vmatpush1.msra.mxu0 0.0
    %1661 = vmatprep.subr.mxu0 0.0
    %1662 = vmatpush1.msra.mxu0 0.0
    %1663 = vmatprep.subr.mxu0 0.0
    %1664 = vmatpush1.msra.mxu0 0.0
    %1665 = vmatprep.subr.mxu0 0.0
    %1666 = vmatpush1.msra.mxu0 0.0
    %1667 = vmatprep.subr.mxu0 0.0
    %1668 = vmatpush1.msra.mxu0 0.0
    %1669 = vmatprep.subr.mxu0 0.0
    %1670 = vmatpush1.msra.mxu0 0.0
    %1671 = vmatprep.subr.mxu0 0.0
    %1672 = vmatpush1.msra.mxu0 0.0
    %1673 = vmatprep.subr.mxu0 0.0
    %1674 = vmatpush1.msra.mxu0 0.0
    %1675 = vmatprep.subr.mxu0 0.0
    %1676 = vmatpush1.msra.mxu0 0.0
    %1677 = vmatprep.subr.mxu0 0.0
    %1678 = vmatpush1.msra.mxu0 0.0
    %1679 = vmatprep.subr.mxu0 0.0
    %1680 = vmatpush1.msra.mxu0 0.0
    %1681 = vmatprep.subr.mxu0 0.0
    %1682 = vmatpush1.msra.mxu0 0.0
    %1683 = vmatprep.subr.mxu0 0.0
    %1684 = vmatpush1.msra.mxu0 0.0
    %1685 = vmatprep.subr.mxu0 0.0
    %1686 = vmatpush1.msra.mxu0 0.0
    %1687 = vmatprep.subr.mxu0 0.0
    %1688 = vmatpush1.msra.mxu0 0.0
    %1689 = vmatprep.mubr.f32.mxu0 0.0
    %1690 = vmatmul.mubr.f32.gmra.mrb[0].mxu0 %v1623
    %v1691 = vpop.f32.mrb[0].mxu0
    %v1692 = vadd.f32 0.0, %v1691
    %v1693 = vpop.f32.mrb[0].mxu0
    %1694 = vdwg.mxu0
    %v1695 = vadd.f32 %v1546, %v1617
    %v1696 = vxor.u32 %v1695, 2147483648
    %v1697 = vmul.f32 %v1696, 1.442695
    %v1698 = vpow.pop %v1697
    %v1699 = vadd.f32 %v1698, 1.0
    %v1700 = vrcp.pop %v1699
    %v1701 = vmul.f32 1.0, %v1700
    %v1702 = vadd.f32 %v1617, %v436
    %1704 = vrot.lane.b32.xlu0 %v1702, 64
    %v1705 = vpop.permute.xlu0 %1704
    %v1707 = vmul.f32 %v1701, %v1705
    %1709 = vrot.lane.b32.xlu0 %v1707, 64
    %v1710 = vpop.permute.xlu0 %1709
    %v1712 = vadd.f32 %v1546, %v1710
    %v1713 = vtanh.pop %v1712
    %v1714 = vsub.f32 1.0, %v1701
    %1716 = vrot.lane.b32.xlu0 %v1713, 96
    %v1717 = vpop.permute.xlu0 %1716
    %v1719 = vmul.f32 %v1714, %v1717
    %v1720 = vmul.f32 %v1701, %v1512
    %v1721 = vadd.f32 %v1719, %v1720
    %v1722 = vadd.f32 %v1547, %v1692
    %v1723 = vxor.u32 %v1722, 2147483648
    %v1724 = vmul.f32 %v1723, 1.442695
    %v1725 = vpow.pop %v1724
    %v1726 = vadd.f32 %v1725, 1.0
    %v1727 = vrcp.pop %v1726
    %v1728 = vmul.f32 1.0, %v1727
    %v1729 = vadd.f32 %v1692, %v471
    %1731 = vrot.lane.b32.xlu0 %v1729, 64
    %v1732 = vpop.permute.xlu0 %1731
    %v1734 = vmul.f32 %v1728, %v1732
    %1736 = vrot.lane.b32.xlu0 %v1734, 64
    %v1737 = vpop.permute.xlu0 %1736
    %v1739 = vadd.f32 %v1547, %v1737
    %v1740 = vtanh.pop %v1739
    %v1741 = vsub.f32 1.0, %v1728
    %1743 = vrot.lane.b32.xlu0 %v1740, 96
    %v1744 = vpop.permute.xlu0 %1743
    %v1746 = vmul.f32 %v1741, %v1744
    %v1747 = vmul.f32 %v1728, %v1539
    %v1748 = vadd.f32 %v1746, %v1747
    %1750 = vrot.lane.b32.xlu0 %v1721, 96
    %v1751 = vpop.permute.xlu0 %1750
    %1753 = vst.msk [vmem:[#allocation3 + $0xc] sm:$0x3] %vm497, %v1751
    %1754 = vst.msk [vmem:[#allocation3 + $0x2] sm:$0x3] %vm499, %v1748
    %v1755 = vld [vmem:[#allocation2 + $0xe] sm:$0x3]
    %v1756 = vld [vmem:[%s263] sm:$0x3]
    %v1757 = vsel %vm90, %v1751, 0
    %1759 = vmatprep.subr.mxu0 0.0
    %1760 = vmatpush1.msra.mxu0 %v266
    %1761 = vmatprep.subr.mxu0 0.0
    %1762 = vmatpush1.msra.mxu0 %v267
    %1763 = vmatprep.subr.mxu0 0.0
    %1764 = vmatpush1.msra.mxu0 %v268
    %1765 = vmatprep.subr.mxu0 0.0
    %1766 = vmatpush1.msra.mxu0 %v269
    %1767 = vmatprep.subr.mxu0 0.0
    %1768 = vmatpush1.msra.mxu0 0.0
    %1769 = vmatprep.subr.mxu0 0.0
    %1770 = vmatpush1.msra.mxu0 0.0
    %1771 = vmatprep.subr.mxu0 0.0
    %1772 = vmatpush1.msra.mxu0 0.0
    %1773 = vmatprep.subr.mxu0 0.0
    %1774 = vmatpush1.msra.mxu0 0.0
    %1775 = vmatprep.subr.mxu0 0.0
    %1776 = vmatpush1.msra.mxu0 0.0
    %1777 = vmatprep.subr.mxu0 0.0
    %1778 = vmatpush1.msra.mxu0 0.0
    %1779 = vmatprep.subr.mxu0 0.0
    %1780 = vmatpush1.msra.mxu0 0.0
    %1781 = vmatprep.subr.mxu0 0.0
    %1782 = vmatpush1.msra.mxu0 0.0
    %1783 = vmatprep.subr.mxu0 0.0
    %1784 = vmatpush1.msra.mxu0 0.0
    %1785 = vmatprep.subr.mxu0 0.0
    %1786 = vmatpush1.msra.mxu0 0.0
    %1787 = vmatprep.subr.mxu0 0.0
    %1788 = vmatpush1.msra.mxu0 0.0
    %1789 = vmatprep.subr.mxu0 0.0
    %1790 = vmatpush1.msra.mxu0 0.0
    %1791 = vmatprep.subr.mxu0 0.0
    %1792 = vmatpush1.msra.mxu0 0.0
    %1793 = vmatprep.subr.mxu0 0.0
    %1794 = vmatpush1.msra.mxu0 0.0
    %1795 = vmatprep.subr.mxu0 0.0
    %1796 = vmatpush1.msra.mxu0 0.0
    %1797 = vmatprep.subr.mxu0 0.0
    %1798 = vmatpush1.msra.mxu0 0.0
    %1799 = vmatprep.subr.mxu0 0.0
    %1800 = vmatpush1.msra.mxu0 0.0
    %1801 = vmatprep.subr.mxu0 0.0
    %1802 = vmatpush1.msra.mxu0 0.0
    %1803 = vmatprep.subr.mxu0 0.0
    %1804 = vmatpush1.msra.mxu0 0.0
    %1805 = vmatprep.subr.mxu0 0.0
    %1806 = vmatpush1.msra.mxu0 0.0
    %1807 = vmatprep.subr.mxu0 0.0
    %1808 = vmatpush1.msra.mxu0 0.0
    %1809 = vmatprep.subr.mxu0 0.0
    %1810 = vmatpush1.msra.mxu0 0.0
    %1811 = vmatprep.subr.mxu0 0.0
    %1812 = vmatpush1.msra.mxu0 0.0
    %1813 = vmatprep.subr.mxu0 0.0
    %1814 = vmatpush1.msra.mxu0 0.0
    %1815 = vmatprep.subr.mxu0 0.0
    %1816 = vmatpush1.msra.mxu0 0.0
    %1817 = vmatprep.subr.mxu0 0.0
    %1818 = vmatpush1.msra.mxu0 0.0
    %1819 = vmatprep.subr.mxu0 0.0
    %1820 = vmatpush1.msra.mxu0 0.0
    %1821 = vmatprep.subr.mxu0 0.0
    %1822 = vmatpush1.msra.mxu0 0.0
    %1823 = vmatprep.mubr.f32.mxu0 0.0
    %1824 = vmatmul.mubr.f32.gmra.mrb[0].mxu0 %v1757
    %v1825 = vpop.f32.mrb[0].mxu0
    %v1826 = vadd.f32 0.0, %v1825
    %v1827 = vpop.f32.mrb[0].mxu0
    %1828 = vdwg.mxu0
    %1830 = vrot.lane.b32.xlu0 %v1748, 96
    %v1831 = vpop.permute.xlu0 %1830
    %v1832 = vsel %vm90, %v1831, 0
    %1834 = vmatprep.subr.mxu0 0.0
    %1835 = vmatpush1.msra.mxu0 %v271
    %1836 = vmatprep.subr.mxu0 0.0
    %1837 = vmatpush1.msra.mxu0 %v272
    %1838 = vmatprep.subr.mxu0 0.0
    %1839 = vmatpush1.msra.mxu0 %v273
    %1840 = vmatprep.subr.mxu0 0.0
    %1841 = vmatpush1.msra.mxu0 %v274
    %1842 = vmatprep.subr.mxu0 0.0
    %1843 = vmatpush1.msra.mxu0 0.0
    %1844 = vmatprep.subr.mxu0 0.0
    %1845 = vmatpush1.msra.mxu0 0.0
    %1846 = vmatprep.subr.mxu0 0.0
    %1847 = vmatpush1.msra.mxu0 0.0
    %1848 = vmatprep.subr.mxu0 0.0
    %1849 = vmatpush1.msra.mxu0 0.0
    %1850 = vmatprep.subr.mxu0 0.0
    %1851 = vmatpush1.msra.mxu0 0.0
    %1852 = vmatprep.subr.mxu0 0.0
    %1853 = vmatpush1.msra.mxu0 0.0
    %1854 = vmatprep.subr.mxu0 0.0
    %1855 = vmatpush1.msra.mxu0 0.0
    %1856 = vmatprep.subr.mxu0 0.0
    %1857 = vmatpush1.msra.mxu0 0.0
    %1858 = vmatprep.subr.mxu0 0.0
    %1859 = vmatpush1.msra.mxu0 0.0
    %1860 = vmatprep.subr.mxu0 0.0
    %1861 = vmatpush1.msra.mxu0 0.0
    %1862 = vmatprep.subr.mxu0 0.0
    %1863 = vmatpush1.msra.mxu0 0.0
    %1864 = vmatprep.subr.mxu0 0.0
    %1865 = vmatpush1.msra.mxu0 0.0
    %1866 = vmatprep.subr.mxu0 0.0
    %1867 = vmatpush1.msra.mxu0 0.0
    %1868 = vmatprep.subr.mxu0 0.0
    %1869 = vmatpush1.msra.mxu0 0.0
    %1870 = vmatprep.subr.mxu0 0.0
    %1871 = vmatpush1.msra.mxu0 0.0
    %1872 = vmatprep.subr.mxu0 0.0
    %1873 = vmatpush1.msra.mxu0 0.0
    %1874 = vmatprep.subr.mxu0 0.0
    %1875 = vmatpush1.msra.mxu0 0.0
    %1876 = vmatprep.subr.mxu0 0.0
    %1877 = vmatpush1.msra.mxu0 0.0
    %1878 = vmatprep.subr.mxu0 0.0
    %1879 = vmatpush1.msra.mxu0 0.0
    %1880 = vmatprep.subr.mxu0 0.0
    %1881 = vmatpush1.msra.mxu0 0.0
    %1882 = vmatprep.subr.mxu0 0.0
    %1883 = vmatpush1.msra.mxu0 0.0
    %1884 = vmatprep.subr.mxu0 0.0
    %1885 = vmatpush1.msra.mxu0 0.0
    %1886 = vmatprep.subr.mxu0 0.0
    %1887 = vmatpush1.msra.mxu0 0.0
    %1888 = vmatprep.subr.mxu0 0.0
    %1889 = vmatpush1.msra.mxu0 0.0
    %1890 = vmatprep.subr.mxu0 0.0
    %1891 = vmatpush1.msra.mxu0 0.0
    %1892 = vmatprep.subr.mxu0 0.0
    %1893 = vmatpush1.msra.mxu0 0.0
    %1894 = vmatprep.subr.mxu0 0.0
    %1895 = vmatpush1.msra.mxu0 0.0
    %1896 = vmatprep.subr.mxu0 0.0
    %1897 = vmatpush1.msra.mxu0 0.0
    %1898 = vmatprep.mubr.f32.mxu0 0.0
    %1899 = vmatmul.mubr.f32.gmra.mrb[0].mxu0 %v1832
    %v1900 = vpop.f32.mrb[0].mxu0
    %v1901 = vadd.f32 0.0, %v1900
    %v1902 = vpop.f32.mrb[0].mxu0
    %1903 = vdwg.mxu0
    %v1904 = vadd.f32 %v1755, %v1826
    %v1905 = vxor.u32 %v1904, 2147483648
    %v1906 = vmul.f32 %v1905, 1.442695
    %v1907 = vpow.pop %v1906
    %v1908 = vadd.f32 %v1907, 1.0
    %v1909 = vrcp.pop %v1908
    %v1910 = vmul.f32 1.0, %v1909
    %v1911 = vadd.f32 %v1826, %v436
    %1913 = vrot.lane.b32.xlu0 %v1911, 64
    %v1914 = vpop.permute.xlu0 %1913
    %v1916 = vmul.f32 %v1910, %v1914
    %1918 = vrot.lane.b32.xlu0 %v1916, 64
    %v1919 = vpop.permute.xlu0 %1918
    %v1921 = vadd.f32 %v1755, %v1919
    %v1922 = vtanh.pop %v1921
    %v1923 = vsub.f32 1.0, %v1910
    %1925 = vrot.lane.b32.xlu0 %v1922, 96
    %v1926 = vpop.permute.xlu0 %1925
    %v1928 = vmul.f32 %v1923, %v1926
    %v1929 = vmul.f32 %v1910, %v1721
    %v1930 = vadd.f32 %v1928, %v1929
    %v1931 = vadd.f32 %v1756, %v1901
    %v1932 = vxor.u32 %v1931, 2147483648
    %v1933 = vmul.f32 %v1932, 1.442695
    %v1934 = vpow.pop %v1933
    %v1935 = vadd.f32 %v1934, 1.0
    %v1936 = vrcp.pop %v1935
    %v1937 = vmul.f32 1.0, %v1936
    %v1938 = vadd.f32 %v1901, %v471
    %1940 = vrot.lane.b32.xlu0 %v1938, 64
    %v1941 = vpop.permute.xlu0 %1940
    %v1943 = vmul.f32 %v1937, %v1941
    %1945 = vrot.lane.b32.xlu0 %v1943, 64
    %v1946 = vpop.permute.xlu0 %1945
    %v1948 = vadd.f32 %v1756, %v1946
    %v1949 = vtanh.pop %v1948
    %v1950 = vsub.f32 1.0, %v1937
    %1952 = vrot.lane.b32.xlu0 %v1949, 96
    %v1953 = vpop.permute.xlu0 %1952
    %v1955 = vmul.f32 %v1950, %v1953
    %v1956 = vmul.f32 %v1937, %v1748
    %v1957 = vadd.f32 %v1955, %v1956
    %1959 = vrot.lane.b32.xlu0 %v1930, 96
    %v1960 = vpop.permute.xlu0 %1959
    %1962 = vst.msk [vmem:[#allocation3 + $0xe] sm:$0x3] %vm497, %v1960
    %1963 = vst.msk [vmem:[#allocation3] sm:$0x3] %vm499, %v1957
    %v1964 = vld [vmem:[#allocation3] sm:$0xff]
    %v1965 = vld [vmem:[#allocation3 + $0x8] sm:$0xff]
    %v1966 = vld [vmem:[%s6] sm:$0xff]
    %v1967 = vld [vmem:[%s6 + $0x8] sm:$0xff]
    %v1968 = vld [vmem:[%s6 + $0x10] sm:$0xff]
    %v1969 = vld [vmem:[%s6 + $0x18] sm:$0xff]
    %v1970 = vld [vmem:[%s6 + $0x20] sm:$0xff]
    %v1971 = vld [vmem:[%s6 + $0x28] sm:$0xff]
    %v1972 = vld [vmem:[%s6 + $0x30] sm:$0xff]
    %v1973 = vld [vmem:[%s6 + $0x38] sm:$0xff]
    %v1974 = vld [vmem:[%s8] sm:$0x1]
    %v1976 = vlaneseq
    %v1977 = vshrl.u32 %v1976, 7
    %v1978 = vsub.s32 0, %v1977
    %v1979 = vrot.slane %v1974, %v1978
    %vm1981 = vcmask 523264
    %v1983 = vsel %vm1981, %v1964, 0
    %v1986 = vsel %vm1981, %v1965, 0
    %1988 = vmatprep.subr.mxu0 0.0
    %1989 = vmatpush1.msra.mxu0 %v1966
    %1990 = vmatprep.subr.mxu0 0.0
    %1991 = vmatpush1.msra.mxu0 %v1967
    %1992 = vmatprep.subr.mxu0 0.0
    %1993 = vmatpush1.msra.mxu0 %v1968
    %1994 = vmatprep.subr.mxu0 0.0
    %1995 = vmatpush1.msra.mxu0 %v1969
    %1996 = vmatprep.subr.mxu0 0.0
    %1997 = vmatpush1.msra.mxu0 %v1970
    %1998 = vmatprep.subr.mxu0 0.0
    %1999 = vmatpush1.msra.mxu0 %v1971
    %2000 = vmatprep.subr.mxu0 0.0
    %2001 = vmatpush1.msra.mxu0 %v1972
    %2002 = vmatprep.subr.mxu0 0.0
    %2003 = vmatpush1.msra.mxu0 %v1973
    %2004 = vmatprep.subr.mxu0 0.0
    %2005 = vmatpush1.msra.mxu0 0.0
    %2006 = vmatprep.subr.mxu0 0.0
    %2007 = vmatpush1.msra.mxu0 0.0
    %2008 = vmatprep.subr.mxu0 0.0
    %2009 = vmatpush1.msra.mxu0 0.0
    %2010 = vmatprep.subr.mxu0 0.0
    %2011 = vmatpush1.msra.mxu0 0.0
    %2012 = vmatprep.subr.mxu0 0.0
    %2013 = vmatpush1.msra.mxu0 0.0
    %2014 = vmatprep.subr.mxu0 0.0
    %2015 = vmatpush1.msra.mxu0 0.0
    %2016 = vmatprep.subr.mxu0 0.0
    %2017 = vmatpush1.msra.mxu0 0.0
    %2018 = vmatprep.subr.mxu0 0.0
    %2019 = vmatpush1.msra.mxu0 0.0
    %2020 = vmatprep.subr.mxu0 0.0
    %2021 = vmatpush1.msra.mxu0 0.0
    %2022 = vmatprep.subr.mxu0 0.0
    %2023 = vmatpush1.msra.mxu0 0.0
    %2024 = vmatprep.subr.mxu0 0.0
    %2025 = vmatpush1.msra.mxu0 0.0
    %2026 = vmatprep.subr.mxu0 0.0
    %2027 = vmatpush1.msra.mxu0 0.0
    %2028 = vmatprep.subr.mxu0 0.0
    %2029 = vmatpush1.msra.mxu0 0.0
    %2030 = vmatprep.subr.mxu0 0.0
    %2031 = vmatpush1.msra.mxu0 0.0
    %2032 = vmatprep.subr.mxu0 0.0
    %2033 = vmatpush1.msra.mxu0 0.0
    %2034 = vmatprep.subr.mxu0 0.0
    %2035 = vmatpush1.msra.mxu0 0.0
    %2036 = vmatprep.subr.mxu0 0.0
    %2037 = vmatpush1.msra.mxu0 0.0
    %2038 = vmatprep.subr.mxu0 0.0
    %2039 = vmatpush1.msra.mxu0 0.0
    %2040 = vmatprep.subr.mxu0 0.0
    %2041 = vmatpush1.msra.mxu0 0.0
    %2042 = vmatprep.subr.mxu0 0.0
    %2043 = vmatpush1.msra.mxu0 0.0
    %2044 = vmatprep.subr.mxu0 0.0
    %2045 = vmatpush1.msra.mxu0 0.0
    %2046 = vmatprep.subr.mxu0 0.0
    %2047 = vmatpush1.msra.mxu0 0.0
    %2048 = vmatprep.subr.mxu0 0.0
    %2049 = vmatpush1.msra.mxu0 0.0
    %2050 = vmatprep.subr.mxu0 0.0
    %2051 = vmatpush1.msra.mxu0 0.0
    %2052 = vmatprep.mubr.f32.mxu0 0.0
    %2053 = vmatmul.mubr.f32.gmra.mrb[0].mxu0 %v1983
    %v2054 = vpop.f32.mrb[0].mxu0
    %v2055 = vadd.f32 %v1979, %v2054
    %v2056 = vpop.f32.mrb[0].mxu0
    %2057 = vmatprep.mubr.f32.mxu0 0.0
    %2058 = vmatmul.mubr.f32.gmra.mrb[0].mxu0 %v1986
    %v2059 = vpop.f32.mrb[0].mxu0
    %v2060 = vadd.f32 %v1979, %v2059
    %v2061 = vpop.f32.mrb[0].mxu0
    %2062 = vdwg.mxu0
    %2063 = vst.msk [vmem:[#allocation4] sm:$0xff] %vm172, %v2055
    %2064 = vst.msk [vmem:[#allocation4 + $0x8] sm:$0xff] %vm172, %v2060
    %s2065 = scalar_lea.vmem %s6, 64
    %v2066 = vld [vmem:[%s2065] sm:$0xff]
    %v2067 = vld [vmem:[%s2065 + $0x8] sm:$0xff]
    %v2068 = vld [vmem:[%s2065 + $0x10] sm:$0xff]
    %v2069 = vld [vmem:[%s2065 + $0x18] sm:$0xff]
    %v2070 = vld [vmem:[%s2065 + $0x20] sm:$0xff]
    %v2071 = vld [vmem:[%s2065 + $0x28] sm:$0xff]
    %v2072 = vld [vmem:[%s2065 + $0x30] sm:$0xff]
    %v2073 = vld [vmem:[%s2065 + $0x38] sm:$0xff]
    %s2074 = scalar_lea.vmem %s8, 1
    %v2075 = vld [vmem:[%s2074] sm:$0x1]
    %v2077 = vlaneseq
    %v2078 = vshrl.u32 %v2077, 7
    %v2079 = vsub.s32 0, %v2078
    %v2080 = vrot.slane %v2075, %v2079
    %2082 = vmatprep.subr.mxu0 0.0
    %2083 = vmatpush1.msra.mxu0 %v2066
    %2084 = vmatprep.subr.mxu0 0.0
    %2085 = vmatpush1.msra.mxu0 %v2067
    %2086 = vmatprep.subr.mxu0 0.0
    %2087 = vmatpush1.msra.mxu0 %v2068
    %2088 = vmatprep.subr.mxu0 0.0
    %2089 = vmatpush1.msra.mxu0 %v2069
    %2090 = vmatprep.subr.mxu0 0.0
    %2091 = vmatpush1.msra.mxu0 %v2070
    %2092 = vmatprep.subr.mxu0 0.0
    %2093 = vmatpush1.msra.mxu0 %v2071
    %2094 = vmatprep.subr.mxu0 0.0
    %2095 = vmatpush1.msra.mxu0 %v2072
    %2096 = vmatprep.subr.mxu0 0.0
    %2097 = vmatpush1.msra.mxu0 %v2073
    %2098 = vmatprep.subr.mxu0 0.0
    %2099 = vmatpush1.msra.mxu0 0.0
    %2100 = vmatprep.subr.mxu0 0.0
    %2101 = vmatpush1.msra.mxu0 0.0
    %2102 = vmatprep.subr.mxu0 0.0
    %2103 = vmatpush1.msra.mxu0 0.0
    %2104 = vmatprep.subr.mxu0 0.0
    %2105 = vmatpush1.msra.mxu0 0.0
    %2106 = vmatprep.subr.mxu0 0.0
    %2107 = vmatpush1.msra.mxu0 0.0
    %2108 = vmatprep.subr.mxu0 0.0
    %2109 = vmatpush1.msra.mxu0 0.0
    %2110 = vmatprep.subr.mxu0 0.0
    %2111 = vmatpush1.msra.mxu0 0.0
    %2112 = vmatprep.subr.mxu0 0.0
    %2113 = vmatpush1.msra.mxu0 0.0
    %2114 = vmatprep.subr.mxu0 0.0
    %2115 = vmatpush1.msra.mxu0 0.0
    %2116 = vmatprep.subr.mxu0 0.0
    %2117 = vmatpush1.msra.mxu0 0.0
    %2118 = vmatprep.subr.mxu0 0.0
    %2119 = vmatpush1.msra.mxu0 0.0
    %2120 = vmatprep.subr.mxu0 0.0
    %2121 = vmatpush1.msra.mxu0 0.0
    %2122 = vmatprep.subr.mxu0 0.0
    %2123 = vmatpush1.msra.mxu0 0.0
    %2124 = vmatprep.subr.mxu0 0.0
    %2125 = vmatpush1.msra.mxu0 0.0
    %2126 = vmatprep.subr.mxu0 0.0
    %2127 = vmatpush1.msra.mxu0 0.0
    %2128 = vmatprep.subr.mxu0 0.0
    %2129 = vmatpush1.msra.mxu0 0.0
    %2130 = vmatprep.subr.mxu0 0.0
    %2131 = vmatpush1.msra.mxu0 0.0
    %2132 = vmatprep.subr.mxu0 0.0
    %2133 = vmatpush1.msra.mxu0 0.0
    %2134 = vmatprep.subr.mxu0 0.0
    %2135 = vmatpush1.msra.mxu0 0.0
    %2136 = vmatprep.subr.mxu0 0.0
    %2137 = vmatpush1.msra.mxu0 0.0
    %2138 = vmatprep.subr.mxu0 0.0
    %2139 = vmatpush1.msra.mxu0 0.0
    %2140 = vmatprep.subr.mxu0 0.0
    %2141 = vmatpush1.msra.mxu0 0.0
    %2142 = vmatprep.subr.mxu0 0.0
    %2143 = vmatpush1.msra.mxu0 0.0
    %2144 = vmatprep.subr.mxu0 0.0
    %2145 = vmatpush1.msra.mxu0 0.0
    %2146 = vmatprep.mubr.f32.mxu0 0.0
    %2147 = vmatmul.mubr.f32.gmra.mrb[0].mxu0 %v1983
    %v2148 = vpop.f32.mrb[0].mxu0
    %v2149 = vadd.f32 %v2080, %v2148
    %v2150 = vpop.f32.mrb[0].mxu0
    %2151 = vmatprep.mubr.f32.mxu0 0.0
    %2152 = vmatmul.mubr.f32.gmra.mrb[0].mxu0 %v1986
    %v2153 = vpop.f32.mrb[0].mxu0
    %v2154 = vadd.f32 %v2080, %v2153
    %v2155 = vpop.f32.mrb[0].mxu0
    %2156 = vdwg.mxu0
    %s2157 = scalar_lea.vmem [#allocation4], 16
    %2158 = vst.msk [vmem:[%s2157] sm:$0xff] %vm172, %v2149
    %2159 = vst.msk [vmem:[%s2157 + $0x8] sm:$0xff] %vm172, %v2154
    %v2160 = vld [vmem:[#allocation9] sm:$0xff]
    %v2161 = vld [vmem:[#allocation9 + $0x8] sm:$0xff]
    %v2162 = vld [vmem:[#allocation9 + $0x10] sm:$0xff]
    %v2163 = vld [vmem:[#allocation9 + $0x18] sm:$0xff]
    %s2164 = scalar_lea.vmem [#allocation9], 32
    %v2165 = vld [vmem:[%s2164] sm:$0xff]
    %v2166 = vld [vmem:[%s2164 + $0x8] sm:$0xff]
    %v2167 = vld [vmem:[%s2164 + $0x10] sm:$0xff]
    %v2168 = vld [vmem:[%s2164 + $0x18] sm:$0xff]
    %v2169 = vld [vmem:[%s9] sm:$0x1]
    %s2170 = scalar_lea.vmem %s9, 1
    %v2171 = vld [vmem:[%s2170] sm:$0x1]
    %v2172 = vld [vmem:[#allocation4] sm:$0x3]
    %v2173 = vld [vmem:[%s2157 + $0xe] sm:$0x3]
    %2174 = vmatprep.subr.mxu0 0.0
    %2175 = vmatpush1.msra.mxu0 %v2160
    %2176 = vmatprep.subr.mxu0 0.0
    %2177 = vmatpush1.msra.mxu0 %v2161
    %2178 = vmatprep.subr.mxu0 0.0
    %2179 = vmatpush1.msra.mxu0 %v2162
    %2180 = vmatprep.subr.mxu0 0.0
    %2181 = vmatpush1.msra.mxu0 %v2163
    %2182 = vmatprep.subr.mxu0 0.0
    %2183 = vmatpush1.msra.mxu0 0.0
    %2184 = vmatprep.subr.mxu0 0.0
    %2185 = vmatpush1.msra.mxu0 0.0
    %2186 = vmatprep.subr.mxu0 0.0
    %2187 = vmatpush1.msra.mxu0 0.0
    %2188 = vmatprep.subr.mxu0 0.0
    %2189 = vmatpush1.msra.mxu0 0.0
    %2190 = vmatprep.subr.mxu0 0.0
    %2191 = vmatpush1.msra.mxu0 0.0
    %2192 = vmatprep.subr.mxu0 0.0
    %2193 = vmatpush1.msra.mxu0 0.0
    %2194 = vmatprep.subr.mxu0 0.0
    %2195 = vmatpush1.msra.mxu0 0.0
    %2196 = vmatprep.subr.mxu0 0.0
    %2197 = vmatpush1.msra.mxu0 0.0
    %2198 = vmatprep.subr.mxu0 0.0
    %2199 = vmatpush1.msra.mxu0 0.0
    %2200 = vmatprep.subr.mxu0 0.0
    %2201 = vmatpush1.msra.mxu0 0.0
    %2202 = vmatprep.subr.mxu0 0.0
    %2203 = vmatpush1.msra.mxu0 0.0
    %2204 = vmatprep.subr.mxu0 0.0
    %2205 = vmatpush1.msra.mxu0 0.0
    %2206 = vmatprep.subr.mxu0 0.0
    %2207 = vmatpush1.msra.mxu0 0.0
    %2208 = vmatprep.subr.mxu0 0.0
    %2209 = vmatpush1.msra.mxu0 0.0
    %2210 = vmatprep.subr.mxu0 0.0
    %2211 = vmatpush1.msra.mxu0 0.0
    %2212 = vmatprep.subr.mxu0 0.0
    %2213 = vmatpush1.msra.mxu0 0.0
    %2214 = vmatprep.subr.mxu0 0.0
    %2215 = vmatpush1.msra.mxu0 0.0
    %2216 = vmatprep.subr.mxu0 0.0
    %2217 = vmatpush1.msra.mxu0 0.0
    %2218 = vmatprep.subr.mxu0 0.0
    %2219 = vmatpush1.msra.mxu0 0.0
    %2220 = vmatprep.subr.mxu0 0.0
    %2221 = vmatpush1.msra.mxu0 0.0
    %2222 = vmatprep.subr.mxu0 0.0
    %2223 = vmatpush1.msra.mxu0 0.0
    %2224 = vmatprep.subr.mxu0 0.0
    %2225 = vmatpush1.msra.mxu0 0.0
    %2226 = vmatprep.subr.mxu0 0.0
    %2227 = vmatpush1.msra.mxu0 0.0
    %2228 = vmatprep.subr.mxu0 0.0
    %2229 = vmatpush1.msra.mxu0 0.0
    %2230 = vmatprep.subr.mxu0 0.0
    %2231 = vmatpush1.msra.mxu0 0.0
    %2232 = vmatprep.subr.mxu0 0.0
    %2233 = vmatpush1.msra.mxu0 0.0
    %2234 = vmatprep.subr.mxu0 0.0
    %2235 = vmatpush1.msra.mxu0 0.0
    %2236 = vmatprep.subr.mxu0 0.0
    %2237 = vmatpush1.msra.mxu0 0.0
    %2238 = vmatprep.mubr.f32.mxu0 0.0
    %2239 = vmatmul.mubr.f32.gmra.mrb[0].mxu0 %v281
    %v2240 = vpop.f32.mrb[0].mxu0
    %v2241 = vadd.f32 0.0, %v2240
    %v2242 = vpop.f32.mrb[0].mxu0
    %2243 = vdwg.mxu0
    %2244 = vmatprep.subr.mxu0 0.0
    %2245 = vmatpush1.msra.mxu0 %v2165
    %2246 = vmatprep.subr.mxu0 0.0
    %2247 = vmatpush1.msra.mxu0 %v2166
    %2248 = vmatprep.subr.mxu0 0.0
    %2249 = vmatpush1.msra.mxu0 %v2167
    %2250 = vmatprep.subr.mxu0 0.0
    %2251 = vmatpush1.msra.mxu0 %v2168
    %2252 = vmatprep.subr.mxu0 0.0
    %2253 = vmatpush1.msra.mxu0 0.0
    %2254 = vmatprep.subr.mxu0 0.0
    %2255 = vmatpush1.msra.mxu0 0.0
    %2256 = vmatprep.subr.mxu0 0.0
    %2257 = vmatpush1.msra.mxu0 0.0
    %2258 = vmatprep.subr.mxu0 0.0
    %2259 = vmatpush1.msra.mxu0 0.0
    %2260 = vmatprep.subr.mxu0 0.0
    %2261 = vmatpush1.msra.mxu0 0.0
    %2262 = vmatprep.subr.mxu0 0.0
    %2263 = vmatpush1.msra.mxu0 0.0
    %2264 = vmatprep.subr.mxu0 0.0
    %2265 = vmatpush1.msra.mxu0 0.0
    %2266 = vmatprep.subr.mxu0 0.0
    %2267 = vmatpush1.msra.mxu0 0.0
    %2268 = vmatprep.subr.mxu0 0.0
    %2269 = vmatpush1.msra.mxu0 0.0
    %2270 = vmatprep.subr.mxu0 0.0
    %2271 = vmatpush1.msra.mxu0 0.0
    %2272 = vmatprep.subr.mxu0 0.0
    %2273 = vmatpush1.msra.mxu0 0.0
    %2274 = vmatprep.subr.mxu0 0.0
    %2275 = vmatpush1.msra.mxu0 0.0
    %2276 = vmatprep.subr.mxu0 0.0
    %2277 = vmatpush1.msra.mxu0 0.0
    %2278 = vmatprep.subr.mxu0 0.0
    %2279 = vmatpush1.msra.mxu0 0.0
    %2280 = vmatprep.subr.mxu0 0.0
    %2281 = vmatpush1.msra.mxu0 0.0
    %2282 = vmatprep.subr.mxu0 0.0
    %2283 = vmatpush1.msra.mxu0 0.0
    %2284 = vmatprep.subr.mxu0 0.0
    %2285 = vmatpush1.msra.mxu0 0.0
    %2286 = vmatprep.subr.mxu0 0.0
    %2287 = vmatpush1.msra.mxu0 0.0
    %2288 = vmatprep.subr.mxu0 0.0
    %2289 = vmatpush1.msra.mxu0 0.0
    %2290 = vmatprep.subr.mxu0 0.0
    %2291 = vmatpush1.msra.mxu0 0.0
    %2292 = vmatprep.subr.mxu0 0.0
    %2293 = vmatpush1.msra.mxu0 0.0
    %2294 = vmatprep.subr.mxu0 0.0
    %2295 = vmatpush1.msra.mxu0 0.0
    %2296 = vmatprep.subr.mxu0 0.0
    %2297 = vmatpush1.msra.mxu0 0.0
    %2298 = vmatprep.subr.mxu0 0.0
    %2299 = vmatpush1.msra.mxu0 0.0
    %2300 = vmatprep.subr.mxu0 0.0
    %2301 = vmatpush1.msra.mxu0 0.0
    %2302 = vmatprep.subr.mxu0 0.0
    %2303 = vmatpush1.msra.mxu0 0.0
    %2304 = vmatprep.subr.mxu0 0.0
    %2305 = vmatpush1.msra.mxu0 0.0
    %2306 = vmatprep.subr.mxu0 0.0
    %2307 = vmatpush1.msra.mxu0 0.0
    %2308 = vmatprep.mubr.f32.mxu0 0.0
    %2309 = vmatmul.mubr.f32.gmra.mrb[0].mxu0 %v281
    %v2310 = vpop.f32.mrb[0].mxu0
    %v2311 = vadd.f32 0.0, %v2310
    %v2312 = vpop.f32.mrb[0].mxu0
    %2313 = vdwg.mxu0
    %v2314 = vadd.f32 %v2172, %v2241
    %v2315 = vxor.u32 %v2314, 2147483648
    %v2316 = vmul.f32 %v2315, 1.442695
    %v2317 = vpow.pop %v2316
    %v2318 = vadd.f32 %v2317, 1.0
    %v2319 = vrcp.pop %v2318
    %v2320 = vmul.f32 1.0, %v2319
    %v2322 = vlaneseq
    %v2323 = vshrl.u32 %v2322, 7
    %v2324 = vsub.s32 0, %v2323
    %v2325 = vrot.slane %v2169, %v2324
    %2326 = vrot.lane.b32.xlu0 %v2325, 64
    %v2327 = vpop.permute.xlu0 %2326
    %v2329 = vadd.f32 %v2241, %v2327
    %2331 = vrot.lane.b32.xlu0 %v2329, 64
    %v2332 = vpop.permute.xlu0 %2331
    %v2334 = vmul.f32 %v2320, %v2332
    %2336 = vrot.lane.b32.xlu0 %v2334, 64
    %v2337 = vpop.permute.xlu0 %2336
    %v2339 = vadd.f32 %v2172, %v2337
    %v2340 = vtanh.pop %v2339
    %v2341 = vsub.f32 1.0, %v2320
    %2343 = vrot.lane.b32.xlu0 %v2340, 96
    %v2344 = vpop.permute.xlu0 %2343
    %v2346 = vmul.f32 %v2341, %v2344
    %v2347 = vmul.f32 %v2320, 0.0
    %v2348 = vadd.f32 %v2346, %v2347
    %v2349 = vadd.f32 %v2173, %v2311
    %v2350 = vxor.u32 %v2349, 2147483648
    %v2351 = vmul.f32 %v2350, 1.442695
    %v2352 = vpow.pop %v2351
    %v2353 = vadd.f32 %v2352, 1.0
    %v2354 = vrcp.pop %v2353
    %v2355 = vmul.f32 1.0, %v2354
    %v2357 = vlaneseq
    %v2358 = vshrl.u32 %v2357, 7
    %v2359 = vsub.s32 0, %v2358
    %v2360 = vrot.slane %v2171, %v2359
    %2361 = vrot.lane.b32.xlu0 %v2360, 64
    %v2362 = vpop.permute.xlu0 %2361
    %v2364 = vadd.f32 %v2311, %v2362
    %2366 = vrot.lane.b32.xlu0 %v2364, 64
    %v2367 = vpop.permute.xlu0 %2366
    %v2369 = vmul.f32 %v2355, %v2367
    %2371 = vrot.lane.b32.xlu0 %v2369, 64
    %v2372 = vpop.permute.xlu0 %2371
    %v2374 = vadd.f32 %v2173, %v2372
    %v2375 = vtanh.pop %v2374
    %v2376 = vsub.f32 1.0, %v2355
    %2378 = vrot.lane.b32.xlu0 %v2375, 96
    %v2379 = vpop.permute.xlu0 %2378
    %v2381 = vmul.f32 %v2376, %v2379
    %v2382 = vmul.f32 %v2355, 0.0
    %v2383 = vadd.f32 %v2381, %v2382
    %2385 = vrot.lane.b32.xlu0 %v2348, 96
    %v2386 = vpop.permute.xlu0 %2385
    %2388 = vst.msk [vmem:[#allocation5] sm:$0x3] %vm497, %v2386
    %2389 = vst.msk [vmem:[#allocation5 + $0xe] sm:$0x3] %vm499, %v2383
    %v2390 = vld [vmem:[#allocation4 + $0x2] sm:$0x3]
    %v2391 = vld [vmem:[%s2157 + $0xc] sm:$0x3]
    %v2392 = vsel %vm90, %v2386, 0
    %2394 = vmatprep.subr.mxu0 0.0
    %2395 = vmatpush1.msra.mxu0 %v2160
    %2396 = vmatprep.subr.mxu0 0.0
    %2397 = vmatpush1.msra.mxu0 %v2161
    %2398 = vmatprep.subr.mxu0 0.0
    %2399 = vmatpush1.msra.mxu0 %v2162
    %2400 = vmatprep.subr.mxu0 0.0
    %2401 = vmatpush1.msra.mxu0 %v2163
    %2402 = vmatprep.subr.mxu0 0.0
    %2403 = vmatpush1.msra.mxu0 0.0
    %2404 = vmatprep.subr.mxu0 0.0
    %2405 = vmatpush1.msra.mxu0 0.0
    %2406 = vmatprep.subr.mxu0 0.0
    %2407 = vmatpush1.msra.mxu0 0.0
    %2408 = vmatprep.subr.mxu0 0.0
    %2409 = vmatpush1.msra.mxu0 0.0
    %2410 = vmatprep.subr.mxu0 0.0
    %2411 = vmatpush1.msra.mxu0 0.0
    %2412 = vmatprep.subr.mxu0 0.0
    %2413 = vmatpush1.msra.mxu0 0.0
    %2414 = vmatprep.subr.mxu0 0.0
    %2415 = vmatpush1.msra.mxu0 0.0
    %2416 = vmatprep.subr.mxu0 0.0
    %2417 = vmatpush1.msra.mxu0 0.0
    %2418 = vmatprep.subr.mxu0 0.0
    %2419 = vmatpush1.msra.mxu0 0.0
    %2420 = vmatprep.subr.mxu0 0.0
    %2421 = vmatpush1.msra.mxu0 0.0
    %2422 = vmatprep.subr.mxu0 0.0
    %2423 = vmatpush1.msra.mxu0 0.0
    %2424 = vmatprep.subr.mxu0 0.0
    %2425 = vmatpush1.msra.mxu0 0.0
    %2426 = vmatprep.subr.mxu0 0.0
    %2427 = vmatpush1.msra.mxu0 0.0
    %2428 = vmatprep.subr.mxu0 0.0
    %2429 = vmatpush1.msra.mxu0 0.0
    %2430 = vmatprep.subr.mxu0 0.0
    %2431 = vmatpush1.msra.mxu0 0.0
    %2432 = vmatprep.subr.mxu0 0.0
    %2433 = vmatpush1.msra.mxu0 0.0
    %2434 = vmatprep.subr.mxu0 0.0
    %2435 = vmatpush1.msra.mxu0 0.0
    %2436 = vmatprep.subr.mxu0 0.0
    %2437 = vmatpush1.msra.mxu0 0.0
    %2438 = vmatprep.subr.mxu0 0.0
    %2439 = vmatpush1.msra.mxu0 0.0
    %2440 = vmatprep.subr.mxu0 0.0
    %2441 = vmatpush1.msra.mxu0 0.0
    %2442 = vmatprep.subr.mxu0 0.0
    %2443 = vmatpush1.msra.mxu0 0.0
    %2444 = vmatprep.subr.mxu0 0.0
    %2445 = vmatpush1.msra.mxu0 0.0
    %2446 = vmatprep.subr.mxu0 0.0
    %2447 = vmatpush1.msra.mxu0 0.0
    %2448 = vmatprep.subr.mxu0 0.0
    %2449 = vmatpush1.msra.mxu0 0.0
    %2450 = vmatprep.subr.mxu0 0.0
    %2451 = vmatpush1.msra.mxu0 0.0
    %2452 = vmatprep.subr.mxu0 0.0
    %2453 = vmatpush1.msra.mxu0 0.0
    %2454 = vmatprep.subr.mxu0 0.0
    %2455 = vmatpush1.msra.mxu0 0.0
    %2456 = vmatprep.subr.mxu0 0.0
    %2457 = vmatpush1.msra.mxu0 0.0
    %2458 = vmatprep.mubr.f32.mxu0 0.0
    %2459 = vmatmul.mubr.f32.gmra.mrb[0].mxu0 %v2392
    %v2460 = vpop.f32.mrb[0].mxu0
    %v2461 = vadd.f32 0.0, %v2460
    %v2462 = vpop.f32.mrb[0].mxu0
    %2463 = vdwg.mxu0
    %2465 = vrot.lane.b32.xlu0 %v2383, 96
    %v2466 = vpop.permute.xlu0 %2465
    %v2467 = vsel %vm90, %v2466, 0
    %2469 = vmatprep.subr.mxu0 0.0
    %2470 = vmatpush1.msra.mxu0 %v2165
    %2471 = vmatprep.subr.mxu0 0.0
    %2472 = vmatpush1.msra.mxu0 %v2166
    %2473 = vmatprep.subr.mxu0 0.0
    %2474 = vmatpush1.msra.mxu0 %v2167
    %2475 = vmatprep.subr.mxu0 0.0
    %2476 = vmatpush1.msra.mxu0 %v2168
    %2477 = vmatprep.subr.mxu0 0.0
    %2478 = vmatpush1.msra.mxu0 0.0
    %2479 = vmatprep.subr.mxu0 0.0
    %2480 = vmatpush1.msra.mxu0 0.0
    %2481 = vmatprep.subr.mxu0 0.0
    %2482 = vmatpush1.msra.mxu0 0.0
    %2483 = vmatprep.subr.mxu0 0.0
    %2484 = vmatpush1.msra.mxu0 0.0
    %2485 = vmatprep.subr.mxu0 0.0
    %2486 = vmatpush1.msra.mxu0 0.0
    %2487 = vmatprep.subr.mxu0 0.0
    %2488 = vmatpush1.msra.mxu0 0.0
    %2489 = vmatprep.subr.mxu0 0.0
    %2490 = vmatpush1.msra.mxu0 0.0
    %2491 = vmatprep.subr.mxu0 0.0
    %2492 = vmatpush1.msra.mxu0 0.0
    %2493 = vmatprep.subr.mxu0 0.0
    %2494 = vmatpush1.msra.mxu0 0.0
    %2495 = vmatprep.subr.mxu0 0.0
    %2496 = vmatpush1.msra.mxu0 0.0
    %2497 = vmatprep.subr.mxu0 0.0
    %2498 = vmatpush1.msra.mxu0 0.0
    %2499 = vmatprep.subr.mxu0 0.0
    %2500 = vmatpush1.msra.mxu0 0.0
    %2501 = vmatprep.subr.mxu0 0.0
    %2502 = vmatpush1.msra.mxu0 0.0
    %2503 = vmatprep.subr.mxu0 0.0
    %2504 = vmatpush1.msra.mxu0 0.0
    %2505 = vmatprep.subr.mxu0 0.0
    %2506 = vmatpush1.msra.mxu0 0.0
    %2507 = vmatprep.subr.mxu0 0.0
    %2508 = vmatpush1.msra.mxu0 0.0
    %2509 = vmatprep.subr.mxu0 0.0
    %2510 = vmatpush1.msra.mxu0 0.0
    %2511 = vmatprep.subr.mxu0 0.0
    %2512 = vmatpush1.msra.mxu0 0.0
    %2513 = vmatprep.subr.mxu0 0.0
    %2514 = vmatpush1.msra.mxu0 0.0
    %2515 = vmatprep.subr.mxu0 0.0
    %2516 = vmatpush1.msra.mxu0 0.0
    %2517 = vmatprep.subr.mxu0 0.0
    %2518 = vmatpush1.msra.mxu0 0.0
    %2519 = vmatprep.subr.mxu0 0.0
    %2520 = vmatpush1.msra.mxu0 0.0
    %2521 = vmatprep.subr.mxu0 0.0
    %2522 = vmatpush1.msra.mxu0 0.0
    %2523 = vmatprep.subr.mxu0 0.0
    %2524 = vmatpush1.msra.mxu0 0.0
    %2525 = vmatprep.subr.mxu0 0.0
    %2526 = vmatpush1.msra.mxu0 0.0
    %2527 = vmatprep.subr.mxu0 0.0
    %2528 = vmatpush1.msra.mxu0 0.0
    %2529 = vmatprep.subr.mxu0 0.0
    %2530 = vmatpush1.msra.mxu0 0.0
    %2531 = vmatprep.subr.mxu0 0.0
    %2532 = vmatpush1.msra.mxu0 0.0
    %2533 = vmatprep.mubr.f32.mxu0 0.0
    %2534 = vmatmul.mubr.f32.gmra.mrb[0].mxu0 %v2467
    %v2535 = vpop.f32.mrb[0].mxu0
    %v2536 = vadd.f32 0.0, %v2535
    %v2537 = vpop.f32.mrb[0].mxu0
    %2538 = vdwg.mxu0
    %v2539 = vadd.f32 %v2390, %v2461
    %v2540 = vxor.u32 %v2539, 2147483648
    %v2541 = vmul.f32 %v2540, 1.442695
    %v2542 = vpow.pop %v2541
    %v2543 = vadd.f32 %v2542, 1.0
    %v2544 = vrcp.pop %v2543
    %v2545 = vmul.f32 1.0, %v2544
    %v2546 = vadd.f32 %v2461, %v2327
    %2548 = vrot.lane.b32.xlu0 %v2546, 64
    %v2549 = vpop.permute.xlu0 %2548
    %v2551 = vmul.f32 %v2545, %v2549
    %2553 = vrot.lane.b32.xlu0 %v2551, 64
    %v2554 = vpop.permute.xlu0 %2553
    %v2556 = vadd.f32 %v2390, %v2554
    %v2557 = vtanh.pop %v2556
    %v2558 = vsub.f32 1.0, %v2545
    %2560 = vrot.lane.b32.xlu0 %v2557, 96
    %v2561 = vpop.permute.xlu0 %2560
    %v2563 = vmul.f32 %v2558, %v2561
    %v2564 = vmul.f32 %v2545, %v2348
    %v2565 = vadd.f32 %v2563, %v2564
    %v2566 = vadd.f32 %v2391, %v2536
    %v2567 = vxor.u32 %v2566, 2147483648
    %v2568 = vmul.f32 %v2567, 1.442695
    %v2569 = vpow.pop %v2568
    %v2570 = vadd.f32 %v2569, 1.0
    %v2571 = vrcp.pop %v2570
    %v2572 = vmul.f32 1.0, %v2571
    %v2573 = vadd.f32 %v2536, %v2362
    %2575 = vrot.lane.b32.xlu0 %v2573, 64
    %v2576 = vpop.permute.xlu0 %2575
    %v2578 = vmul.f32 %v2572, %v2576
    %2580 = vrot.lane.b32.xlu0 %v2578, 64
    %v2581 = vpop.permute.xlu0 %2580
    %v2583 = vadd.f32 %v2391, %v2581
    %v2584 = vtanh.pop %v2583
    %v2585 = vsub.f32 1.0, %v2572
    %2587 = vrot.lane.b32.xlu0 %v2584, 96
    %v2588 = vpop.permute.xlu0 %2587
    %v2590 = vmul.f32 %v2585, %v2588
    %v2591 = vmul.f32 %v2572, %v2383
    %v2592 = vadd.f32 %v2590, %v2591
    %2594 = vrot.lane.b32.xlu0 %v2565, 96
    %v2595 = vpop.permute.xlu0 %2594
    %2597 = vst.msk [vmem:[#allocation5 + $0x2] sm:$0x3] %vm497, %v2595
    %2598 = vst.msk [vmem:[#allocation5 + $0xc] sm:$0x3] %vm499, %v2592
    %v2599 = vld [vmem:[#allocation4 + $0x4] sm:$0x3]
    %v2600 = vld [vmem:[%s2157 + $0xa] sm:$0x3]
    %v2601 = vsel %vm90, %v2595, 0
    %2603 = vmatprep.subr.mxu0 0.0
    %2604 = vmatpush1.msra.mxu0 %v2160
    %2605 = vmatprep.subr.mxu0 0.0
    %2606 = vmatpush1.msra.mxu0 %v2161
    %2607 = vmatprep.subr.mxu0 0.0
    %2608 = vmatpush1.msra.mxu0 %v2162
    %2609 = vmatprep.subr.mxu0 0.0
    %2610 = vmatpush1.msra.mxu0 %v2163
    %2611 = vmatprep.subr.mxu0 0.0
    %2612 = vmatpush1.msra.mxu0 0.0
    %2613 = vmatprep.subr.mxu0 0.0
    %2614 = vmatpush1.msra.mxu0 0.0
    %2615 = vmatprep.subr.mxu0 0.0
    %2616 = vmatpush1.msra.mxu0 0.0
    %2617 = vmatprep.subr.mxu0 0.0
    %2618 = vmatpush1.msra.mxu0 0.0
    %2619 = vmatprep.subr.mxu0 0.0
    %2620 = vmatpush1.msra.mxu0 0.0
    %2621 = vmatprep.subr.mxu0 0.0
    %2622 = vmatpush1.msra.mxu0 0.0
    %2623 = vmatprep.subr.mxu0 0.0
    %2624 = vmatpush1.msra.mxu0 0.0
    %2625 = vmatprep.subr.mxu0 0.0
    %2626 = vmatpush1.msra.mxu0 0.0
    %2627 = vmatprep.subr.mxu0 0.0
    %2628 = vmatpush1.msra.mxu0 0.0
    %2629 = vmatprep.subr.mxu0 0.0
    %2630 = vmatpush1.msra.mxu0 0.0
    %2631 = vmatprep.subr.mxu0 0.0
    %2632 = vmatpush1.msra.mxu0 0.0
    %2633 = vmatprep.subr.mxu0 0.0
    %2634 = vmatpush1.msra.mxu0 0.0
    %2635 = vmatprep.subr.mxu0 0.0
    %2636 = vmatpush1.msra.mxu0 0.0
    %2637 = vmatprep.subr.mxu0 0.0
    %2638 = vmatpush1.msra.mxu0 0.0
    %2639 = vmatprep.subr.mxu0 0.0
    %2640 = vmatpush1.msra.mxu0 0.0
    %2641 = vmatprep.subr.mxu0 0.0
    %2642 = vmatpush1.msra.mxu0 0.0
    %2643 = vmatprep.subr.mxu0 0.0
    %2644 = vmatpush1.msra.mxu0 0.0
    %2645 = vmatprep.subr.mxu0 0.0
    %2646 = vmatpush1.msra.mxu0 0.0
    %2647 = vmatprep.subr.mxu0 0.0
    %2648 = vmatpush1.msra.mxu0 0.0
    %2649 = vmatprep.subr.mxu0 0.0
    %2650 = vmatpush1.msra.mxu0 0.0
    %2651 = vmatprep.subr.mxu0 0.0
    %2652 = vmatpush1.msra.mxu0 0.0
    %2653 = vmatprep.subr.mxu0 0.0
    %2654 = vmatpush1.msra.mxu0 0.0
    %2655 = vmatprep.subr.mxu0 0.0
    %2656 = vmatpush1.msra.mxu0 0.0
    %2657 = vmatprep.subr.mxu0 0.0
    %2658 = vmatpush1.msra.mxu0 0.0
    %2659 = vmatprep.subr.mxu0 0.0
    %2660 = vmatpush1.msra.mxu0 0.0
    %2661 = vmatprep.subr.mxu0 0.0
    %2662 = vmatpush1.msra.mxu0 0.0
    %2663 = vmatprep.subr.mxu0 0.0
    %2664 = vmatpush1.msra.mxu0 0.0
    %2665 = vmatprep.subr.mxu0 0.0
    %2666 = vmatpush1.msra.mxu0 0.0
    %2667 = vmatprep.mubr.f32.mxu0 0.0
    %2668 = vmatmul.mubr.f32.gmra.mrb[0].mxu0 %v2601
    %v2669 = vpop.f32.mrb[0].mxu0
    %v2670 = vadd.f32 0.0, %v2669
    %v2671 = vpop.f32.mrb[0].mxu0
    %2672 = vdwg.mxu0
    %2674 = vrot.lane.b32.xlu0 %v2592, 96
    %v2675 = vpop.permute.xlu0 %2674
    %v2676 = vsel %vm90, %v2675, 0
    %2678 = vmatprep.subr.mxu0 0.0
    %2679 = vmatpush1.msra.mxu0 %v2165
    %2680 = vmatprep.subr.mxu0 0.0
    %2681 = vmatpush1.msra.mxu0 %v2166
    %2682 = vmatprep.subr.mxu0 0.0
    %2683 = vmatpush1.msra.mxu0 %v2167
    %2684 = vmatprep.subr.mxu0 0.0
    %2685 = vmatpush1.msra.mxu0 %v2168
    %2686 = vmatprep.subr.mxu0 0.0
    %2687 = vmatpush1.msra.mxu0 0.0
    %2688 = vmatprep.subr.mxu0 0.0
    %2689 = vmatpush1.msra.mxu0 0.0
    %2690 = vmatprep.subr.mxu0 0.0
    %2691 = vmatpush1.msra.mxu0 0.0
    %2692 = vmatprep.subr.mxu0 0.0
    %2693 = vmatpush1.msra.mxu0 0.0
    %2694 = vmatprep.subr.mxu0 0.0
    %2695 = vmatpush1.msra.mxu0 0.0
    %2696 = vmatprep.subr.mxu0 0.0
    %2697 = vmatpush1.msra.mxu0 0.0
    %2698 = vmatprep.subr.mxu0 0.0
    %2699 = vmatpush1.msra.mxu0 0.0
    %2700 = vmatprep.subr.mxu0 0.0
    %2701 = vmatpush1.msra.mxu0 0.0
    %2702 = vmatprep.subr.mxu0 0.0
    %2703 = vmatpush1.msra.mxu0 0.0
    %2704 = vmatprep.subr.mxu0 0.0
    %2705 = vmatpush1.msra.mxu0 0.0
    %2706 = vmatprep.subr.mxu0 0.0
    %2707 = vmatpush1.msra.mxu0 0.0
    %2708 = vmatprep.subr.mxu0 0.0
    %2709 = vmatpush1.msra.mxu0 0.0
    %2710 = vmatprep.subr.mxu0 0.0
    %2711 = vmatpush1.msra.mxu0 0.0
    %2712 = vmatprep.subr.mxu0 0.0
    %2713 = vmatpush1.msra.mxu0 0.0
    %2714 = vmatprep.subr.mxu0 0.0
    %2715 = vmatpush1.msra.mxu0 0.0
    %2716 = vmatprep.subr.mxu0 0.0
    %2717 = vmatpush1.msra.mxu0 0.0
    %2718 = vmatprep.subr.mxu0 0.0
    %2719 = vmatpush1.msra.mxu0 0.0
    %2720 = vmatprep.subr.mxu0 0.0
    %2721 = vmatpush1.msra.mxu0 0.0
    %2722 = vmatprep.subr.mxu0 0.0
    %2723 = vmatpush1.msra.mxu0 0.0
    %2724 = vmatprep.subr.mxu0 0.0
    %2725 = vmatpush1.msra.mxu0 0.0
    %2726 = vmatprep.subr.mxu0 0.0
    %2727 = vmatpush1.msra.mxu0 0.0
    %2728 = vmatprep.subr.mxu0 0.0
    %2729 = vmatpush1.msra.mxu0 0.0
    %2730 = vmatprep.subr.mxu0 0.0
    %2731 = vmatpush1.msra.mxu0 0.0
    %2732 = vmatprep.subr.mxu0 0.0
    %2733 = vmatpush1.msra.mxu0 0.0
    %2734 = vmatprep.subr.mxu0 0.0
    %2735 = vmatpush1.msra.mxu0 0.0
    %2736 = vmatprep.subr.mxu0 0.0
    %2737 = vmatpush1.msra.mxu0 0.0
    %2738 = vmatprep.subr.mxu0 0.0
    %2739 = vmatpush1.msra.mxu0 0.0
    %2740 = vmatprep.subr.mxu0 0.0
    %2741 = vmatpush1.msra.mxu0 0.0
    %2742 = vmatprep.mubr.f32.mxu0 0.0
    %2743 = vmatmul.mubr.f32.gmra.mrb[0].mxu0 %v2676
    %v2744 = vpop.f32.mrb[0].mxu0
    %v2745 = vadd.f32 0.0, %v2744
    %v2746 = vpop.f32.mrb[0].mxu0
    %2747 = vdwg.mxu0
    %v2748 = vadd.f32 %v2599, %v2670
    %v2749 = vxor.u32 %v2748, 2147483648
    %v2750 = vmul.f32 %v2749, 1.442695
    %v2751 = vpow.pop %v2750
    %v2752 = vadd.f32 %v2751, 1.0
    %v2753 = vrcp.pop %v2752
    %v2754 = vmul.f32 1.0, %v2753
    %v2755 = vadd.f32 %v2670, %v2327
    %2757 = vrot.lane.b32.xlu0 %v2755, 64
    %v2758 = vpop.permute.xlu0 %2757
    %v2760 = vmul.f32 %v2754, %v2758
    %2762 = vrot.lane.b32.xlu0 %v2760, 64
    %v2763 = vpop.permute.xlu0 %2762
    %v2765 = vadd.f32 %v2599, %v2763
    %v2766 = vtanh.pop %v2765
    %v2767 = vsub.f32 1.0, %v2754
    %2769 = vrot.lane.b32.xlu0 %v2766, 96
    %v2770 = vpop.permute.xlu0 %2769
    %v2772 = vmul.f32 %v2767, %v2770
    %v2773 = vmul.f32 %v2754, %v2565
    %v2774 = vadd.f32 %v2772, %v2773
    %v2775 = vadd.f32 %v2600, %v2745
    %v2776 = vxor.u32 %v2775, 2147483648
    %v2777 = vmul.f32 %v2776, 1.442695
    %v2778 = vpow.pop %v2777
    %v2779 = vadd.f32 %v2778, 1.0
    %v2780 = vrcp.pop %v2779
    %v2781 = vmul.f32 1.0, %v2780
    %v2782 = vadd.f32 %v2745, %v2362
    %2784 = vrot.lane.b32.xlu0 %v2782, 64
    %v2785 = vpop.permute.xlu0 %2784
    %v2787 = vmul.f32 %v2781, %v2785
    %2789 = vrot.lane.b32.xlu0 %v2787, 64
    %v2790 = vpop.permute.xlu0 %2789
    %v2792 = vadd.f32 %v2600, %v2790
    %v2793 = vtanh.pop %v2792
    %v2794 = vsub.f32 1.0, %v2781
    %2796 = vrot.lane.b32.xlu0 %v2793, 96
    %v2797 = vpop.permute.xlu0 %2796
    %v2799 = vmul.f32 %v2794, %v2797
    %v2800 = vmul.f32 %v2781, %v2592
    %v2801 = vadd.f32 %v2799, %v2800
    %2803 = vrot.lane.b32.xlu0 %v2774, 96
    %v2804 = vpop.permute.xlu0 %2803
    %2806 = vst.msk [vmem:[#allocation5 + $0x4] sm:$0x3] %vm497, %v2804
    %2807 = vst.msk [vmem:[#allocation5 + $0xa] sm:$0x3] %vm499, %v2801
    %v2808 = vld [vmem:[#allocation4 + $0x6] sm:$0x3]
    %v2809 = vld [vmem:[%s2157 + $0x8] sm:$0x3]
    %v2810 = vsel %vm90, %v2804, 0
    %2812 = vmatprep.subr.mxu0 0.0
    %2813 = vmatpush1.msra.mxu0 %v2160
    %2814 = vmatprep.subr.mxu0 0.0
    %2815 = vmatpush1.msra.mxu0 %v2161
    %2816 = vmatprep.subr.mxu0 0.0
    %2817 = vmatpush1.msra.mxu0 %v2162
    %2818 = vmatprep.subr.mxu0 0.0
    %2819 = vmatpush1.msra.mxu0 %v2163
    %2820 = vmatprep.subr.mxu0 0.0
    %2821 = vmatpush1.msra.mxu0 0.0
    %2822 = vmatprep.subr.mxu0 0.0
    %2823 = vmatpush1.msra.mxu0 0.0
    %2824 = vmatprep.subr.mxu0 0.0
    %2825 = vmatpush1.msra.mxu0 0.0
    %2826 = vmatprep.subr.mxu0 0.0
    %2827 = vmatpush1.msra.mxu0 0.0
    %2828 = vmatprep.subr.mxu0 0.0
    %2829 = vmatpush1.msra.mxu0 0.0
    %2830 = vmatprep.subr.mxu0 0.0
    %2831 = vmatpush1.msra.mxu0 0.0
    %2832 = vmatprep.subr.mxu0 0.0
    %2833 = vmatpush1.msra.mxu0 0.0
    %2834 = vmatprep.subr.mxu0 0.0
    %2835 = vmatpush1.msra.mxu0 0.0
    %2836 = vmatprep.subr.mxu0 0.0
    %2837 = vmatpush1.msra.mxu0 0.0
    %2838 = vmatprep.subr.mxu0 0.0
    %2839 = vmatpush1.msra.mxu0 0.0
    %2840 = vmatprep.subr.mxu0 0.0
    %2841 = vmatpush1.msra.mxu0 0.0
    %2842 = vmatprep.subr.mxu0 0.0
    %2843 = vmatpush1.msra.mxu0 0.0
    %2844 = vmatprep.subr.mxu0 0.0
    %2845 = vmatpush1.msra.mxu0 0.0
    %2846 = vmatprep.subr.mxu0 0.0
    %2847 = vmatpush1.msra.mxu0 0.0
    %2848 = vmatprep.subr.mxu0 0.0
    %2849 = vmatpush1.msra.mxu0 0.0
    %2850 = vmatprep.subr.mxu0 0.0
    %2851 = vmatpush1.msra.mxu0 0.0
    %2852 = vmatprep.subr.mxu0 0.0
    %2853 = vmatpush1.msra.mxu0 0.0
    %2854 = vmatprep.subr.mxu0 0.0
    %2855 = vmatpush1.msra.mxu0 0.0
    %2856 = vmatprep.subr.mxu0 0.0
    %2857 = vmatpush1.msra.mxu0 0.0
    %2858 = vmatprep.subr.mxu0 0.0
    %2859 = vmatpush1.msra.mxu0 0.0
    %2860 = vmatprep.subr.mxu0 0.0
    %2861 = vmatpush1.msra.mxu0 0.0
    %2862 = vmatprep.subr.mxu0 0.0
    %2863 = vmatpush1.msra.mxu0 0.0
    %2864 = vmatprep.subr.mxu0 0.0
    %2865 = vmatpush1.msra.mxu0 0.0
    %2866 = vmatprep.subr.mxu0 0.0
    %2867 = vmatpush1.msra.mxu0 0.0
    %2868 = vmatprep.subr.mxu0 0.0
    %2869 = vmatpush1.msra.mxu0 0.0
    %2870 = vmatprep.subr.mxu0 0.0
    %2871 = vmatpush1.msra.mxu0 0.0
    %2872 = vmatprep.subr.mxu0 0.0
    %2873 = vmatpush1.msra.mxu0 0.0
    %2874 = vmatprep.subr.mxu0 0.0
    %2875 = vmatpush1.msra.mxu0 0.0
    %2876 = vmatprep.mubr.f32.mxu0 0.0
    %2877 = vmatmul.mubr.f32.gmra.mrb[0].mxu0 %v2810
    %v2878 = vpop.f32.mrb[0].mxu0
    %v2879 = vadd.f32 0.0, %v2878
    %v2880 = vpop.f32.mrb[0].mxu0
    %2881 = vdwg.mxu0
    %2883 = vrot.lane.b32.xlu0 %v2801, 96
    %v2884 = vpop.permute.xlu0 %2883
    %v2885 = vsel %vm90, %v2884, 0
    %2887 = vmatprep.subr.mxu0 0.0
    %2888 = vmatpush1.msra.mxu0 %v2165
    %2889 = vmatprep.subr.mxu0 0.0
    %2890 = vmatpush1.msra.mxu0 %v2166
    %2891 = vmatprep.subr.mxu0 0.0
    %2892 = vmatpush1.msra.mxu0 %v2167
    %2893 = vmatprep.subr.mxu0 0.0
    %2894 = vmatpush1.msra.mxu0 %v2168
    %2895 = vmatprep.subr.mxu0 0.0
    %2896 = vmatpush1.msra.mxu0 0.0
    %2897 = vmatprep.subr.mxu0 0.0
    %2898 = vmatpush1.msra.mxu0 0.0
    %2899 = vmatprep.subr.mxu0 0.0
    %2900 = vmatpush1.msra.mxu0 0.0
    %2901 = vmatprep.subr.mxu0 0.0
    %2902 = vmatpush1.msra.mxu0 0.0
    %2903 = vmatprep.subr.mxu0 0.0
    %2904 = vmatpush1.msra.mxu0 0.0
    %2905 = vmatprep.subr.mxu0 0.0
    %2906 = vmatpush1.msra.mxu0 0.0
    %2907 = vmatprep.subr.mxu0 0.0
    %2908 = vmatpush1.msra.mxu0 0.0
    %2909 = vmatprep.subr.mxu0 0.0
    %2910 = vmatpush1.msra.mxu0 0.0
    %2911 = vmatprep.subr.mxu0 0.0
    %2912 = vmatpush1.msra.mxu0 0.0
    %2913 = vmatprep.subr.mxu0 0.0
    %2914 = vmatpush1.msra.mxu0 0.0
    %2915 = vmatprep.subr.mxu0 0.0
    %2916 = vmatpush1.msra.mxu0 0.0
    %2917 = vmatprep.subr.mxu0 0.0
    %2918 = vmatpush1.msra.mxu0 0.0
    %2919 = vmatprep.subr.mxu0 0.0
    %2920 = vmatpush1.msra.mxu0 0.0
    %2921 = vmatprep.subr.mxu0 0.0
    %2922 = vmatpush1.msra.mxu0 0.0
    %2923 = vmatprep.subr.mxu0 0.0
    %2924 = vmatpush1.msra.mxu0 0.0
    %2925 = vmatprep.subr.mxu0 0.0
    %2926 = vmatpush1.msra.mxu0 0.0
    %2927 = vmatprep.subr.mxu0 0.0
    %2928 = vmatpush1.msra.mxu0 0.0
    %2929 = vmatprep.subr.mxu0 0.0
    %2930 = vmatpush1.msra.mxu0 0.0
    %2931 = vmatprep.subr.mxu0 0.0
    %2932 = vmatpush1.msra.mxu0 0.0
    %2933 = vmatprep.subr.mxu0 0.0
    %2934 = vmatpush1.msra.mxu0 0.0
    %2935 = vmatprep.subr.mxu0 0.0
    %2936 = vmatpush1.msra.mxu0 0.0
    %2937 = vmatprep.subr.mxu0 0.0
    %2938 = vmatpush1.msra.mxu0 0.0
    %2939 = vmatprep.subr.mxu0 0.0
    %2940 = vmatpush1.msra.mxu0 0.0
    %2941 = vmatprep.subr.mxu0 0.0
    %2942 = vmatpush1.msra.mxu0 0.0
    %2943 = vmatprep.subr.mxu0 0.0
    %2944 = vmatpush1.msra.mxu0 0.0
    %2945 = vmatprep.subr.mxu0 0.0
    %2946 = vmatpush1.msra.mxu0 0.0
    %2947 = vmatprep.subr.mxu0 0.0
    %2948 = vmatpush1.msra.mxu0 0.0
    %2949 = vmatprep.subr.mxu0 0.0
    %2950 = vmatpush1.msra.mxu0 0.0
    %2951 = vmatprep.mubr.f32.mxu0 0.0
    %2952 = vmatmul.mubr.f32.gmra.mrb[0].mxu0 %v2885
    %v2953 = vpop.f32.mrb[0].mxu0
    %v2954 = vadd.f32 0.0, %v2953
    %v2955 = vpop.f32.mrb[0].mxu0
    %2956 = vdwg.mxu0
    %v2957 = vadd.f32 %v2808, %v2879
    %v2958 = vxor.u32 %v2957, 2147483648
    %v2959 = vmul.f32 %v2958, 1.442695
    %v2960 = vpow.pop %v2959
    %v2961 = vadd.f32 %v2960, 1.0
    %v2962 = vrcp.pop %v2961
    %v2963 = vmul.f32 1.0, %v2962
    %v2964 = vadd.f32 %v2879, %v2327
    %2966 = vrot.lane.b32.xlu0 %v2964, 64
    %v2967 = vpop.permute.xlu0 %2966
    %v2969 = vmul.f32 %v2963, %v2967
    %2971 = vrot.lane.b32.xlu0 %v2969, 64
    %v2972 = vpop.permute.xlu0 %2971
    %v2974 = vadd.f32 %v2808, %v2972
    %v2975 = vtanh.pop %v2974
    %v2976 = vsub.f32 1.0, %v2963
    %2978 = vrot.lane.b32.xlu0 %v2975, 96
    %v2979 = vpop.permute.xlu0 %2978
    %v2981 = vmul.f32 %v2976, %v2979
    %v2982 = vmul.f32 %v2963, %v2774
    %v2983 = vadd.f32 %v2981, %v2982
    %v2984 = vadd.f32 %v2809, %v2954
    %v2985 = vxor.u32 %v2984, 2147483648
    %v2986 = vmul.f32 %v2985, 1.442695
    %v2987 = vpow.pop %v2986
    %v2988 = vadd.f32 %v2987, 1.0
    %v2989 = vrcp.pop %v2988
    %v2990 = vmul.f32 1.0, %v2989
    %v2991 = vadd.f32 %v2954, %v2362
    %2993 = vrot.lane.b32.xlu0 %v2991, 64
    %v2994 = vpop.permute.xlu0 %2993
    %v2996 = vmul.f32 %v2990, %v2994
    %2998 = vrot.lane.b32.xlu0 %v2996, 64
    %v2999 = vpop.permute.xlu0 %2998
    %v3001 = vadd.f32 %v2809, %v2999
    %v3002 = vtanh.pop %v3001
    %v3003 = vsub.f32 1.0, %v2990
    %3005 = vrot.lane.b32.xlu0 %v3002, 96
    %v3006 = vpop.permute.xlu0 %3005
    %v3008 = vmul.f32 %v3003, %v3006
    %v3009 = vmul.f32 %v2990, %v2801
    %v3010 = vadd.f32 %v3008, %v3009
    %3012 = vrot.lane.b32.xlu0 %v2983, 96
    %v3013 = vpop.permute.xlu0 %3012
    %3015 = vst.msk [vmem:[#allocation5 + $0x6] sm:$0x3] %vm497, %v3013
    %3016 = vst.msk [vmem:[#allocation5 + $0x8] sm:$0x3] %vm499, %v3010
    %v3017 = vld [vmem:[#allocation4 + $0x8] sm:$0x3]
    %v3018 = vld [vmem:[%s2157 + $0x6] sm:$0x3]
    %v3019 = vsel %vm90, %v3013, 0
    %3021 = vmatprep.subr.mxu0 0.0
    %3022 = vmatpush1.msra.mxu0 %v2160
    %3023 = vmatprep.subr.mxu0 0.0
    %3024 = vmatpush1.msra.mxu0 %v2161
    %3025 = vmatprep.subr.mxu0 0.0
    %3026 = vmatpush1.msra.mxu0 %v2162
    %3027 = vmatprep.subr.mxu0 0.0
    %3028 = vmatpush1.msra.mxu0 %v2163
    %3029 = vmatprep.subr.mxu0 0.0
    %3030 = vmatpush1.msra.mxu0 0.0
    %3031 = vmatprep.subr.mxu0 0.0
    %3032 = vmatpush1.msra.mxu0 0.0
    %3033 = vmatprep.subr.mxu0 0.0
    %3034 = vmatpush1.msra.mxu0 0.0
    %3035 = vmatprep.subr.mxu0 0.0
    %3036 = vmatpush1.msra.mxu0 0.0
    %3037 = vmatprep.subr.mxu0 0.0
    %3038 = vmatpush1.msra.mxu0 0.0
    %3039 = vmatprep.subr.mxu0 0.0
    %3040 = vmatpush1.msra.mxu0 0.0
    %3041 = vmatprep.subr.mxu0 0.0
    %3042 = vmatpush1.msra.mxu0 0.0
    %3043 = vmatprep.subr.mxu0 0.0
    %3044 = vmatpush1.msra.mxu0 0.0
    %3045 = vmatprep.subr.mxu0 0.0
    %3046 = vmatpush1.msra.mxu0 0.0
    %3047 = vmatprep.subr.mxu0 0.0
    %3048 = vmatpush1.msra.mxu0 0.0
    %3049 = vmatprep.subr.mxu0 0.0
    %3050 = vmatpush1.msra.mxu0 0.0
    %3051 = vmatprep.subr.mxu0 0.0
    %3052 = vmatpush1.msra.mxu0 0.0
    %3053 = vmatprep.subr.mxu0 0.0
    %3054 = vmatpush1.msra.mxu0 0.0
    %3055 = vmatprep.subr.mxu0 0.0
    %3056 = vmatpush1.msra.mxu0 0.0
    %3057 = vmatprep.subr.mxu0 0.0
    %3058 = vmatpush1.msra.mxu0 0.0
    %3059 = vmatprep.subr.mxu0 0.0
    %3060 = vmatpush1.msra.mxu0 0.0
    %3061 = vmatprep.subr.mxu0 0.0
    %3062 = vmatpush1.msra.mxu0 0.0
    %3063 = vmatprep.subr.mxu0 0.0
    %3064 = vmatpush1.msra.mxu0 0.0
    %3065 = vmatprep.subr.mxu0 0.0
    %3066 = vmatpush1.msra.mxu0 0.0
    %3067 = vmatprep.subr.mxu0 0.0
    %3068 = vmatpush1.msra.mxu0 0.0
    %3069 = vmatprep.subr.mxu0 0.0
    %3070 = vmatpush1.msra.mxu0 0.0
    %3071 = vmatprep.subr.mxu0 0.0
    %3072 = vmatpush1.msra.mxu0 0.0
    %3073 = vmatprep.subr.mxu0 0.0
    %3074 = vmatpush1.msra.mxu0 0.0
    %3075 = vmatprep.subr.mxu0 0.0
    %3076 = vmatpush1.msra.mxu0 0.0
    %3077 = vmatprep.subr.mxu0 0.0
    %3078 = vmatpush1.msra.mxu0 0.0
    %3079 = vmatprep.subr.mxu0 0.0
    %3080 = vmatpush1.msra.mxu0 0.0
    %3081 = vmatprep.subr.mxu0 0.0
    %3082 = vmatpush1.msra.mxu0 0.0
    %3083 = vmatprep.subr.mxu0 0.0
    %3084 = vmatpush1.msra.mxu0 0.0
    %3085 = vmatprep.mubr.f32.mxu0 0.0
    %3086 = vmatmul.mubr.f32.gmra.mrb[0].mxu0 %v3019
    %v3087 = vpop.f32.mrb[0].mxu0
    %v3088 = vadd.f32 0.0, %v3087
    %v3089 = vpop.f32.mrb[0].mxu0
    %3090 = vdwg.mxu0
    %3092 = vrot.lane.b32.xlu0 %v3010, 96
    %v3093 = vpop.permute.xlu0 %3092
    %v3094 = vsel %vm90, %v3093, 0
    %3096 = vmatprep.subr.mxu0 0.0
    %3097 = vmatpush1.msra.mxu0 %v2165
    %3098 = vmatprep.subr.mxu0 0.0
    %3099 = vmatpush1.msra.mxu0 %v2166
    %3100 = vmatprep.subr.mxu0 0.0
    %3101 = vmatpush1.msra.mxu0 %v2167
    %3102 = vmatprep.subr.mxu0 0.0
    %3103 = vmatpush1.msra.mxu0 %v2168
    %3104 = vmatprep.subr.mxu0 0.0
    %3105 = vmatpush1.msra.mxu0 0.0
    %3106 = vmatprep.subr.mxu0 0.0
    %3107 = vmatpush1.msra.mxu0 0.0
    %3108 = vmatprep.subr.mxu0 0.0
    %3109 = vmatpush1.msra.mxu0 0.0
    %3110 = vmatprep.subr.mxu0 0.0
    %3111 = vmatpush1.msra.mxu0 0.0
    %3112 = vmatprep.subr.mxu0 0.0
    %3113 = vmatpush1.msra.mxu0 0.0
    %3114 = vmatprep.subr.mxu0 0.0
    %3115 = vmatpush1.msra.mxu0 0.0
    %3116 = vmatprep.subr.mxu0 0.0
    %3117 = vmatpush1.msra.mxu0 0.0
    %3118 = vmatprep.subr.mxu0 0.0
    %3119 = vmatpush1.msra.mxu0 0.0
    %3120 = vmatprep.subr.mxu0 0.0
    %3121 = vmatpush1.msra.mxu0 0.0
    %3122 = vmatprep.subr.mxu0 0.0
    %3123 = vmatpush1.msra.mxu0 0.0
    %3124 = vmatprep.subr.mxu0 0.0
    %3125 = vmatpush1.msra.mxu0 0.0
    %3126 = vmatprep.subr.mxu0 0.0
    %3127 = vmatpush1.msra.mxu0 0.0
    %3128 = vmatprep.subr.mxu0 0.0
    %3129 = vmatpush1.msra.mxu0 0.0
    %3130 = vmatprep.subr.mxu0 0.0
    %3131 = vmatpush1.msra.mxu0 0.0
    %3132 = vmatprep.subr.mxu0 0.0
    %3133 = vmatpush1.msra.mxu0 0.0
    %3134 = vmatprep.subr.mxu0 0.0
    %3135 = vmatpush1.msra.mxu0 0.0
    %3136 = vmatprep.subr.mxu0 0.0
    %3137 = vmatpush1.msra.mxu0 0.0
    %3138 = vmatprep.subr.mxu0 0.0
    %3139 = vmatpush1.msra.mxu0 0.0
    %3140 = vmatprep.subr.mxu0 0.0
    %3141 = vmatpush1.msra.mxu0 0.0
    %3142 = vmatprep.subr.mxu0 0.0
    %3143 = vmatpush1.msra.mxu0 0.0
    %3144 = vmatprep.subr.mxu0 0.0
    %3145 = vmatpush1.msra.mxu0 0.0
    %3146 = vmatprep.subr.mxu0 0.0
    %3147 = vmatpush1.msra.mxu0 0.0
    %3148 = vmatprep.subr.mxu0 0.0
    %3149 = vmatpush1.msra.mxu0 0.0
    %3150 = vmatprep.subr.mxu0 0.0
    %3151 = vmatpush1.msra.mxu0 0.0
    %3152 = vmatprep.subr.mxu0 0.0
    %3153 = vmatpush1.msra.mxu0 0.0
    %3154 = vmatprep.subr.mxu0 0.0
    %3155 = vmatpush1.msra.mxu0 0.0
    %3156 = vmatprep.subr.mxu0 0.0
    %3157 = vmatpush1.msra.mxu0 0.0
    %3158 = vmatprep.subr.mxu0 0.0
    %3159 = vmatpush1.msra.mxu0 0.0
    %3160 = vmatprep.mubr.f32.mxu0 0.0
    %3161 = vmatmul.mubr.f32.gmra.mrb[0].mxu0 %v3094
    %v3162 = vpop.f32.mrb[0].mxu0
    %v3163 = vadd.f32 0.0, %v3162
    %v3164 = vpop.f32.mrb[0].mxu0
    %3165 = vdwg.mxu0
    %v3166 = vadd.f32 %v3017, %v3088
    %v3167 = vxor.u32 %v3166, 2147483648
    %v3168 = vmul.f32 %v3167, 1.442695
    %v3169 = vpow.pop %v3168
    %v3170 = vadd.f32 %v3169, 1.0
    %v3171 = vrcp.pop %v3170
    %v3172 = vmul.f32 1.0, %v3171
    %v3173 = vadd.f32 %v3088, %v2327
    %3175 = vrot.lane.b32.xlu0 %v3173, 64
    %v3176 = vpop.permute.xlu0 %3175
    %v3178 = vmul.f32 %v3172, %v3176
    %3180 = vrot.lane.b32.xlu0 %v3178, 64
    %v3181 = vpop.permute.xlu0 %3180
    %v3183 = vadd.f32 %v3017, %v3181
    %v3184 = vtanh.pop %v3183
    %v3185 = vsub.f32 1.0, %v3172
    %3187 = vrot.lane.b32.xlu0 %v3184, 96
    %v3188 = vpop.permute.xlu0 %3187
    %v3190 = vmul.f32 %v3185, %v3188
    %v3191 = vmul.f32 %v3172, %v2983
    %v3192 = vadd.f32 %v3190, %v3191
    %v3193 = vadd.f32 %v3018, %v3163
    %v3194 = vxor.u32 %v3193, 2147483648
    %v3195 = vmul.f32 %v3194, 1.442695
    %v3196 = vpow.pop %v3195
    %v3197 = vadd.f32 %v3196, 1.0
    %v3198 = vrcp.pop %v3197
    %v3199 = vmul.f32 1.0, %v3198
    %v3200 = vadd.f32 %v3163, %v2362
    %3202 = vrot.lane.b32.xlu0 %v3200, 64
    %v3203 = vpop.permute.xlu0 %3202
    %v3205 = vmul.f32 %v3199, %v3203
    %3207 = vrot.lane.b32.xlu0 %v3205, 64
    %v3208 = vpop.permute.xlu0 %3207
    %v3210 = vadd.f32 %v3018, %v3208
    %v3211 = vtanh.pop %v3210
    %v3212 = vsub.f32 1.0, %v3199
    %3214 = vrot.lane.b32.xlu0 %v3211, 96
    %v3215 = vpop.permute.xlu0 %3214
    %v3217 = vmul.f32 %v3212, %v3215
    %v3218 = vmul.f32 %v3199, %v3010
    %v3219 = vadd.f32 %v3217, %v3218
    %3221 = vrot.lane.b32.xlu0 %v3192, 96
    %v3222 = vpop.permute.xlu0 %3221
    %3224 = vst.msk [vmem:[#allocation5 + $0x8] sm:$0x3] %vm497, %v3222
    %3225 = vst.msk [vmem:[#allocation5 + $0x6] sm:$0x3] %vm499, %v3219
    %v3226 = vld [vmem:[#allocation4 + $0xa] sm:$0x3]
    %v3227 = vld [vmem:[%s2157 + $0x4] sm:$0x3]
    %v3228 = vsel %vm90, %v3222, 0
    %3230 = vmatprep.subr.mxu0 0.0
    %3231 = vmatpush1.msra.mxu0 %v2160
    %3232 = vmatprep.subr.mxu0 0.0
    %3233 = vmatpush1.msra.mxu0 %v2161
    %3234 = vmatprep.subr.mxu0 0.0
    %3235 = vmatpush1.msra.mxu0 %v2162
    %3236 = vmatprep.subr.mxu0 0.0
    %3237 = vmatpush1.msra.mxu0 %v2163
    %3238 = vmatprep.subr.mxu0 0.0
    %3239 = vmatpush1.msra.mxu0 0.0
    %3240 = vmatprep.subr.mxu0 0.0
    %3241 = vmatpush1.msra.mxu0 0.0
    %3242 = vmatprep.subr.mxu0 0.0
    %3243 = vmatpush1.msra.mxu0 0.0
    %3244 = vmatprep.subr.mxu0 0.0
    %3245 = vmatpush1.msra.mxu0 0.0
    %3246 = vmatprep.subr.mxu0 0.0
    %3247 = vmatpush1.msra.mxu0 0.0
    %3248 = vmatprep.subr.mxu0 0.0
    %3249 = vmatpush1.msra.mxu0 0.0
    %3250 = vmatprep.subr.mxu0 0.0
    %3251 = vmatpush1.msra.mxu0 0.0
    %3252 = vmatprep.subr.mxu0 0.0
    %3253 = vmatpush1.msra.mxu0 0.0
    %3254 = vmatprep.subr.mxu0 0.0
    %3255 = vmatpush1.msra.mxu0 0.0
    %3256 = vmatprep.subr.mxu0 0.0
    %3257 = vmatpush1.msra.mxu0 0.0
    %3258 = vmatprep.subr.mxu0 0.0
    %3259 = vmatpush1.msra.mxu0 0.0
    %3260 = vmatprep.subr.mxu0 0.0
    %3261 = vmatpush1.msra.mxu0 0.0
    %3262 = vmatprep.subr.mxu0 0.0
    %3263 = vmatpush1.msra.mxu0 0.0
    %3264 = vmatprep.subr.mxu0 0.0
    %3265 = vmatpush1.msra.mxu0 0.0
    %3266 = vmatprep.subr.mxu0 0.0
    %3267 = vmatpush1.msra.mxu0 0.0
    %3268 = vmatprep.subr.mxu0 0.0
    %3269 = vmatpush1.msra.mxu0 0.0
    %3270 = vmatprep.subr.mxu0 0.0
    %3271 = vmatpush1.msra.mxu0 0.0
    %3272 = vmatprep.subr.mxu0 0.0
    %3273 = vmatpush1.msra.mxu0 0.0
    %3274 = vmatprep.subr.mxu0 0.0
    %3275 = vmatpush1.msra.mxu0 0.0
    %3276 = vmatprep.subr.mxu0 0.0
    %3277 = vmatpush1.msra.mxu0 0.0
    %3278 = vmatprep.subr.mxu0 0.0
    %3279 = vmatpush1.msra.mxu0 0.0
    %3280 = vmatprep.subr.mxu0 0.0
    %3281 = vmatpush1.msra.mxu0 0.0
    %3282 = vmatprep.subr.mxu0 0.0
    %3283 = vmatpush1.msra.mxu0 0.0
    %3284 = vmatprep.subr.mxu0 0.0
    %3285 = vmatpush1.msra.mxu0 0.0
    %3286 = vmatprep.subr.mxu0 0.0
    %3287 = vmatpush1.msra.mxu0 0.0
    %3288 = vmatprep.subr.mxu0 0.0
    %3289 = vmatpush1.msra.mxu0 0.0
    %3290 = vmatprep.subr.mxu0 0.0
    %3291 = vmatpush1.msra.mxu0 0.0
    %3292 = vmatprep.subr.mxu0 0.0
    %3293 = vmatpush1.msra.mxu0 0.0
    %3294 = vmatprep.mubr.f32.mxu0 0.0
    %3295 = vmatmul.mubr.f32.gmra.mrb[0].mxu0 %v3228
    %v3296 = vpop.f32.mrb[0].mxu0
    %v3297 = vadd.f32 0.0, %v3296
    %v3298 = vpop.f32.mrb[0].mxu0
    %3299 = vdwg.mxu0
    %3301 = vrot.lane.b32.xlu0 %v3219, 96
    %v3302 = vpop.permute.xlu0 %3301
    %v3303 = vsel %vm90, %v3302, 0
    %3305 = vmatprep.subr.mxu0 0.0
    %3306 = vmatpush1.msra.mxu0 %v2165
    %3307 = vmatprep.subr.mxu0 0.0
    %3308 = vmatpush1.msra.mxu0 %v2166
    %3309 = vmatprep.subr.mxu0 0.0
    %3310 = vmatpush1.msra.mxu0 %v2167
    %3311 = vmatprep.subr.mxu0 0.0
    %3312 = vmatpush1.msra.mxu0 %v2168
    %3313 = vmatprep.subr.mxu0 0.0
    %3314 = vmatpush1.msra.mxu0 0.0
    %3315 = vmatprep.subr.mxu0 0.0
    %3316 = vmatpush1.msra.mxu0 0.0
    %3317 = vmatprep.subr.mxu0 0.0
    %3318 = vmatpush1.msra.mxu0 0.0
    %3319 = vmatprep.subr.mxu0 0.0
    %3320 = vmatpush1.msra.mxu0 0.0
    %3321 = vmatprep.subr.mxu0 0.0
    %3322 = vmatpush1.msra.mxu0 0.0
    %3323 = vmatprep.subr.mxu0 0.0
    %3324 = vmatpush1.msra.mxu0 0.0
    %3325 = vmatprep.subr.mxu0 0.0
    %3326 = vmatpush1.msra.mxu0 0.0
    %3327 = vmatprep.subr.mxu0 0.0
    %3328 = vmatpush1.msra.mxu0 0.0
    %3329 = vmatprep.subr.mxu0 0.0
    %3330 = vmatpush1.msra.mxu0 0.0
    %3331 = vmatprep.subr.mxu0 0.0
    %3332 = vmatpush1.msra.mxu0 0.0
    %3333 = vmatprep.subr.mxu0 0.0
    %3334 = vmatpush1.msra.mxu0 0.0
    %3335 = vmatprep.subr.mxu0 0.0
    %3336 = vmatpush1.msra.mxu0 0.0
    %3337 = vmatprep.subr.mxu0 0.0
    %3338 = vmatpush1.msra.mxu0 0.0
    %3339 = vmatprep.subr.mxu0 0.0
    %3340 = vmatpush1.msra.mxu0 0.0
    %3341 = vmatprep.subr.mxu0 0.0
    %3342 = vmatpush1.msra.mxu0 0.0
    %3343 = vmatprep.subr.mxu0 0.0
    %3344 = vmatpush1.msra.mxu0 0.0
    %3345 = vmatprep.subr.mxu0 0.0
    %3346 = vmatpush1.msra.mxu0 0.0
    %3347 = vmatprep.subr.mxu0 0.0
    %3348 = vmatpush1.msra.mxu0 0.0
    %3349 = vmatprep.subr.mxu0 0.0
    %3350 = vmatpush1.msra.mxu0 0.0
    %3351 = vmatprep.subr.mxu0 0.0
    %3352 = vmatpush1.msra.mxu0 0.0
    %3353 = vmatprep.subr.mxu0 0.0
    %3354 = vmatpush1.msra.mxu0 0.0
    %3355 = vmatprep.subr.mxu0 0.0
    %3356 = vmatpush1.msra.mxu0 0.0
    %3357 = vmatprep.subr.mxu0 0.0
    %3358 = vmatpush1.msra.mxu0 0.0
    %3359 = vmatprep.subr.mxu0 0.0
    %3360 = vmatpush1.msra.mxu0 0.0
    %3361 = vmatprep.subr.mxu0 0.0
    %3362 = vmatpush1.msra.mxu0 0.0
    %3363 = vmatprep.subr.mxu0 0.0
    %3364 = vmatpush1.msra.mxu0 0.0
    %3365 = vmatprep.subr.mxu0 0.0
    %3366 = vmatpush1.msra.mxu0 0.0
    %3367 = vmatprep.subr.mxu0 0.0
    %3368 = vmatpush1.msra.mxu0 0.0
    %3369 = vmatprep.mubr.f32.mxu0 0.0
    %3370 = vmatmul.mubr.f32.gmra.mrb[0].mxu0 %v3303
    %v3371 = vpop.f32.mrb[0].mxu0
    %v3372 = vadd.f32 0.0, %v3371
    %v3373 = vpop.f32.mrb[0].mxu0
    %3374 = vdwg.mxu0
    %v3375 = vadd.f32 %v3226, %v3297
    %v3376 = vxor.u32 %v3375, 2147483648
    %v3377 = vmul.f32 %v3376, 1.442695
    %v3378 = vpow.pop %v3377
    %v3379 = vadd.f32 %v3378, 1.0
    %v3380 = vrcp.pop %v3379
    %v3381 = vmul.f32 1.0, %v3380
    %v3382 = vadd.f32 %v3297, %v2327
    %3384 = vrot.lane.b32.xlu0 %v3382, 64
    %v3385 = vpop.permute.xlu0 %3384
    %v3387 = vmul.f32 %v3381, %v3385
    %3389 = vrot.lane.b32.xlu0 %v3387, 64
    %v3390 = vpop.permute.xlu0 %3389
    %v3392 = vadd.f32 %v3226, %v3390
    %v3393 = vtanh.pop %v3392
    %v3394 = vsub.f32 1.0, %v3381
    %3396 = vrot.lane.b32.xlu0 %v3393, 96
    %v3397 = vpop.permute.xlu0 %3396
    %v3399 = vmul.f32 %v3394, %v3397
    %v3400 = vmul.f32 %v3381, %v3192
    %v3401 = vadd.f32 %v3399, %v3400
    %v3402 = vadd.f32 %v3227, %v3372
    %v3403 = vxor.u32 %v3402, 2147483648
    %v3404 = vmul.f32 %v3403, 1.442695
    %v3405 = vpow.pop %v3404
    %v3406 = vadd.f32 %v3405, 1.0
    %v3407 = vrcp.pop %v3406
    %v3408 = vmul.f32 1.0, %v3407
    %v3409 = vadd.f32 %v3372, %v2362
    %3411 = vrot.lane.b32.xlu0 %v3409, 64
    %v3412 = vpop.permute.xlu0 %3411
    %v3414 = vmul.f32 %v3408, %v3412
    %3416 = vrot.lane.b32.xlu0 %v3414, 64
    %v3417 = vpop.permute.xlu0 %3416
    %v3419 = vadd.f32 %v3227, %v3417
    %v3420 = vtanh.pop %v3419
    %v3421 = vsub.f32 1.0, %v3408
    %3423 = vrot.lane.b32.xlu0 %v3420, 96
    %v3424 = vpop.permute.xlu0 %3423
    %v3426 = vmul.f32 %v3421, %v3424
    %v3427 = vmul.f32 %v3408, %v3219
    %v3428 = vadd.f32 %v3426, %v3427
    %3430 = vrot.lane.b32.xlu0 %v3401, 96
    %v3431 = vpop.permute.xlu0 %3430
    %3433 = vst.msk [vmem:[#allocation5 + $0xa] sm:$0x3] %vm497, %v3431
    %3434 = vst.msk [vmem:[#allocation5 + $0x4] sm:$0x3] %vm499, %v3428
    %v3435 = vld [vmem:[#allocation4 + $0xc] sm:$0x3]
    %v3436 = vld [vmem:[%s2157 + $0x2] sm:$0x3]
    %v3437 = vsel %vm90, %v3431, 0
    %3439 = vmatprep.subr.mxu0 0.0
    %3440 = vmatpush1.msra.mxu0 %v2160
    %3441 = vmatprep.subr.mxu0 0.0
    %3442 = vmatpush1.msra.mxu0 %v2161
    %3443 = vmatprep.subr.mxu0 0.0
    %3444 = vmatpush1.msra.mxu0 %v2162
    %3445 = vmatprep.subr.mxu0 0.0
    %3446 = vmatpush1.msra.mxu0 %v2163
    %3447 = vmatprep.subr.mxu0 0.0
    %3448 = vmatpush1.msra.mxu0 0.0
    %3449 = vmatprep.subr.mxu0 0.0
    %3450 = vmatpush1.msra.mxu0 0.0
    %3451 = vmatprep.subr.mxu0 0.0
    %3452 = vmatpush1.msra.mxu0 0.0
    %3453 = vmatprep.subr.mxu0 0.0
    %3454 = vmatpush1.msra.mxu0 0.0
    %3455 = vmatprep.subr.mxu0 0.0
    %3456 = vmatpush1.msra.mxu0 0.0
    %3457 = vmatprep.subr.mxu0 0.0
    %3458 = vmatpush1.msra.mxu0 0.0
    %3459 = vmatprep.subr.mxu0 0.0
    %3460 = vmatpush1.msra.mxu0 0.0
    %3461 = vmatprep.subr.mxu0 0.0
    %3462 = vmatpush1.msra.mxu0 0.0
    %3463 = vmatprep.subr.mxu0 0.0
    %3464 = vmatpush1.msra.mxu0 0.0
    %3465 = vmatprep.subr.mxu0 0.0
    %3466 = vmatpush1.msra.mxu0 0.0
    %3467 = vmatprep.subr.mxu0 0.0
    %3468 = vmatpush1.msra.mxu0 0.0
    %3469 = vmatprep.subr.mxu0 0.0
    %3470 = vmatpush1.msra.mxu0 0.0
    %3471 = vmatprep.subr.mxu0 0.0
    %3472 = vmatpush1.msra.mxu0 0.0
    %3473 = vmatprep.subr.mxu0 0.0
    %3474 = vmatpush1.msra.mxu0 0.0
    %3475 = vmatprep.subr.mxu0 0.0
    %3476 = vmatpush1.msra.mxu0 0.0
    %3477 = vmatprep.subr.mxu0 0.0
    %3478 = vmatpush1.msra.mxu0 0.0
    %3479 = vmatprep.subr.mxu0 0.0
    %3480 = vmatpush1.msra.mxu0 0.0
    %3481 = vmatprep.subr.mxu0 0.0
    %3482 = vmatpush1.msra.mxu0 0.0
    %3483 = vmatprep.subr.mxu0 0.0
    %3484 = vmatpush1.msra.mxu0 0.0
    %3485 = vmatprep.subr.mxu0 0.0
    %3486 = vmatpush1.msra.mxu0 0.0
    %3487 = vmatprep.subr.mxu0 0.0
    %3488 = vmatpush1.msra.mxu0 0.0
    %3489 = vmatprep.subr.mxu0 0.0
    %3490 = vmatpush1.msra.mxu0 0.0
    %3491 = vmatprep.subr.mxu0 0.0
    %3492 = vmatpush1.msra.mxu0 0.0
    %3493 = vmatprep.subr.mxu0 0.0
    %3494 = vmatpush1.msra.mxu0 0.0
    %3495 = vmatprep.subr.mxu0 0.0
    %3496 = vmatpush1.msra.mxu0 0.0
    %3497 = vmatprep.subr.mxu0 0.0
    %3498 = vmatpush1.msra.mxu0 0.0
    %3499 = vmatprep.subr.mxu0 0.0
    %3500 = vmatpush1.msra.mxu0 0.0
    %3501 = vmatprep.subr.mxu0 0.0
    %3502 = vmatpush1.msra.mxu0 0.0
    %3503 = vmatprep.mubr.f32.mxu0 0.0
    %3504 = vmatmul.mubr.f32.gmra.mrb[0].mxu0 %v3437
    %v3505 = vpop.f32.mrb[0].mxu0
    %v3506 = vadd.f32 0.0, %v3505
    %v3507 = vpop.f32.mrb[0].mxu0
    %3508 = vdwg.mxu0
    %3510 = vrot.lane.b32.xlu0 %v3428, 96
    %v3511 = vpop.permute.xlu0 %3510
    %v3512 = vsel %vm90, %v3511, 0
    %3514 = vmatprep.subr.mxu0 0.0
    %3515 = vmatpush1.msra.mxu0 %v2165
    %3516 = vmatprep.subr.mxu0 0.0
    %3517 = vmatpush1.msra.mxu0 %v2166
    %3518 = vmatprep.subr.mxu0 0.0
    %3519 = vmatpush1.msra.mxu0 %v2167
    %3520 = vmatprep.subr.mxu0 0.0
    %3521 = vmatpush1.msra.mxu0 %v2168
    %3522 = vmatprep.subr.mxu0 0.0
    %3523 = vmatpush1.msra.mxu0 0.0
    %3524 = vmatprep.subr.mxu0 0.0
    %3525 = vmatpush1.msra.mxu0 0.0
    %3526 = vmatprep.subr.mxu0 0.0
    %3527 = vmatpush1.msra.mxu0 0.0
    %3528 = vmatprep.subr.mxu0 0.0
    %3529 = vmatpush1.msra.mxu0 0.0
    %3530 = vmatprep.subr.mxu0 0.0
    %3531 = vmatpush1.msra.mxu0 0.0
    %3532 = vmatprep.subr.mxu0 0.0
    %3533 = vmatpush1.msra.mxu0 0.0
    %3534 = vmatprep.subr.mxu0 0.0
    %3535 = vmatpush1.msra.mxu0 0.0
    %3536 = vmatprep.subr.mxu0 0.0
    %3537 = vmatpush1.msra.mxu0 0.0
    %3538 = vmatprep.subr.mxu0 0.0
    %3539 = vmatpush1.msra.mxu0 0.0
    %3540 = vmatprep.subr.mxu0 0.0
    %3541 = vmatpush1.msra.mxu0 0.0
    %3542 = vmatprep.subr.mxu0 0.0
    %3543 = vmatpush1.msra.mxu0 0.0
    %3544 = vmatprep.subr.mxu0 0.0
    %3545 = vmatpush1.msra.mxu0 0.0
    %3546 = vmatprep.subr.mxu0 0.0
    %3547 = vmatpush1.msra.mxu0 0.0
    %3548 = vmatprep.subr.mxu0 0.0
    %3549 = vmatpush1.msra.mxu0 0.0
    %3550 = vmatprep.subr.mxu0 0.0
    %3551 = vmatpush1.msra.mxu0 0.0
    %3552 = vmatprep.subr.mxu0 0.0
    %3553 = vmatpush1.msra.mxu0 0.0
    %3554 = vmatprep.subr.mxu0 0.0
    %3555 = vmatpush1.msra.mxu0 0.0
    %3556 = vmatprep.subr.mxu0 0.0
    %3557 = vmatpush1.msra.mxu0 0.0
    %3558 = vmatprep.subr.mxu0 0.0
    %3559 = vmatpush1.msra.mxu0 0.0
    %3560 = vmatprep.subr.mxu0 0.0
    %3561 = vmatpush1.msra.mxu0 0.0
    %3562 = vmatprep.subr.mxu0 0.0
    %3563 = vmatpush1.msra.mxu0 0.0
    %3564 = vmatprep.subr.mxu0 0.0
    %3565 = vmatpush1.msra.mxu0 0.0
    %3566 = vmatprep.subr.mxu0 0.0
    %3567 = vmatpush1.msra.mxu0 0.0
    %3568 = vmatprep.subr.mxu0 0.0
    %3569 = vmatpush1.msra.mxu0 0.0
    %3570 = vmatprep.subr.mxu0 0.0
    %3571 = vmatpush1.msra.mxu0 0.0
    %3572 = vmatprep.subr.mxu0 0.0
    %3573 = vmatpush1.msra.mxu0 0.0
    %3574 = vmatprep.subr.mxu0 0.0
    %3575 = vmatpush1.msra.mxu0 0.0
    %3576 = vmatprep.subr.mxu0 0.0
    %3577 = vmatpush1.msra.mxu0 0.0
    %3578 = vmatprep.mubr.f32.mxu0 0.0
    %3579 = vmatmul.mubr.f32.gmra.mrb[0].mxu0 %v3512
    %v3580 = vpop.f32.mrb[0].mxu0
    %v3581 = vadd.f32 0.0, %v3580
    %v3582 = vpop.f32.mrb[0].mxu0
    %3583 = vdwg.mxu0
    %v3584 = vadd.f32 %v3435, %v3506
    %v3585 = vxor.u32 %v3584, 2147483648
    %v3586 = vmul.f32 %v3585, 1.442695
    %v3587 = vpow.pop %v3586
    %v3588 = vadd.f32 %v3587, 1.0
    %v3589 = vrcp.pop %v3588
    %v3590 = vmul.f32 1.0, %v3589
    %v3591 = vadd.f32 %v3506, %v2327
    %3593 = vrot.lane.b32.xlu0 %v3591, 64
    %v3594 = vpop.permute.xlu0 %3593
    %v3596 = vmul.f32 %v3590, %v3594
    %3598 = vrot.lane.b32.xlu0 %v3596, 64
    %v3599 = vpop.permute.xlu0 %3598
    %v3601 = vadd.f32 %v3435, %v3599
    %v3602 = vtanh.pop %v3601
    %v3603 = vsub.f32 1.0, %v3590
    %3605 = vrot.lane.b32.xlu0 %v3602, 96
    %v3606 = vpop.permute.xlu0 %3605
    %v3608 = vmul.f32 %v3603, %v3606
    %v3609 = vmul.f32 %v3590, %v3401
    %v3610 = vadd.f32 %v3608, %v3609
    %v3611 = vadd.f32 %v3436, %v3581
    %v3612 = vxor.u32 %v3611, 2147483648
    %v3613 = vmul.f32 %v3612, 1.442695
    %v3614 = vpow.pop %v3613
    %v3615 = vadd.f32 %v3614, 1.0
    %v3616 = vrcp.pop %v3615
    %v3617 = vmul.f32 1.0, %v3616
    %v3618 = vadd.f32 %v3581, %v2362
    %3620 = vrot.lane.b32.xlu0 %v3618, 64
    %v3621 = vpop.permute.xlu0 %3620
    %v3623 = vmul.f32 %v3617, %v3621
    %3625 = vrot.lane.b32.xlu0 %v3623, 64
    %v3626 = vpop.permute.xlu0 %3625
    %v3628 = vadd.f32 %v3436, %v3626
    %v3629 = vtanh.pop %v3628
    %v3630 = vsub.f32 1.0, %v3617
    %3632 = vrot.lane.b32.xlu0 %v3629, 96
    %v3633 = vpop.permute.xlu0 %3632
    %v3635 = vmul.f32 %v3630, %v3633
    %v3636 = vmul.f32 %v3617, %v3428
    %v3637 = vadd.f32 %v3635, %v3636
    %3639 = vrot.lane.b32.xlu0 %v3610, 96
    %v3640 = vpop.permute.xlu0 %3639
    %3642 = vst.msk [vmem:[#allocation5 + $0xc] sm:$0x3] %vm497, %v3640
    %3643 = vst.msk [vmem:[#allocation5 + $0x2] sm:$0x3] %vm499, %v3637
    %v3644 = vld [vmem:[#allocation4 + $0xe] sm:$0x3]
    %v3645 = vld [vmem:[%s2157] sm:$0x3]
    %v3646 = vsel %vm90, %v3640, 0
    %3648 = vmatprep.subr.mxu0 0.0
    %3649 = vmatpush1.msra.mxu0 %v2160
    %3650 = vmatprep.subr.mxu0 0.0
    %3651 = vmatpush1.msra.mxu0 %v2161
    %3652 = vmatprep.subr.mxu0 0.0
    %3653 = vmatpush1.msra.mxu0 %v2162
    %3654 = vmatprep.subr.mxu0 0.0
    %3655 = vmatpush1.msra.mxu0 %v2163
    %3656 = vmatprep.subr.mxu0 0.0
    %3657 = vmatpush1.msra.mxu0 0.0
    %3658 = vmatprep.subr.mxu0 0.0
    %3659 = vmatpush1.msra.mxu0 0.0
    %3660 = vmatprep.subr.mxu0 0.0
    %3661 = vmatpush1.msra.mxu0 0.0
    %3662 = vmatprep.subr.mxu0 0.0
    %3663 = vmatpush1.msra.mxu0 0.0
    %3664 = vmatprep.subr.mxu0 0.0
    %3665 = vmatpush1.msra.mxu0 0.0
    %3666 = vmatprep.subr.mxu0 0.0
    %3667 = vmatpush1.msra.mxu0 0.0
    %3668 = vmatprep.subr.mxu0 0.0
    %3669 = vmatpush1.msra.mxu0 0.0
    %3670 = vmatprep.subr.mxu0 0.0
    %3671 = vmatpush1.msra.mxu0 0.0
    %3672 = vmatprep.subr.mxu0 0.0
    %3673 = vmatpush1.msra.mxu0 0.0
    %3674 = vmatprep.subr.mxu0 0.0
    %3675 = vmatpush1.msra.mxu0 0.0
    %3676 = vmatprep.subr.mxu0 0.0
    %3677 = vmatpush1.msra.mxu0 0.0
    %3678 = vmatprep.subr.mxu0 0.0
    %3679 = vmatpush1.msra.mxu0 0.0
    %3680 = vmatprep.subr.mxu0 0.0
    %3681 = vmatpush1.msra.mxu0 0.0
    %3682 = vmatprep.subr.mxu0 0.0
    %3683 = vmatpush1.msra.mxu0 0.0
    %3684 = vmatprep.subr.mxu0 0.0
    %3685 = vmatpush1.msra.mxu0 0.0
    %3686 = vmatprep.subr.mxu0 0.0
    %3687 = vmatpush1.msra.mxu0 0.0
    %3688 = vmatprep.subr.mxu0 0.0
    %3689 = vmatpush1.msra.mxu0 0.0
    %3690 = vmatprep.subr.mxu0 0.0
    %3691 = vmatpush1.msra.mxu0 0.0
    %3692 = vmatprep.subr.mxu0 0.0
    %3693 = vmatpush1.msra.mxu0 0.0
    %3694 = vmatprep.subr.mxu0 0.0
    %3695 = vmatpush1.msra.mxu0 0.0
    %3696 = vmatprep.subr.mxu0 0.0
    %3697 = vmatpush1.msra.mxu0 0.0
    %3698 = vmatprep.subr.mxu0 0.0
    %3699 = vmatpush1.msra.mxu0 0.0
    %3700 = vmatprep.subr.mxu0 0.0
    %3701 = vmatpush1.msra.mxu0 0.0
    %3702 = vmatprep.subr.mxu0 0.0
    %3703 = vmatpush1.msra.mxu0 0.0
    %3704 = vmatprep.subr.mxu0 0.0
    %3705 = vmatpush1.msra.mxu0 0.0
    %3706 = vmatprep.subr.mxu0 0.0
    %3707 = vmatpush1.msra.mxu0 0.0
    %3708 = vmatprep.subr.mxu0 0.0
    %3709 = vmatpush1.msra.mxu0 0.0
    %3710 = vmatprep.subr.mxu0 0.0
    %3711 = vmatpush1.msra.mxu0 0.0
    %3712 = vmatprep.mubr.f32.mxu0 0.0
    %3713 = vmatmul.mubr.f32.gmra.mrb[0].mxu0 %v3646
    %v3714 = vpop.f32.mrb[0].mxu0
    %v3715 = vadd.f32 0.0, %v3714
    %v3716 = vpop.f32.mrb[0].mxu0
    %3717 = vdwg.mxu0
    %3719 = vrot.lane.b32.xlu0 %v3637, 96
    %v3720 = vpop.permute.xlu0 %3719
    %v3721 = vsel %vm90, %v3720, 0
    %3723 = vmatprep.subr.mxu0 0.0
    %3724 = vmatpush1.msra.mxu0 %v2165
    %3725 = vmatprep.subr.mxu0 0.0
    %3726 = vmatpush1.msra.mxu0 %v2166
    %3727 = vmatprep.subr.mxu0 0.0
    %3728 = vmatpush1.msra.mxu0 %v2167
    %3729 = vmatprep.subr.mxu0 0.0
    %3730 = vmatpush1.msra.mxu0 %v2168
    %3731 = vmatprep.subr.mxu0 0.0
    %3732 = vmatpush1.msra.mxu0 0.0
    %3733 = vmatprep.subr.mxu0 0.0
    %3734 = vmatpush1.msra.mxu0 0.0
    %3735 = vmatprep.subr.mxu0 0.0
    %3736 = vmatpush1.msra.mxu0 0.0
    %3737 = vmatprep.subr.mxu0 0.0
    %3738 = vmatpush1.msra.mxu0 0.0
    %3739 = vmatprep.subr.mxu0 0.0
    %3740 = vmatpush1.msra.mxu0 0.0
    %3741 = vmatprep.subr.mxu0 0.0
    %3742 = vmatpush1.msra.mxu0 0.0
    %3743 = vmatprep.subr.mxu0 0.0
    %3744 = vmatpush1.msra.mxu0 0.0
    %3745 = vmatprep.subr.mxu0 0.0
    %3746 = vmatpush1.msra.mxu0 0.0
    %3747 = vmatprep.subr.mxu0 0.0
    %3748 = vmatpush1.msra.mxu0 0.0
    %3749 = vmatprep.subr.mxu0 0.0
    %3750 = vmatpush1.msra.mxu0 0.0
    %3751 = vmatprep.subr.mxu0 0.0
    %3752 = vmatpush1.msra.mxu0 0.0
    %3753 = vmatprep.subr.mxu0 0.0
    %3754 = vmatpush1.msra.mxu0 0.0
    %3755 = vmatprep.subr.mxu0 0.0
    %3756 = vmatpush1.msra.mxu0 0.0
    %3757 = vmatprep.subr.mxu0 0.0
    %3758 = vmatpush1.msra.mxu0 0.0
    %3759 = vmatprep.subr.mxu0 0.0
    %3760 = vmatpush1.msra.mxu0 0.0
    %3761 = vmatprep.subr.mxu0 0.0
    %3762 = vmatpush1.msra.mxu0 0.0
    %3763 = vmatprep.subr.mxu0 0.0
    %3764 = vmatpush1.msra.mxu0 0.0
    %3765 = vmatprep.subr.mxu0 0.0
    %3766 = vmatpush1.msra.mxu0 0.0
    %3767 = vmatprep.subr.mxu0 0.0
    %3768 = vmatpush1.msra.mxu0 0.0
    %3769 = vmatprep.subr.mxu0 0.0
    %3770 = vmatpush1.msra.mxu0 0.0
    %3771 = vmatprep.subr.mxu0 0.0
    %3772 = vmatpush1.msra.mxu0 0.0
    %3773 = vmatprep.subr.mxu0 0.0
    %3774 = vmatpush1.msra.mxu0 0.0
    %3775 = vmatprep.subr.mxu0 0.0
    %3776 = vmatpush1.msra.mxu0 0.0
    %3777 = vmatprep.subr.mxu0 0.0
    %3778 = vmatpush1.msra.mxu0 0.0
    %3779 = vmatprep.subr.mxu0 0.0
    %3780 = vmatpush1.msra.mxu0 0.0
    %3781 = vmatprep.subr.mxu0 0.0
    %3782 = vmatpush1.msra.mxu0 0.0
    %3783 = vmatprep.subr.mxu0 0.0
    %3784 = vmatpush1.msra.mxu0 0.0
    %3785 = vmatprep.subr.mxu0 0.0
    %3786 = vmatpush1.msra.mxu0 0.0
    %3787 = vmatprep.mubr.f32.mxu0 0.0
    %3788 = vmatmul.mubr.f32.gmra.mrb[0].mxu0 %v3721
    %v3789 = vpop.f32.mrb[0].mxu0
    %v3790 = vadd.f32 0.0, %v3789
    %v3791 = vpop.f32.mrb[0].mxu0
    %3792 = vdwg.mxu0
    %v3793 = vadd.f32 %v3644, %v3715
    %v3794 = vxor.u32 %v3793, 2147483648
    %v3795 = vmul.f32 %v3794, 1.442695
    %v3796 = vpow.pop %v3795
    %v3797 = vadd.f32 %v3796, 1.0
    %v3798 = vrcp.pop %v3797
    %v3799 = vmul.f32 1.0, %v3798
    %v3800 = vadd.f32 %v3715, %v2327
    %3802 = vrot.lane.b32.xlu0 %v3800, 64
    %v3803 = vpop.permute.xlu0 %3802
    %v3805 = vmul.f32 %v3799, %v3803
    %3807 = vrot.lane.b32.xlu0 %v3805, 64
    %v3808 = vpop.permute.xlu0 %3807
    %v3810 = vadd.f32 %v3644, %v3808
    %v3811 = vtanh.pop %v3810
    %v3812 = vsub.f32 1.0, %v3799
    %3814 = vrot.lane.b32.xlu0 %v3811, 96
    %v3815 = vpop.permute.xlu0 %3814
    %v3817 = vmul.f32 %v3812, %v3815
    %v3818 = vmul.f32 %v3799, %v3610
    %v3819 = vadd.f32 %v3817, %v3818
    %v3820 = vadd.f32 %v3645, %v3790
    %v3821 = vxor.u32 %v3820, 2147483648
    %v3822 = vmul.f32 %v3821, 1.442695
    %v3823 = vpow.pop %v3822
    %v3824 = vadd.f32 %v3823, 1.0
    %v3825 = vrcp.pop %v3824
    %v3826 = vmul.f32 1.0, %v3825
    %v3827 = vadd.f32 %v3790, %v2362
    %3829 = vrot.lane.b32.xlu0 %v3827, 64
    %v3830 = vpop.permute.xlu0 %3829
    %v3832 = vmul.f32 %v3826, %v3830
    %3834 = vrot.lane.b32.xlu0 %v3832, 64
    %v3835 = vpop.permute.xlu0 %3834
    %v3837 = vadd.f32 %v3645, %v3835
    %v3838 = vtanh.pop %v3837
    %v3839 = vsub.f32 1.0, %v3826
    %3841 = vrot.lane.b32.xlu0 %v3838, 96
    %v3842 = vpop.permute.xlu0 %3841
    %v3844 = vmul.f32 %v3839, %v3842
    %v3845 = vmul.f32 %v3826, %v3637
    %v3846 = vadd.f32 %v3844, %v3845
    %3848 = vrot.lane.b32.xlu0 %v3819, 96
    %v3849 = vpop.permute.xlu0 %3848
    %3851 = vst.msk [vmem:[#allocation5 + $0xe] sm:$0x3] %vm497, %v3849
    %3852 = vst.msk [vmem:[#allocation5] sm:$0x3] %vm499, %v3846
    %v3853 = vld [vmem:[#allocation5] sm:$0xff]
    %v3854 = vld [vmem:[#allocation5 + $0x8] sm:$0xff]
    %vm3855 = vcmp.ge.f32.partialorder %v3853, 0.0
    %vm3856 = vcmp.ge.f32.partialorder %v3854, 0.0
    %v3857 = vmul.f32 %v3853, 0.01
    %v3858 = vmul.f32 %v3854, 0.01
    %v3859 = vsel %vm3855, %v3853, %v3857
    %v3860 = vsel %vm3856, %v3854, %v3858
    %v3861 = vld [vmem:[%s10] sm:$0xff]
    %v3862 = vld [vmem:[%s10 + $0x8] sm:$0xff]
    %v3863 = vld [vmem:[%s10 + $0x10] sm:$0xff]
    %v3864 = vld [vmem:[%s10 + $0x18] sm:$0xff]
    %v3865 = vld [vmem:[%s10 + $0x20] sm:$0xff]
    %v3866 = vld [vmem:[%s10 + $0x28] sm:$0xff]
    %v3867 = vld [vmem:[%s10 + $0x30] sm:$0xff]
    %v3868 = vld [vmem:[%s10 + $0x38] sm:$0xff]
    %v3869 = vld [vmem:[%s11] sm:$0x1]
    %v3871 = vlaneseq
    %v3872 = vshrl.u32 %v3871, 7
    %v3873 = vsub.s32 0, %v3872
    %v3874 = vrot.slane %v3869, %v3873
    %v3877 = vsel %vm1981, %v3859, 0
    %v3880 = vsel %vm1981, %v3860, 0
    %3882 = vmatprep.subr.mxu0 0.0
    %3883 = vmatpush1.msra.mxu0 %v3861
    %3884 = vmatprep.subr.mxu0 0.0
    %3885 = vmatpush1.msra.mxu0 %v3862
    %3886 = vmatprep.subr.mxu0 0.0
    %3887 = vmatpush1.msra.mxu0 %v3863
    %3888 = vmatprep.subr.mxu0 0.0
    %3889 = vmatpush1.msra.mxu0 %v3864
    %3890 = vmatprep.subr.mxu0 0.0
    %3891 = vmatpush1.msra.mxu0 %v3865
    %3892 = vmatprep.subr.mxu0 0.0
    %3893 = vmatpush1.msra.mxu0 %v3866
    %3894 = vmatprep.subr.mxu0 0.0
    %3895 = vmatpush1.msra.mxu0 %v3867
    %3896 = vmatprep.subr.mxu0 0.0
    %3897 = vmatpush1.msra.mxu0 %v3868
    %3898 = vmatprep.subr.mxu0 0.0
    %3899 = vmatpush1.msra.mxu0 0.0
    %3900 = vmatprep.subr.mxu0 0.0
    %3901 = vmatpush1.msra.mxu0 0.0
    %3902 = vmatprep.subr.mxu0 0.0
    %3903 = vmatpush1.msra.mxu0 0.0
    %3904 = vmatprep.subr.mxu0 0.0
    %3905 = vmatpush1.msra.mxu0 0.0
    %3906 = vmatprep.subr.mxu0 0.0
    %3907 = vmatpush1.msra.mxu0 0.0
    %3908 = vmatprep.subr.mxu0 0.0
    %3909 = vmatpush1.msra.mxu0 0.0
    %3910 = vmatprep.subr.mxu0 0.0
    %3911 = vmatpush1.msra.mxu0 0.0
    %3912 = vmatprep.subr.mxu0 0.0
    %3913 = vmatpush1.msra.mxu0 0.0
    %3914 = vmatprep.subr.mxu0 0.0
    %3915 = vmatpush1.msra.mxu0 0.0
    %3916 = vmatprep.subr.mxu0 0.0
    %3917 = vmatpush1.msra.mxu0 0.0
    %3918 = vmatprep.subr.mxu0 0.0
    %3919 = vmatpush1.msra.mxu0 0.0
    %3920 = vmatprep.subr.mxu0 0.0
    %3921 = vmatpush1.msra.mxu0 0.0
    %3922 = vmatprep.subr.mxu0 0.0
    %3923 = vmatpush1.msra.mxu0 0.0
    %3924 = vmatprep.subr.mxu0 0.0
    %3925 = vmatpush1.msra.mxu0 0.0
    %3926 = vmatprep.subr.mxu0 0.0
    %3927 = vmatpush1.msra.mxu0 0.0
    %3928 = vmatprep.subr.mxu0 0.0
    %3929 = vmatpush1.msra.mxu0 0.0
    %3930 = vmatprep.subr.mxu0 0.0
    %3931 = vmatpush1.msra.mxu0 0.0
    %3932 = vmatprep.subr.mxu0 0.0
    %3933 = vmatpush1.msra.mxu0 0.0
    %3934 = vmatprep.subr.mxu0 0.0
    %3935 = vmatpush1.msra.mxu0 0.0
    %3936 = vmatprep.subr.mxu0 0.0
    %3937 = vmatpush1.msra.mxu0 0.0
    %3938 = vmatprep.subr.mxu0 0.0
    %3939 = vmatpush1.msra.mxu0 0.0
    %3940 = vmatprep.subr.mxu0 0.0
    %3941 = vmatpush1.msra.mxu0 0.0
    %3942 = vmatprep.subr.mxu0 0.0
    %3943 = vmatpush1.msra.mxu0 0.0
    %3944 = vmatprep.subr.mxu0 0.0
    %3945 = vmatpush1.msra.mxu0 0.0
    %3946 = vmatprep.mubr.f32.mxu0 0.0
    %3947 = vmatmul.mubr.f32.gmra.mrb[0].mxu0 %v3877
    %v3948 = vpop.f32.mrb[0].mxu0
    %v3949 = vadd.f32 %v3874, %v3948
    %v3950 = vpop.f32.mrb[0].mxu0
    %3951 = vmatprep.mubr.f32.mxu0 0.0
    %3952 = vmatmul.mubr.f32.gmra.mrb[0].mxu0 %v3880
    %v3953 = vpop.f32.mrb[0].mxu0
    %v3954 = vadd.f32 %v3874, %v3953
    %v3955 = vpop.f32.mrb[0].mxu0
    %3956 = vdwg.mxu0
    %v3957 = vadd.f32 %v77, %v3949
    %v3958 = vadd.f32 %v78, %v3954
    %vm3959 = vcmp.ge.f32.partialorder %v3957, 0.0
    %vm3960 = vcmp.ge.f32.partialorder %v3958, 0.0
    %v3961 = vmul.f32 %v3957, 0.01
    %v3962 = vmul.f32 %v3958, 0.01
    %v3963 = vsel %vm3959, %v3957, %v3961
    %v3964 = vsel %vm3960, %v3958, %v3962
    %v3965 = vld [vmem:[%s12] sm:$0x1]
    %v3967 = vlaneseq
    %v3968 = vshrl.u32 %v3967, 7
    %v3969 = vsub.s32 0, %v3968
    %v3970 = vrot.slane %v3965, %v3969
    %v3972 = vmul.f32 %v3963, %v3970
    %v3973 = vmul.f32 %v3964, %v3970
    %v3974 = vsel %vm90, %v3972, 0.0
    %3975 = vadd.xlane.f32.xlu0 %v3974
    %v3976 = vpop.xlane.xlu0 %3975
    %v3977 = vsel %vm90, %v3973, 0.0
    %3978 = vadd.xlane.f32.xlu0 %v3977
    %v3979 = vpop.xlane.xlu0 %3978
    %v3980 = vld [vmem:[#allocation6] sm:$0x1]
    %v3982 = vlaneseq
    %v3983 = vshrl.u32 %v3982, 7
    %v3984 = vsub.s32 0, %v3983
    %v3985 = vrot.slane %v3980, %v3984
    %v3987 = vadd.f32 %v3976, %v3985
    %v3988 = vadd.f32 %v3979, %v3985
    %v3989 = vld [vmem:[%s1] sm:$0xff]
    %v3990 = vld [vmem:[%s1 + $0x8] sm:$0xff]
    %v3991 = vsub.f32 1.0, %v3989
    %v3992 = vsub.f32 1.0, %v3990
    %v3993 = vmul.f32 %v3987, %v3991
    %v3994 = vmul.f32 %v3988, %v3992
    %v3995 = vmul.f32 %v3989, 1e+30
    %v3996 = vmul.f32 %v3990, 1e+30
    %v3997 = vsub.f32 %v3993, %v3995
    %v3998 = vsub.f32 %v3994, %v3996
    %vm3999 = vcmask 7168
    %4000 = vst.msk [vmem:[%s14] sm:$0xff] %vm3999, %v3997
    %4001 = vst.msk [vmem:[%s14 + $0x8] sm:$0xff] %vm3999, %v3998
    // Predicated region
    $region66: #{pooler_start_logits_gru.1} parent=1 // pred_check
      _
    $region67: #{pooler_start_logits_gru.1} parent=1 // pred_check_branch
      %4003 = sbr.rel (0) target = $region69
    $region68: #{pooler_start_logits_gru.1} parent=1 // pred_region
      _
    $region69: #{pooler_start_logits_gru.1} parent=1 // pred_fallthru
      _
    // Predicated region
    $region70: #{pooler_start_logits_gru.1} parent=1 // pred_check
      _
    $region71: #{pooler_start_logits_gru.1} parent=1 // pred_check_branch
      %4005 = sbr.rel (0) target = $region73
    $region72: #{pooler_start_logits_gru.1} parent=1 // pred_region
      _
    $region73: #{pooler_start_logits_gru.1} parent=1 // pred_fallthru
      _
    %4006 = vsyncpa [#allocation8], 1
    %4007 = vsyncpa [#allocation10], 1

</llo_original>
